<compile_context>
chip_gen: v7x
topology: tpu7x:2x2x1
jax: 0.10.0
libtpu: 0.0.40
codegen_flags: <defaults>
</compile_context>

<pallas_src>
import jax
import jax.numpy as jnp
from jax import lax
from jax.experimental import pallas as pl
from jax.experimental.pallas import tpu as pltpu


IN_DIM = 28 * 28      # 784  (logical, from the PyTorch module)
HID_DIM = 1000        # logical
OUT_DIM = 10
BN_EPS = 1e-5

IN_PAD = 896          # 7 * 128 : lane-aligned fc1 contraction dim
HID_PAD = 1024        # 8 * 128 : lane-aligned hidden dim
OUT_PAD = 128         # lane-dense output path (unmasked vst); sliced to 10 outside
HID_SPLIT = 2         # leading "parallel" grid axis (both TCs on v7x)
TILE_H = 512          # hidden tile per grid step; sweep 256/512 with the real B
N_INNER = HID_PAD // (HID_SPLIT * TILE_H)
assert HID_PAD == HID_SPLIT * TILE_H * N_INNER


def mlp_cls_kernel(x_ref, w1q_ref, gs_ref, ssq_ref, beta_ref, w2_ref, o_ref):
    j = pl.program_id(1)

    # W1 tile: int8 -> bf16 on the VPU (exact, |q| <= 127); the per-column
    # dequant scale is folded into the BN affine below, so there is no extra
    # [IN_PAD, TILE_H] scaling pass.  fc1's bias is omitted: training-mode
    # BatchNorm subtracts the batch mean, so a per-feature shift cancels.
    w1_t = w1q_ref[...].astype(jnp.bfloat16)
    hq = jnp.dot(x_ref[...], w1_t, preferred_element_type=jnp.float32)

    # Training-mode BatchNorm1d (biased 1/B batch stats over axis 0) in
    # quantized units, single pass, with affine + dequant folded:
    #   h     = hq * s                         (per-column dequant)
    #   out   = (h - mean(h)) * gamma / sqrt(var(h)+eps) + beta
    #         = hq * scale + shift
    #   scale = s*gamma * rsqrt(s^2*var_q + eps)
    #   shift = beta - mean_q * scale
    # NOTE: stats divide by the true batch size; the batch dim must never be
    # zero-padded.
    # TODO(synk): BatchNorm1d's running_mean / running_var side-effect updates
    # are not emitted (forward output only).
    inv_b = 1.0 / x_ref.shape[0]
    mean_q = jnp.sum(hq, axis=0, keepdims=True) * inv_b            # [1, TILE_H]
    ex2_q = jnp.sum(hq * hq, axis=0, keepdims=True) * inv_b
    var_q = ex2_q - mean_q * mean_q
    scale = gs_ref[...] * lax.rsqrt(ssq_ref[...] * var_q + BN_EPS)  # EUP rsqrt
    shift = beta_ref[...] - mean_q * scale
    a = jnp.maximum(hq * scale + shift, 0.0)                        # BN + ReLU

    # fc2 partial for this hidden tile, accumulated straight into the
    # (resident) per-half output block; b2 is added in the wrapper.
    part = jnp.dot(a.astype(jnp.bfloat16), w2_ref[...],
                   preferred_element_type=jnp.float32)

    @pl.when(j == 0)
    def _():
        o_ref[...] = part

    @pl.when(j > 0)
    def _():
        o_ref[...] += part


def mlp_cls_forward(x, kernel_params):
    """x: [B, 784] f32/bf16. kernel_params from prepare_kernel_params()."""
    w1_q, gamma_s, s_sq, beta_p, w2_p, b2 = kernel_params
    B = x.shape[0]

    # Zero-pad the feature axis (W1's padded rows are zero, so it's a no-op)
    # and cast to bf16 for native-MXU matmuls with f32 accumulation.
    xp = jnp.pad(x.astype(jnp.bfloat16), ((0, 0), (0, IN_PAD - IN_DIM)))

    flops = 2 * B * IN_PAD * HID_PAD + 2 * B * HID_PAD * OUT_PAD
    bytes_accessed = (xp.size * 2 + w1_q.size * 1 + w2_p.size * 2
                      + (gamma_s.size + s_sq.size + beta_p.size) * 4
                      + HID_SPLIT * B * OUT_PAD * 4)

    parts = pl.pallas_call(
        mlp_cls_kernel,
        out_shape=jax.ShapeDtypeStruct((HID_SPLIT, B, OUT_PAD), jnp.float32),
        grid_spec=pltpu.PrefetchScalarGridSpec(
            num_scalar_prefetch=0,
            grid=(HID_SPLIT, N_INNER),
            in_specs=[
                pl.BlockSpec((B, IN_PAD), lambda c, j: (0, 0)),          # x (resident)
                pl.BlockSpec((IN_PAD, TILE_H),
                             lambda c, j: (0, c * N_INNER + j)),          # W1 int8 tile
                pl.BlockSpec((1, TILE_H),
                             lambda c, j: (0, c * N_INNER + j)),          # gamma * s
                pl.BlockSpec((1, TILE_H),
                             lambda c, j: (0, c * N_INNER + j)),          # s^2
                pl.BlockSpec((1, TILE_H),
                             lambda c, j: (0, c * N_INNER + j)),          # beta
                pl.BlockSpec((TILE_H, OUT_PAD),
                             lambda c, j: (c * N_INNER + j, 0)),          # W2 tile
            ],
            out_specs=pl.BlockSpec((None, B, OUT_PAD), lambda c, j: (c, 0, 0)),
        ),
        compiler_params=pltpu.CompilerParams(
            dimension_semantics=("parallel", "arbitrary")),
        cost_estimate=pl.CostEstimate(
            flops=flops, transcendentals=HID_PAD,
            bytes_accessed=bytes_accessed),
    )(xp, w1_q, gamma_s, s_sq, beta_p, w2_p)

    # Sum the two hidden-half partials, drop the lane padding, add fc2 bias.
    return (parts[0] + parts[1])[:, :OUT_DIM] + b2


def init_params(key):
    """PyTorch-like init: Linear uniform(-1/sqrt(fan_in), 1/sqrt(fan_in)),
    BatchNorm1d gamma=1, beta=0.  Logical (unpadded) f32 shapes."""
    k1, k2, k3, k4 = jax.random.split(key, 4)
    bound1 = 1.0 / jnp.sqrt(float(IN_DIM))
    bound2 = 1.0 / jnp.sqrt(float(HID_DIM))
    w1 = jax.random.uniform(k1, (IN_DIM, HID_DIM), jnp.float32, -bound1, bound1)
    b1 = jax.random.uniform(k2, (1, HID_DIM), jnp.float32, -bound1, bound1)
    gamma = jnp.ones((1, HID_DIM), jnp.float32)
    beta = jnp.zeros((1, HID_DIM), jnp.float32)
    w2 = jax.random.uniform(k3, (HID_DIM, OUT_DIM), jnp.float32, -bound2, bound2)
    b2 = jax.random.uniform(k4, (1, OUT_DIM), jnp.float32, -bound2, bound2)
    return (w1, b1, gamma, beta, w2, b2)


def prepare_kernel_params(params):
    """Pad to lane-aligned shapes; quantize W1 to per-column int8, W2 to bf16.

    Returns (kernel_params, w1_deq) where w1_deq is the dequantized logical W1
    (f32) for reference checks.  b1 is dropped (training-mode BN cancels a
    per-feature constant shift — only valid for batch-stat BN, not eval mode).
    Padded gamma/beta columns, padded W2 rows/cols and padded W1 rows are zero,
    so padded units / lanes contribute exactly zero."""
    w1, _b1, gamma, beta, w2, b2 = params

    w1_p = jnp.pad(w1, ((0, IN_PAD - IN_DIM), (0, HID_PAD - HID_DIM)))
    amax = jnp.max(jnp.abs(w1_p), axis=0, keepdims=True)            # [1, HID_PAD]
    s = jnp.where(amax > 0, amax / 127.0, 1.0)
    w1_q = jnp.clip(jnp.round(w1_p / s), -127, 127).astype(jnp.int8)

    gamma_p = jnp.pad(gamma, ((0, 0), (0, HID_PAD - HID_DIM)))
    beta_p = jnp.pad(beta, ((0, 0), (0, HID_PAD - HID_DIM))).astype(jnp.float32)
    gamma_s = (gamma_p * s).astype(jnp.float32)   # fold dequant scale into BN
    s_sq = (s * s).astype(jnp.float32)

    w2_p = jnp.pad(w2, ((0, HID_PAD - HID_DIM),
                        (0, OUT_PAD - OUT_DIM))).astype(jnp.bfloat16)

    kernel_params = (w1_q, gamma_s, s_sq, beta_p, w2_p, b2)
    w1_deq = (w1_q.astype(jnp.float32) * s)[:IN_DIM, :HID_DIM]
    return kernel_params, w1_deq


def reference_forward(x, params):
    """Pure-JAX reference matching PyTorch MLPCls.forward in training mode
    (including the fc1 bias, which BN cancels)."""
    w1, b1, gamma, beta, w2, b2 = params
    h = x @ w1 + b1
    mean = jnp.mean(h, axis=0, keepdims=True)
    var = jnp.mean((h - mean) ** 2, axis=0, keepdims=True)
    h = (h - mean) / jnp.sqrt(var + BN_EPS) * gamma + beta
    h = jnp.maximum(h, 0.0)
    return h @ w2 + b2


if __name__ == "__main__":
    key = jax.random.PRNGKey(0)
    kx, kp = jax.random.split(key)

    # The kernel is W1-HBM-stream bound, so a real batch amortizes the stream.
    # BatchNorm1d training mode needs B > 1; B is NOT zero-padded (BN stats
    # divide by the true batch size).
    B = 128
    x = jax.random.normal(kx, (B, IN_DIM), jnp.float32)
    params = init_params(kp)
    kernel_params, w1_deq = prepare_kernel_params(params)

    out = jax.block_until_ready(mlp_cls_forward(x, kernel_params))

    # Reference in f32 on the same int8-quantized W1 / bf16 W2 / bf16 input the
    # kernel consumes.  b1 is kept here — the assert also verifies that
    # training-mode BN cancels it.
    _w1, b1, gamma, beta, w2, b2 = params
    q = lambda a: a.astype(jnp.bfloat16).astype(jnp.float32)
    ref = reference_forward(q(x), (w1_deq, b1, gamma, beta, q(w2), b2))

    assert out.shape == (B, OUT_DIM)
    err = float(jnp.max(jnp.abs(out - ref)))
    assert jnp.allclose(out, ref, atol=3e-2, rtol=3e-2), (
        f"mismatch vs reference, max abs err {err}")

    print("KERNEL_OK")
</pallas_src>

<mosaic_0001>
module attributes {stable_mosaic.version = 11 : i64} {
  func.func @mlp_cls_kernel(%arg0: i32, %arg1: i32, %arg2: memref<128x896xbf16, #tpu.memory_space<vmem>>, %arg3: memref<896x512xi8, #tpu.memory_space<vmem>>, %arg4: memref<1x512xf32, #tpu.memory_space<vmem>>, %arg5: memref<1x512xf32, #tpu.memory_space<vmem>>, %arg6: memref<1x512xf32, #tpu.memory_space<vmem>>, %arg7: memref<512x128xbf16, #tpu.memory_space<vmem>>, %arg8: memref<1x128x128xf32, #tpu.memory_space<vmem>>) attributes {dimension_semantics = [#tpu.dimension_semantics<parallel>, #tpu.dimension_semantics<arbitrary>], iteration_bounds = array<i64: 2, 1>, scalar_prefetch = 0 : i64, scratch_operands = 0 : i64, tpu.core_type = #tpu.core_type<tc>, window_params = [{pipeline_mode = #tpu.pipeline_mode<synchronous>, transform_indices = @transform_0, window_bounds = array<i64: 128, 896>}, {transform_indices = @transform_1, window_bounds = array<i64: 896, 512>}, {transform_indices = @transform_2, window_bounds = array<i64: 1, 512>}, {transform_indices = @transform_3, window_bounds = array<i64: 1, 512>}, {transform_indices = @transform_4, window_bounds = array<i64: 1, 512>}, {transform_indices = @transform_5, window_bounds = array<i64: 512, 128>}, {transform_indices = @transform_6, window_bounds = array<i64: 1, 128, 128>}]} {
    %c0 = arith.constant 0 : index
    %c0_0 = arith.constant 0 : index
    %0 = vector.load %arg3[%c0, %c0_0] : memref<896x512xi8, #tpu.memory_space<vmem>>, vector<896x512xi8>
    %1 = arith.sitofp %0 : vector<896x512xi8> to vector<896x512xbf16>
    %c0_1 = arith.constant 0 : index
    %c0_2 = arith.constant 0 : index
    %2 = vector.load %arg2[%c0_1, %c0_2] : memref<128x896xbf16, #tpu.memory_space<vmem>>, vector<128x896xbf16>
    %cst = arith.constant dense<0.000000e+00> : vector<128x512xf32>
    %3 = tpu.matmul %2, %1, %cst {dimension_numbers = #tpu.dot_dimension_numbers<[1], [0], [0], [1], [0, 0, 1, 1], [], []>} : vector<128x896xbf16>, vector<896x512xbf16>, vector<128x512xf32> -> vector<128x512xf32>
    %cst_3 = arith.constant dense<0.000000e+00> : vector<512xf32>
    %4 = vector.multi_reduction <add>, %3, %cst_3 [0] : vector<128x512xf32> to vector<512xf32>
    %5 = vector.shape_cast %4 : vector<512xf32> to vector<1x512xf32>
    %cst_4 = arith.constant 7.812500e-03 : f32
    %6 = vector.broadcast %cst_4 : f32 to vector<1x512xf32>
    %7 = arith.mulf %5, %6 : vector<1x512xf32>
    %8 = arith.mulf %3, %3 : vector<128x512xf32>
    %cst_5 = arith.constant dense<0.000000e+00> : vector<512xf32>
    %9 = vector.multi_reduction <add>, %8, %cst_5 [0] : vector<128x512xf32> to vector<512xf32>
    %10 = vector.shape_cast %9 : vector<512xf32> to vector<1x512xf32>
    %cst_6 = arith.constant 7.812500e-03 : f32
    %11 = vector.broadcast %cst_6 : f32 to vector<1x512xf32>
    %12 = arith.mulf %10, %11 : vector<1x512xf32>
    %13 = arith.mulf %7, %7 : vector<1x512xf32>
    %14 = arith.subf %12, %13 : vector<1x512xf32>
    %c0_7 = arith.constant 0 : index
    %c0_8 = arith.constant 0 : index
    %15 = vector.load %arg4[%c0_7, %c0_8] : memref<1x512xf32, #tpu.memory_space<vmem>>, vector<1x512xf32>
    %c0_9 = arith.constant 0 : index
    %c0_10 = arith.constant 0 : index
    %16 = vector.load %arg5[%c0_9, %c0_10] : memref<1x512xf32, #tpu.memory_space<vmem>>, vector<1x512xf32>
    %17 = arith.mulf %16, %14 : vector<1x512xf32>
    %cst_11 = arith.constant 9.99999974E-6 : f32
    %18 = vector.broadcast %cst_11 : f32 to vector<1x512xf32>
    %19 = arith.addf %17, %18 : vector<1x512xf32>
    %20 = math.rsqrt %19 : vector<1x512xf32>
    %21 = arith.mulf %15, %20 : vector<1x512xf32>
    %c0_12 = arith.constant 0 : index
    %c0_13 = arith.constant 0 : index
    %22 = vector.load %arg6[%c0_12, %c0_13] : memref<1x512xf32, #tpu.memory_space<vmem>>, vector<1x512xf32>
    %23 = arith.mulf %7, %21 : vector<1x512xf32>
    %24 = arith.subf %22, %23 : vector<1x512xf32>
    %25 = vector.broadcast %21 : vector<1x512xf32> to vector<128x512xf32>
    %26 = arith.mulf %3, %25 : vector<128x512xf32>
    %27 = vector.broadcast %24 : vector<1x512xf32> to vector<128x512xf32>
    %28 = arith.addf %26, %27 : vector<128x512xf32>
    %cst_14 = arith.constant 0.000000e+00 : f32
    %29 = vector.broadcast %cst_14 : f32 to vector<128x512xf32>
    %30 = arith.maximumf %28, %29 : vector<128x512xf32>
    %31 = arith.truncf %30 : vector<128x512xf32> to vector<128x512xbf16>
    %c0_15 = arith.constant 0 : index
    %c0_16 = arith.constant 0 : index
    %32 = vector.load %arg7[%c0_15, %c0_16] : memref<512x128xbf16, #tpu.memory_space<vmem>>, vector<512x128xbf16>
    %cst_17 = arith.constant dense<0.000000e+00> : vector<128x128xf32>
    %33 = tpu.matmul %31, %32, %cst_17 {dimension_numbers = #tpu.dot_dimension_numbers<[1], [0], [0], [1], [0, 0, 1, 1], [], []>} : vector<128x512xbf16>, vector<512x128xbf16>, vector<128x128xf32> -> vector<128x128xf32>
    %c0_i32 = arith.constant 0 : i32
    %34 = arith.cmpi eq, %arg1, %c0_i32 : i32
    %35 = arith.extui %34 : i1 to i32
    %c0_i32_18 = arith.constant 0 : i32
    %36 = arith.cmpi ne, %35, %c0_i32_18 : i32
    scf.if %36 {
      %c0_21 = arith.constant 0 : index
      %c0_22 = arith.constant 0 : index
      %c0_23 = arith.constant 0 : index
      %40 = vector.load %arg8[%c0_21, %c0_22, %c0_23] : memref<1x128x128xf32, #tpu.memory_space<vmem>>, vector<1x128x128xf32>
      %41 = vector.shape_cast %40 : vector<1x128x128xf32> to vector<128x128xf32>
      %42 = vector.shape_cast %33 : vector<128x128xf32> to vector<1x128x128xf32>
      tpu.vector_store %arg8[%c0_21, %c0_22, %c0_23], %42 {strides = array<i32>} : memref<1x128x128xf32, #tpu.memory_space<vmem>>, vector<1x128x128xf32>,
    } else {
    }
    %c0_i32_19 = arith.constant 0 : i32
    %37 = arith.cmpi sgt, %arg1, %c0_i32_19 : i32
    %38 = arith.extui %37 : i1 to i32
    %c0_i32_20 = arith.constant 0 : i32
    %39 = arith.cmpi ne, %38, %c0_i32_20 : i32
    scf.if %39 {
      %c0_21 = arith.constant 0 : index
      %c0_22 = arith.constant 0 : index
      %c0_23 = arith.constant 0 : index
      %40 = vector.load %arg8[%c0_21, %c0_22, %c0_23] : memref<1x128x128xf32, #tpu.memory_space<vmem>>, vector<1x128x128xf32>
      %41 = vector.shape_cast %40 : vector<1x128x128xf32> to vector<128x128xf32>
      %42 = arith.addf %41, %33 : vector<128x128xf32>
      %c0_24 = arith.constant 0 : index
      %c0_25 = arith.constant 0 : index
      %c0_26 = arith.constant 0 : index
      %43 = vector.load %arg8[%c0_24, %c0_25, %c0_26] : memref<1x128x128xf32, #tpu.memory_space<vmem>>, vector<1x128x128xf32>
      %44 = vector.shape_cast %43 : vector<1x128x128xf32> to vector<128x128xf32>
      %45 = vector.shape_cast %42 : vector<128x128xf32> to vector<1x128x128xf32>
      tpu.vector_store %arg8[%c0_24, %c0_25, %c0_26], %45 {strides = array<i32>} : memref<1x128x128xf32, #tpu.memory_space<vmem>>, vector<1x128x128xf32>,
    } else {
    }
    return
  }
  func.func @transform_0(%arg0: i32, %arg1: i32) -> (i32, i32) {
    %c0_i32 = arith.constant 0 : i32
    %c0_i32_0 = arith.constant 0 : i32
    %c0_i32_1 = arith.constant 0 : i32
    return %c0_i32, %c0_i32_0 : i32, i32
  }
  func.func @transform_1(%arg0: i32, %arg1: i32) -> (i32, i32) {
    %c1_i32 = arith.constant 1 : i32
    %0 = arith.muli %arg0, %c1_i32 : i32
    %1 = arith.addi %0, %arg1 : i32
    %c0_i32 = arith.constant 0 : i32
    %c0_i32_0 = arith.constant 0 : i32
    return %c0_i32, %1 : i32, i32
  }
  func.func @transform_2(%arg0: i32, %arg1: i32) -> (i32, i32) {
    %c1_i32 = arith.constant 1 : i32
    %0 = arith.muli %arg0, %c1_i32 : i32
    %1 = arith.addi %0, %arg1 : i32
    %c0_i32 = arith.constant 0 : i32
    %c0_i32_0 = arith.constant 0 : i32
    return %c0_i32, %1 : i32, i32
  }
  func.func @transform_3(%arg0: i32, %arg1: i32) -> (i32, i32) {
    %c1_i32 = arith.constant 1 : i32
    %0 = arith.muli %arg0, %c1_i32 : i32
    %1 = arith.addi %0, %arg1 : i32
    %c0_i32 = arith.constant 0 : i32
    %c0_i32_0 = arith.constant 0 : i32
    return %c0_i32, %1 : i32, i32
  }
  func.func @transform_4(%arg0: i32, %arg1: i32) -> (i32, i32) {
    %c1_i32 = arith.constant 1 : i32
    %0 = arith.muli %arg0, %c1_i32 : i32
    %1 = arith.addi %0, %arg1 : i32
    %c0_i32 = arith.constant 0 : i32
    %c0_i32_0 = arith.constant 0 : i32
    return %c0_i32, %1 : i32, i32
  }
  func.func @transform_5(%arg0: i32, %arg1: i32) -> (i32, i32) {
    %c1_i32 = arith.constant 1 : i32
    %0 = arith.muli %arg0, %c1_i32 : i32
    %1 = arith.addi %0, %arg1 : i32
    %c0_i32 = arith.constant 0 : i32
    %c0_i32_0 = arith.constant 0 : i32
    return %1, %c0_i32 : i32, i32
  }
  func.func @transform_6(%arg0: i32, %arg1: i32) -> (i32, i32, i32) {
    %c0_i32 = arith.constant 0 : i32
    %c0_i32_0 = arith.constant 0 : i32
    %c0_i32_1 = arith.constant 0 : i32
    return %arg0, %c0_i32, %c0_i32_0 : i32, i32, i32
  }
}

</mosaic_0001>

<llo_original>
// kernel: tpu_custom_call.1
$region0: #{tpu_custom_call.1}
  #allocation0 [shape = 'u32[]', space=smem, size = 0x4, offset = 0x4, fixed_abs, tag = 'smem constant byte address 0x4 - core index']
  #allocation1 [shape = 'u32[144,128]{1,0:T(1,128)}', space=vmem, size = 0x12000, scoped, tag = 'internal scratch']
  %s0 = inlined_call_operand.hbm [shape: bf16[128,896], index: 0, kind: input, shape index: {}]
  %s1 = inlined_call_operand.hbm [shape: s8[896,1024], index: 1, kind: input, shape index: {}]
  %s2 = inlined_call_operand.hbm [shape: f32[1,1024], index: 2, kind: input, shape index: {}]
  %s3 = inlined_call_operand.vmem [shape: f32[1,1024], index: 3, kind: input, shape index: {}]
  %s4 = inlined_call_operand.hbm [shape: f32[1,1024], index: 4, kind: input, shape index: {}]
  %s5 = inlined_call_operand.hbm [shape: bf16[1024,128], index: 5, kind: input, shape index: {}]
  %s6 = inlined_call_operand.hbm [shape: f32[2,128,128], index: 6, kind: output, shape index: {}]
  %s7 = sld [smem:[#allocation0]]
  $region85: #{tpu_custom_call.1} parent=0
    _
  %s9 = ssub.s32 1, %s7
  %s10 = scalar_select 0, %s9, %s7
  $region1: #{tpu_custom_call.1} parent=0
    #allocation2 [shape = 'u8[229376]{0}', space=vmem, size = 0x38000, scoped, tag = 'input window, operand 0, single buffered']
    #allocation3 [shape = 's32[2]{0}', space=sflag, size = 0x8, scoped, tag = 'scoped memory for tpu_custom_call.1']
    #allocation4 [shape = 's32[2]{0}', space=sflag, size = 0x8, scoped, tag = 'scoped memory for tpu_custom_call.1']
    #allocation5 [shape = 'u8[917504]{0}', space=vmem, size = 0xe0000, scoped, tag = 'input window, operand 1']
    #allocation6 [shape = 's32[2]{0}', space=sflag, size = 0x8, scoped, tag = 'scoped memory for tpu_custom_call.1']
    #allocation7 [shape = 'u8[4096]{0}', space=vmem, size = 0x1000, scoped, tag = 'input window, operand 2']
    #allocation8 [shape = 'u8[4096]{0}', space=vmem, size = 0x1000, scoped, tag = 'input window, operand 4']
    #allocation9 [shape = 's32[2]{0}', space=sflag, size = 0x8, scoped, tag = 'scoped memory for tpu_custom_call.1']
    #allocation10 [shape = 'u8[262144]{0}', space=vmem, size = 0x40000, scoped, tag = 'input window, operand 5']
    #allocation11 [shape = 'u8[131072]{0}', space=vmem, size = 0x20000, scoped, tag = 'output window, operand 0']
    %11 = vsyncpa [#allocation3], 0
    %12 = vsyncpa [#allocation6], 0
    %s13 = scalar_lea.sflag [#allocation6], 1
    %14 = vsyncpa %s13, 0
    %15 = vsyncpa [#allocation9], 0
    %s16 = scalar_lea.sflag [#allocation9], 1
    %17 = vsyncpa %s16, 0
    %18 = vsyncpa [#allocation4], 0
    %s19 = scalar_lea.sflag [#allocation4], 1
    %20 = vsyncpa %s19, 0
    loop: start=0, step=1, limit=4
    $region2: #{tpu_custom_call.1} parent=1 // loop_pre_header
      _
    $region3: #{tpu_custom_call.1} parent=1 // loop_header
      %s22 = sphi 0, %s26
      %p23 = scmp.ge.s32.totalorder %s22, 4
      %s29 = sphi 0, %s41
      %s30 = sphi 0, %s37
      %s31 = sphi 0, %s29
      %s32 = sphi 0, %s30
      %s33 = sphi 0, %s31
      %s34 = sphi 0, %s32
      %s42 = sphi 0, %s42
      %s44 = sphi 0, %s42
      %s45 = sphi 0, %s44
      %s59 = sphi 0, %s45
      %s67 = sphi 0, %s69
      %s70 = sphi 0, %s67
      %s71 = sphi 0, %s70
      %s87 = sphi 0, %s71
      %s95 = sphi 0, %s97
      %s98 = sphi 0, %s95
      %s99 = sphi 0, %s98
      %s115 = sphi 0, %s99
      %s123 = sphi 0, %s125
      %s126 = sphi 0, %s123
      %s127 = sphi 0, %s126
      %s143 = sphi 0, %s127
      %s151 = sphi 0, %s153
      %s154 = sphi 0, %s151
      %s155 = sphi 0, %s154
      %s171 = sphi 0, %s155
      %s179 = sphi 0, %s181
      %s182 = sphi 0, %s179
      %s183 = sphi 0, %s182
      %s199 = sphi 0, %s183
      %s205 = sphi 0, %s207
      %s208 = sphi 0, %s205
      %s209 = sphi 0, %s208
      %s225 = sphi 0, %s209
    $region4: #{tpu_custom_call.1} parent=1 // loop_header_branch
      %25 = sbr.rel (%p23) target = $region8
    $region5: #{tpu_custom_call.1} parent=1 // loop_body
      %s27 = ssub.s32 %s22, 1
      %s28 = ssub.s32 %s22, 2
      %s35 = sadd.s32 1, %s30
      %p36 = scmp.ge.s32.totalorder %s35, 1
      %s37 = scalar_select %p36, 0, %s35
      %s38 = sadd.s32 1, %s29
      %s39 = scalar_select %p36, %s38, %s29
      %p40 = scmp.ge.s32.totalorder %s39, 2
      %s41 = scalar_select %p40, 0, %s39
      %s43 = sadd.s32 %s42, 1
      %p46 = scmp.eq.s32.totalorder %s22, 1
      %p47 = scmp.ne.s32.totalorder %s42, %s44
      %p48 = scmp.eq.s32.totalorder %s22, 0
      %p49 = por %p47, %p48
      %p50 = scmp.ne.s32.totalorder %s42, %s44
      %p51 = scmp.eq.s32.totalorder %s27, 1
      %p52 = por %p50, %p51
      %p53 = scmp.ne.s32.totalorder %s44, %s45
      %p54 = scmp.eq.s32.totalorder %s27, 0
      %p55 = por %p53, %p54
      %p56 = scmp.ne.s32.totalorder %s44, %s45
      %p57 = scmp.eq.s32.totalorder %s28, 1
      %p58 = por %p56, %p57
      %p60 = scmp.ne.s32.totalorder %s45, %s59
      %p61 = scmp.eq.s32.totalorder %s28, 0
      %p62 = por %p60, %p61
      %s63 = sadd.s32 %s29, %s30
      %s64 = sadd.s32 %s41, %s37
      %s65 = ssub.s32 %s63, %s64
      %p66 = scmp.eq.s32.totalorder %s65, 0
      %s68 = sadd.s32 %s67, 1
      %s69 = scalar_select %p66, %s67, %s68
      %p72 = pneg %p66
      %p73 = scmp.eq.s32.totalorder %s22, 1
      %p74 = por %p72, %p73
      %p75 = scmp.ne.s32.totalorder %s67, %s70
      %p76 = scmp.eq.s32.totalorder %s22, 0
      %p77 = por %p75, %p76
      %p78 = scmp.ne.s32.totalorder %s67, %s70
      %p79 = scmp.eq.s32.totalorder %s27, 1
      %p80 = por %p78, %p79
      %p81 = scmp.ne.s32.totalorder %s70, %s71
      %p82 = scmp.eq.s32.totalorder %s27, 0
      %p83 = por %p81, %p82
      %p84 = scmp.ne.s32.totalorder %s70, %s71
      %p85 = scmp.eq.s32.totalorder %s28, 1
      %p86 = por %p84, %p85
      %p88 = scmp.ne.s32.totalorder %s71, %s87
      %p89 = scmp.eq.s32.totalorder %s28, 0
      %p90 = por %p88, %p89
      %s91 = sadd.s32 %s29, %s30
      %s92 = sadd.s32 %s41, %s37
      %s93 = ssub.s32 %s91, %s92
      %p94 = scmp.eq.s32.totalorder %s93, 0
      %s96 = sadd.s32 %s95, 1
      %s97 = scalar_select %p94, %s95, %s96
      %p100 = pneg %p94
      %p101 = scmp.eq.s32.totalorder %s22, 1
      %p102 = por %p100, %p101
      %p103 = scmp.ne.s32.totalorder %s95, %s98
      %p104 = scmp.eq.s32.totalorder %s22, 0
      %p105 = por %p103, %p104
      %p106 = scmp.ne.s32.totalorder %s95, %s98
      %p107 = scmp.eq.s32.totalorder %s27, 1
      %p108 = por %p106, %p107
      %p109 = scmp.ne.s32.totalorder %s98, %s99
      %p110 = scmp.eq.s32.totalorder %s27, 0
      %p111 = por %p109, %p110
      %p112 = scmp.ne.s32.totalorder %s98, %s99
      %p113 = scmp.eq.s32.totalorder %s28, 1
      %p114 = por %p112, %p113
      %p116 = scmp.ne.s32.totalorder %s99, %s115
      %p117 = scmp.eq.s32.totalorder %s28, 0
      %p118 = por %p116, %p117
      %s119 = sadd.s32 %s29, %s30
      %s120 = sadd.s32 %s41, %s37
      %s121 = ssub.s32 %s119, %s120
      %p122 = scmp.eq.s32.totalorder %s121, 0
      %s124 = sadd.s32 %s123, 1
      %s125 = scalar_select %p122, %s123, %s124
      %p128 = pneg %p122
      %p129 = scmp.eq.s32.totalorder %s22, 1
      %p130 = por %p128, %p129
      %p131 = scmp.ne.s32.totalorder %s123, %s126
      %p132 = scmp.eq.s32.totalorder %s22, 0
      %p133 = por %p131, %p132
      %p134 = scmp.ne.s32.totalorder %s123, %s126
      %p135 = scmp.eq.s32.totalorder %s27, 1
      %p136 = por %p134, %p135
      %p137 = scmp.ne.s32.totalorder %s126, %s127
      %p138 = scmp.eq.s32.totalorder %s27, 0
      %p139 = por %p137, %p138
      %p140 = scmp.ne.s32.totalorder %s126, %s127
      %p141 = scmp.eq.s32.totalorder %s28, 1
      %p142 = por %p140, %p141
      %p144 = scmp.ne.s32.totalorder %s127, %s143
      %p145 = scmp.eq.s32.totalorder %s28, 0
      %p146 = por %p144, %p145
      %s147 = sadd.s32 %s29, %s30
      %s148 = sadd.s32 %s41, %s37
      %s149 = ssub.s32 %s147, %s148
      %p150 = scmp.eq.s32.totalorder %s149, 0
      %s152 = sadd.s32 %s151, 1
      %s153 = scalar_select %p150, %s151, %s152
      %p156 = pneg %p150
      %p157 = scmp.eq.s32.totalorder %s22, 1
      %p158 = por %p156, %p157
      %p159 = scmp.ne.s32.totalorder %s151, %s154
      %p160 = scmp.eq.s32.totalorder %s22, 0
      %p161 = por %p159, %p160
      %p162 = scmp.ne.s32.totalorder %s151, %s154
      %p163 = scmp.eq.s32.totalorder %s27, 1
      %p164 = por %p162, %p163
      %p165 = scmp.ne.s32.totalorder %s154, %s155
      %p166 = scmp.eq.s32.totalorder %s27, 0
      %p167 = por %p165, %p166
      %p168 = scmp.ne.s32.totalorder %s154, %s155
      %p169 = scmp.eq.s32.totalorder %s28, 1
      %p170 = por %p168, %p169
      %p172 = scmp.ne.s32.totalorder %s155, %s171
      %p173 = scmp.eq.s32.totalorder %s28, 0
      %p174 = por %p172, %p173
      %s175 = sadd.s32 %s29, %s30
      %s176 = sadd.s32 %s41, %s37
      %s177 = ssub.s32 %s175, %s176
      %p178 = scmp.eq.s32.totalorder %s177, 0
      %s180 = sadd.s32 %s179, 1
      %s181 = scalar_select %p178, %s179, %s180
      %p184 = pneg %p178
      %p185 = scmp.eq.s32.totalorder %s22, 1
      %p186 = por %p184, %p185
      %p187 = scmp.ne.s32.totalorder %s179, %s182
      %p188 = scmp.eq.s32.totalorder %s22, 0
      %p189 = por %p187, %p188
      %p190 = scmp.ne.s32.totalorder %s179, %s182
      %p191 = scmp.eq.s32.totalorder %s27, 1
      %p192 = por %p190, %p191
      %p193 = scmp.ne.s32.totalorder %s182, %s183
      %p194 = scmp.eq.s32.totalorder %s27, 0
      %p195 = por %p193, %p194
      %p196 = scmp.ne.s32.totalorder %s182, %s183
      %p197 = scmp.eq.s32.totalorder %s28, 1
      %p198 = por %p196, %p197
      %p200 = scmp.ne.s32.totalorder %s183, %s199
      %p201 = scmp.eq.s32.totalorder %s28, 0
      %p202 = por %p200, %p201
      %s203 = ssub.s32 %s29, %s41
      %p204 = scmp.eq.s32.totalorder %s203, 0
      %s206 = sadd.s32 %s205, 1
      %s207 = scalar_select %p204, %s205, %s206
      %p210 = pneg %p204
      %p211 = scmp.eq.s32.totalorder %s22, 1
      %p212 = por %p210, %p211
      %p213 = scmp.ne.s32.totalorder %s205, %s208
      %p214 = scmp.eq.s32.totalorder %s22, 0
      %p215 = por %p213, %p214
      %p216 = scmp.ne.s32.totalorder %s205, %s208
      %p217 = scmp.eq.s32.totalorder %s27, 1
      %p218 = por %p216, %p217
      %p219 = scmp.ne.s32.totalorder %s208, %s209
      %p220 = scmp.eq.s32.totalorder %s27, 0
      %p221 = por %p219, %p220
      %p222 = scmp.ne.s32.totalorder %s208, %s209
      %p223 = scmp.eq.s32.totalorder %s28, 1
      %p224 = por %p222, %p223
      %p226 = scmp.ne.s32.totalorder %s209, %s225
      %p227 = scmp.eq.s32.totalorder %s28, 0
      %p228 = por %p226, %p227
      %p229 = scmp.le.s32.totalorder 1, %s22
      %p230 = scmp.lt.s32.totalorder %s22, 3
      %p231 = pnand %p229, %p230
      %p232 = pneg %p231
      // Predicated region
      $region9: #{tpu_custom_call.1} parent=5 // pred_check
        _
      $region10: #{tpu_custom_call.1} parent=5 // pred_check_branch
        %234 = sbr.rel (%p231) target = $region12
      $region11: #{tpu_custom_call.1} parent=5 // pred_region
        %s235 = ssub.s32 %s22, 1
        // Predicated region
        $region13: #{tpu_custom_call.1} parent=11 // pred_check
          %p236 = pneg %p55
        $region14: #{tpu_custom_call.1} parent=11 // pred_check_branch
          %238 = sbr.rel (%p236) target = $region16
        $region15: #{tpu_custom_call.1} parent=11 // pred_region
          %s240 = ssub.s32 7168, 7168
          %241 = vsyncadd [#allocation3], %s240
          %s242 = sshll.u32 [#allocation2], 4
          %s243 = int_to_ptr.vmem [resolvable:$true] %s242
          %248 = dma.hbm_to_vmem [thread:$0]  %s0, 7168, %s243, [#allocation3], 448, 448, 28
        $region16: #{tpu_custom_call.1} parent=11 // pred_fallthru
          _
      $region12: #{tpu_custom_call.1} parent=5 // pred_fallthru
        _
      %p249 = scmp.lt.s32.totalorder %s22, 2
      // Predicated region
      $region17: #{tpu_custom_call.1} parent=5 // pred_check
        %p250 = pneg %p249
      $region18: #{tpu_custom_call.1} parent=5 // pred_check_branch
        %252 = sbr.rel (%p250) target = $region20
      $region19: #{tpu_custom_call.1} parent=5 // pred_region
        // Predicated region
        $region21: #{tpu_custom_call.1} parent=19 // pred_check
          %p253 = pneg %p77
        $region22: #{tpu_custom_call.1} parent=19 // pred_check_branch
          %255 = sbr.rel (%p253) target = $region24
        $region23: #{tpu_custom_call.1} parent=19 // pred_region
          %s256 = sand.u32 %s22, 1
          %s257 = scalar_lea.sflag [#allocation6], %s256
          %s258 = sand.u32 %s67, 1
          %s259 = smul.addr %s258, 896
          %s260 = scalar_lea.vmem [#allocation5], %s259
          %s261 = sadd.s32 %s29, %s30
          %s262 = smul.u32 4, %s261
          %s264 = ssub.s32 14336, 14336
          %265 = vsyncadd %s257, %s264
          %s266 = smul.addr %s262, 128
          %s267 = scalar_lea.hbm %s1, %s266
          %s268 = sshll.u32 %s260, 4
          %s269 = int_to_ptr.vmem [resolvable:$true] %s268
          %274 = dma.hbm_to_vmem [thread:$0]  %s267, 14336, %s269, %s257, 1024, 512, 32
        $region24: #{tpu_custom_call.1} parent=19 // pred_fallthru
          _
        // Predicated region
        $region25: #{tpu_custom_call.1} parent=19 // pred_check
          %p275 = pneg %p105
        $region26: #{tpu_custom_call.1} parent=19 // pred_check_branch
          %277 = sbr.rel (%p275) target = $region28
        $region27: #{tpu_custom_call.1} parent=19 // pred_region
          %s278 = sand.u32 %s22, 1
          %s279 = scalar_lea.sflag [#allocation6], %s278
          %s280 = sand.u32 %s95, 1
          %s281 = smul.addr %s280, 4
          %s282 = scalar_lea.vmem [#allocation7], %s281
          %s283 = sadd.s32 %s29, %s30
          %s284 = smul.u32 4, %s283
          %s286 = ssub.s32 64, 64
          %287 = vsyncadd %s279, %s286
          %s288 = smul.addr %s284, 16
          %s289 = scalar_lea.hbm %s2, %s288
          %s291 = sshll.u32 %s282, 4
          %s292 = int_to_ptr.vmem [resolvable:$true] %s291
          %294 = dma.hbm_to_vmem [thread:$0]  %s289, 64, %s292, %s279
        $region28: #{tpu_custom_call.1} parent=19 // pred_fallthru
          _
        // Predicated region
        $region29: #{tpu_custom_call.1} parent=19 // pred_check
          %p295 = pneg %p133
        $region30: #{tpu_custom_call.1} parent=19 // pred_check_branch
          %297 = sbr.rel (%p295) target = $region32
        $region31: #{tpu_custom_call.1} parent=19 // pred_region
          %s298 = sadd.s32 %s29, %s30
          %s299 = smul.u32 4, %s298
          %p300 = scmp.lt.s32.totalorder %s299, 7
          %s301 = scalar_select %p300, %s299, 7
          %s302 = scalar_lea.vmem %s3, %s301
          %s303 = sadd.s32 %s29, %s30
          %s304 = smul.u32 4, %s303
        $region32: #{tpu_custom_call.1} parent=19 // pred_fallthru
          _
        // Predicated region
        $region33: #{tpu_custom_call.1} parent=19 // pred_check
          %p305 = pneg %p161
        $region34: #{tpu_custom_call.1} parent=19 // pred_check_branch
          %307 = sbr.rel (%p305) target = $region36
        $region35: #{tpu_custom_call.1} parent=19 // pred_region
          %s308 = sand.u32 %s22, 1
          %s309 = scalar_lea.sflag [#allocation9], %s308
          %s310 = sand.u32 %s151, 1
          %s311 = smul.addr %s310, 4
          %s312 = scalar_lea.vmem [#allocation8], %s311
          %s313 = sadd.s32 %s29, %s30
          %s314 = smul.u32 4, %s313
          %s316 = ssub.s32 64, 64
          %317 = vsyncadd %s309, %s316
          %s318 = smul.addr %s314, 16
          %s319 = scalar_lea.hbm %s4, %s318
          %s321 = sshll.u32 %s312, 4
          %s322 = int_to_ptr.vmem [resolvable:$true] %s321
          %324 = dma.hbm_to_vmem [thread:$0]  %s319, 64, %s322, %s309
        $region36: #{tpu_custom_call.1} parent=19 // pred_fallthru
          _
        // Predicated region
        $region37: #{tpu_custom_call.1} parent=19 // pred_check
          %p325 = pneg %p189
        $region38: #{tpu_custom_call.1} parent=19 // pred_check_branch
          %327 = sbr.rel (%p325) target = $region40
        $region39: #{tpu_custom_call.1} parent=19 // pred_region
          %s328 = sand.u32 %s22, 1
          %s329 = scalar_lea.sflag [#allocation9], %s328
          %s330 = sand.u32 %s179, 1
          %s331 = smul.addr %s330, 256
          %s332 = scalar_lea.vmem [#allocation10], %s331
          %s333 = sadd.s32 %s29, %s30
          %s334 = smul.u32 64, %s333
          %s336 = ssub.s32 4096, 4096
          %337 = vsyncadd %s329, %s336
          %s338 = smul.addr %s334, 64
          %s339 = scalar_lea.hbm %s5, %s338
          %s340 = sshll.u32 %s332, 4
          %s341 = int_to_ptr.vmem [resolvable:$true] %s340
          %346 = dma.hbm_to_vmem [thread:$0]  %s339, 4096, %s341, %s329, 64, 64, 4
        $region40: #{tpu_custom_call.1} parent=19 // pred_fallthru
          _
      $region20: #{tpu_custom_call.1} parent=5 // pred_fallthru
        _
      %p347 = scmp.le.s32.totalorder 1, %s22
      %p348 = scmp.lt.s32.totalorder %s22, 3
      %p349 = pnand %p347, %p348
      %p350 = pneg %p349
      // Predicated region
      $region41: #{tpu_custom_call.1} parent=5 // pred_check
        _
      $region42: #{tpu_custom_call.1} parent=5 // pred_check_branch
        %352 = sbr.rel (%p349) target = $region44
      $region43: #{tpu_custom_call.1} parent=5 // pred_region
        %s353 = ssub.s32 %s22, 1
        // Predicated region
        $region45: #{tpu_custom_call.1} parent=43 // pred_check
          %p354 = pneg %p55
        $region46: #{tpu_custom_call.1} parent=43 // pred_check_branch
          %356 = sbr.rel (%p354) target = $region48
        $region47: #{tpu_custom_call.1} parent=43 // pred_region
          %357 = dma.done [#allocation3], 7168
        $region48: #{tpu_custom_call.1} parent=43 // pred_fallthru
          _
        %s358 = sand.u32 %s27, 1
        %s359 = scalar_lea.sflag [#allocation6], %s358
        %s360 = sand.u32 %s70, 1
        %s361 = smul.addr %s360, 896
        %s362 = scalar_lea.vmem [#allocation5], %s361
        // Predicated region
        $region49: #{tpu_custom_call.1} parent=43 // pred_check
          %p363 = pneg %p83
        $region50: #{tpu_custom_call.1} parent=43 // pred_check_branch
          %365 = sbr.rel (%p363) target = $region52
        $region51: #{tpu_custom_call.1} parent=43 // pred_region
          %366 = dma.done %s359, 14336
        $region52: #{tpu_custom_call.1} parent=43 // pred_fallthru
          _
        %s367 = sand.u32 %s27, 1
        %s368 = scalar_lea.sflag [#allocation6], %s367
        %s369 = sand.u32 %s98, 1
        %s370 = smul.addr %s369, 4
        %s371 = scalar_lea.vmem [#allocation7], %s370
        // Predicated region
        $region53: #{tpu_custom_call.1} parent=43 // pred_check
          %p372 = pneg %p111
        $region54: #{tpu_custom_call.1} parent=43 // pred_check_branch
          %374 = sbr.rel (%p372) target = $region56
        $region55: #{tpu_custom_call.1} parent=43 // pred_region
          %375 = dma.done %s368, 64
        $region56: #{tpu_custom_call.1} parent=43 // pred_fallthru
          _
        %s376 = sand.u32 %s27, 1
        %s377 = scalar_lea.sflag [#allocation9], %s376
        %s378 = sand.u32 %s154, 1
        %s379 = smul.addr %s378, 4
        %s380 = scalar_lea.vmem [#allocation8], %s379
        // Predicated region
        $region57: #{tpu_custom_call.1} parent=43 // pred_check
          %p381 = pneg %p167
        $region58: #{tpu_custom_call.1} parent=43 // pred_check_branch
          %383 = sbr.rel (%p381) target = $region60
        $region59: #{tpu_custom_call.1} parent=43 // pred_region
          %384 = dma.done %s377, 64
        $region60: #{tpu_custom_call.1} parent=43 // pred_fallthru
          _
        %s385 = sand.u32 %s27, 1
        %s386 = scalar_lea.sflag [#allocation9], %s385
        %s387 = sand.u32 %s182, 1
        %s388 = smul.addr %s387, 256
        %s389 = scalar_lea.vmem [#allocation10], %s388
        // Predicated region
        $region61: #{tpu_custom_call.1} parent=43 // pred_check
          %p390 = pneg %p195
        $region62: #{tpu_custom_call.1} parent=43 // pred_check_branch
          %392 = sbr.rel (%p390) target = $region64
        $region63: #{tpu_custom_call.1} parent=43 // pred_region
          %393 = dma.done %s386, 4096
        $region64: #{tpu_custom_call.1} parent=43 // pred_fallthru
          _
        %p394 = pneg %p55
        %p395 = pneg %p52
        %s396 = sand.u32 %s27, 1
        %s397 = scalar_lea.sflag [#allocation6], %s396
        %s398 = sand.u32 %s70, 1
        %s399 = smul.addr %s398, 896
        %s400 = scalar_lea.vmem [#allocation5], %s399
        %p401 = pneg %p83
        %p402 = pneg %p80
        %s403 = sand.u32 %s27, 1
        %s404 = scalar_lea.sflag [#allocation6], %s403
        %s405 = sand.u32 %s98, 1
        %s406 = smul.addr %s405, 4
        %s407 = scalar_lea.vmem [#allocation7], %s406
        %p408 = pneg %p111
        %p409 = pneg %p108
        %s410 = sadd.s32 %s31, %s32
        %s411 = smul.u32 4, %s410
        %p412 = scmp.lt.s32.totalorder %s411, 7
        %s413 = scalar_select %p412, %s411, 7
        %s414 = scalar_lea.vmem %s3, %s413
        %p415 = pneg %p139
        %p416 = pneg %p136
        %s417 = sand.u32 %s27, 1
        %s418 = scalar_lea.sflag [#allocation9], %s417
        %s419 = sand.u32 %s154, 1
        %s420 = smul.addr %s419, 4
        %s421 = scalar_lea.vmem [#allocation8], %s420
        %p422 = pneg %p167
        %p423 = pneg %p164
        %s424 = sand.u32 %s27, 1
        %s425 = scalar_lea.sflag [#allocation9], %s424
        %s426 = sand.u32 %s182, 1
        %s427 = smul.addr %s426, 256
        %s428 = scalar_lea.vmem [#allocation10], %s427
        %p429 = pneg %p195
        %p430 = pneg %p192
        %p431 = pneg %p221
        %p432 = pneg %p218
        %s433 = sand.u32 %s208, 1
        %s434 = scalar_lea.sflag [#allocation4], %s433
        %s435 = sand.u32 %s208, 1
        %s436 = smul.addr %s435, 128
        %s437 = scalar_lea.vmem [#allocation11], %s436
        %s438 = sadd.s32 %s31, %s32
        %s439 = smul.u32 4, %s438
        %s440 = sadd.s32 %s31, %s32
        %s441 = smul.u32 4, %s440
        %s442 = sadd.s32 %s31, %s32
        %s443 = smul.u32 4, %s442
        %p444 = scmp.lt.s32.totalorder %s443, 7
        %s445 = scalar_select %p444, %s443, 7
        %s446 = scalar_lea.vmem %s3, %s445
        %s447 = sadd.s32 %s31, %s32
        %s448 = smul.u32 4, %s447
        %s449 = sadd.s32 %s31, %s32
        %s450 = smul.u32 4, %s449
        %s451 = sadd.s32 %s31, %s32
        %s452 = smul.u32 64, %s451
        %v454 = vld [vmem:[%s362] sm:$0xff]
        %v455 = vld [vmem:[%s362 + $0x8] sm:$0xff]
        %v456 = vld [vmem:[%s362 + $0x10] sm:$0xff]
        %v457 = vld [vmem:[%s362 + $0x18] sm:$0xff]
        %v458 = vld [vmem:[%s362 + $0x20] sm:$0xff]
        %v459 = vld [vmem:[%s362 + $0x28] sm:$0xff]
        %v460 = vld [vmem:[%s362 + $0x30] sm:$0xff]
        %v461 = vld [vmem:[%s362 + $0x38] sm:$0xff]
        %v462 = vld [vmem:[%s362 + $0x40] sm:$0xff]
        %v463 = vld [vmem:[%s362 + $0x48] sm:$0xff]
        %v464 = vld [vmem:[%s362 + $0x50] sm:$0xff]
        %v465 = vld [vmem:[%s362 + $0x58] sm:$0xff]
        %v466 = vld [vmem:[%s362 + $0x60] sm:$0xff]
        %v467 = vld [vmem:[%s362 + $0x68] sm:$0xff]
        %v468 = vld [vmem:[%s362 + $0x70] sm:$0xff]
        %v469 = vld [vmem:[%s362 + $0x78] sm:$0xff]
        %v470 = vld [vmem:[%s362 + $0x80] sm:$0xff]
        %v471 = vld [vmem:[%s362 + $0x88] sm:$0xff]
        %v472 = vld [vmem:[%s362 + $0x90] sm:$0xff]
        %v473 = vld [vmem:[%s362 + $0x98] sm:$0xff]
        %v474 = vld [vmem:[%s362 + $0xa0] sm:$0xff]
        %v475 = vld [vmem:[%s362 + $0xa8] sm:$0xff]
        %v476 = vld [vmem:[%s362 + $0xb0] sm:$0xff]
        %v477 = vld [vmem:[%s362 + $0xb8] sm:$0xff]
        %v478 = vld [vmem:[%s362 + $0xc0] sm:$0xff]
        %v479 = vld [vmem:[%s362 + $0xc8] sm:$0xff]
        %v480 = vld [vmem:[%s362 + $0xd0] sm:$0xff]
        %v481 = vld [vmem:[%s362 + $0xd8] sm:$0xff]
        %v482 = vld [vmem:[%s362 + $0xe0] sm:$0xff]
        %v483 = vld [vmem:[%s362 + $0xe8] sm:$0xff]
        %v484 = vld [vmem:[%s362 + $0xf0] sm:$0xff]
        %v485 = vld [vmem:[%s362 + $0xf8] sm:$0xff]
        %v486 = vld [vmem:[%s362 + $0x100] sm:$0xff]
        %v487 = vld [vmem:[%s362 + $0x108] sm:$0xff]
        %v488 = vld [vmem:[%s362 + $0x110] sm:$0xff]
        %v489 = vld [vmem:[%s362 + $0x118] sm:$0xff]
        %v490 = vld [vmem:[%s362 + $0x120] sm:$0xff]
        %v491 = vld [vmem:[%s362 + $0x128] sm:$0xff]
        %v492 = vld [vmem:[%s362 + $0x130] sm:$0xff]
        %v493 = vld [vmem:[%s362 + $0x138] sm:$0xff]
        %v494 = vld [vmem:[%s362 + $0x140] sm:$0xff]
        %v495 = vld [vmem:[%s362 + $0x148] sm:$0xff]
        %v496 = vld [vmem:[%s362 + $0x150] sm:$0xff]
        %v497 = vld [vmem:[%s362 + $0x158] sm:$0xff]
        %v498 = vld [vmem:[%s362 + $0x160] sm:$0xff]
        %v499 = vld [vmem:[%s362 + $0x168] sm:$0xff]
        %v500 = vld [vmem:[%s362 + $0x170] sm:$0xff]
        %v501 = vld [vmem:[%s362 + $0x178] sm:$0xff]
        %v502 = vld [vmem:[%s362 + $0x180] sm:$0xff]
        %v503 = vld [vmem:[%s362 + $0x188] sm:$0xff]
        %v504 = vld [vmem:[%s362 + $0x190] sm:$0xff]
        %v505 = vld [vmem:[%s362 + $0x198] sm:$0xff]
        %v506 = vld [vmem:[%s362 + $0x1a0] sm:$0xff]
        %v507 = vld [vmem:[%s362 + $0x1a8] sm:$0xff]
        %v508 = vld [vmem:[%s362 + $0x1b0] sm:$0xff]
        %v509 = vld [vmem:[%s362 + $0x1b8] sm:$0xff]
        %v510 = vld [vmem:[%s362 + $0x1c0] sm:$0xff]
        %v511 = vld [vmem:[%s362 + $0x1c8] sm:$0xff]
        %v512 = vld [vmem:[%s362 + $0x1d0] sm:$0xff]
        %v513 = vld [vmem:[%s362 + $0x1d8] sm:$0xff]
        %v514 = vld [vmem:[%s362 + $0x1e0] sm:$0xff]
        %v515 = vld [vmem:[%s362 + $0x1e8] sm:$0xff]
        %v516 = vld [vmem:[%s362 + $0x1f0] sm:$0xff]
        %v517 = vld [vmem:[%s362 + $0x1f8] sm:$0xff]
        %v518 = vld [vmem:[%s362 + $0x200] sm:$0xff]
        %v519 = vld [vmem:[%s362 + $0x208] sm:$0xff]
        %v520 = vld [vmem:[%s362 + $0x210] sm:$0xff]
        %v521 = vld [vmem:[%s362 + $0x218] sm:$0xff]
        %v522 = vld [vmem:[%s362 + $0x220] sm:$0xff]
        %v523 = vld [vmem:[%s362 + $0x228] sm:$0xff]
        %v524 = vld [vmem:[%s362 + $0x230] sm:$0xff]
        %v525 = vld [vmem:[%s362 + $0x238] sm:$0xff]
        %v526 = vld [vmem:[%s362 + $0x240] sm:$0xff]
        %v527 = vld [vmem:[%s362 + $0x248] sm:$0xff]
        %v528 = vld [vmem:[%s362 + $0x250] sm:$0xff]
        %v529 = vld [vmem:[%s362 + $0x258] sm:$0xff]
        %v530 = vld [vmem:[%s362 + $0x260] sm:$0xff]
        %v531 = vld [vmem:[%s362 + $0x268] sm:$0xff]
        %v532 = vld [vmem:[%s362 + $0x270] sm:$0xff]
        %v533 = vld [vmem:[%s362 + $0x278] sm:$0xff]
        %v534 = vld [vmem:[%s362 + $0x280] sm:$0xff]
        %v535 = vld [vmem:[%s362 + $0x288] sm:$0xff]
        %v536 = vld [vmem:[%s362 + $0x290] sm:$0xff]
        %v537 = vld [vmem:[%s362 + $0x298] sm:$0xff]
        %v538 = vld [vmem:[%s362 + $0x2a0] sm:$0xff]
        %v539 = vld [vmem:[%s362 + $0x2a8] sm:$0xff]
        %v540 = vld [vmem:[%s362 + $0x2b0] sm:$0xff]
        %v541 = vld [vmem:[%s362 + $0x2b8] sm:$0xff]
        %v542 = vld [vmem:[%s362 + $0x2c0] sm:$0xff]
        %v543 = vld [vmem:[%s362 + $0x2c8] sm:$0xff]
        %v544 = vld [vmem:[%s362 + $0x2d0] sm:$0xff]
        %v545 = vld [vmem:[%s362 + $0x2d8] sm:$0xff]
        %v546 = vld [vmem:[%s362 + $0x2e0] sm:$0xff]
        %v547 = vld [vmem:[%s362 + $0x2e8] sm:$0xff]
        %v548 = vld [vmem:[%s362 + $0x2f0] sm:$0xff]
        %v549 = vld [vmem:[%s362 + $0x2f8] sm:$0xff]
        %v550 = vld [vmem:[%s362 + $0x300] sm:$0xff]
        %v551 = vld [vmem:[%s362 + $0x308] sm:$0xff]
        %v552 = vld [vmem:[%s362 + $0x310] sm:$0xff]
        %v553 = vld [vmem:[%s362 + $0x318] sm:$0xff]
        %v554 = vld [vmem:[%s362 + $0x320] sm:$0xff]
        %v555 = vld [vmem:[%s362 + $0x328] sm:$0xff]
        %v556 = vld [vmem:[%s362 + $0x330] sm:$0xff]
        %v557 = vld [vmem:[%s362 + $0x338] sm:$0xff]
        %v558 = vld [vmem:[%s362 + $0x340] sm:$0xff]
        %v559 = vld [vmem:[%s362 + $0x348] sm:$0xff]
        %v560 = vld [vmem:[%s362 + $0x350] sm:$0xff]
        %v561 = vld [vmem:[%s362 + $0x358] sm:$0xff]
        %v562 = vld [vmem:[%s362 + $0x360] sm:$0xff]
        %v563 = vld [vmem:[%s362 + $0x368] sm:$0xff]
        %v564 = vld [vmem:[%s362 + $0x370] sm:$0xff]
        %v565 = vld [vmem:[%s362 + $0x378] sm:$0xff]
        %v566 = vunpack.c.l.s8.bf16 %v454
        %v567 = vunpack.c.l.s8.bf16 %v455
        %v568 = vunpack.c.l.s8.bf16 %v456
        %v569 = vunpack.c.l.s8.bf16 %v457
        %v570 = vunpack.c.h.s8.bf16 %v454
        %v571 = vunpack.c.h.s8.bf16 %v455
        %v572 = vunpack.c.h.s8.bf16 %v456
        %v573 = vunpack.c.h.s8.bf16 %v457
        %v574 = vunpack.c.l.s8.bf16 %v458
        %v575 = vunpack.c.l.s8.bf16 %v459
        %v576 = vunpack.c.l.s8.bf16 %v460
        %v577 = vunpack.c.l.s8.bf16 %v461
        %v578 = vunpack.c.h.s8.bf16 %v458
        %v579 = vunpack.c.h.s8.bf16 %v459
        %v580 = vunpack.c.h.s8.bf16 %v460
        %v581 = vunpack.c.h.s8.bf16 %v461
        %v582 = vunpack.c.l.s8.bf16 %v462
        %v583 = vunpack.c.l.s8.bf16 %v463
        %v584 = vunpack.c.l.s8.bf16 %v464
        %v585 = vunpack.c.l.s8.bf16 %v465
        %v586 = vunpack.c.h.s8.bf16 %v462
        %v587 = vunpack.c.h.s8.bf16 %v463
        %v588 = vunpack.c.h.s8.bf16 %v464
        %v589 = vunpack.c.h.s8.bf16 %v465
        %v590 = vunpack.c.l.s8.bf16 %v466
        %v591 = vunpack.c.l.s8.bf16 %v467
        %v592 = vunpack.c.l.s8.bf16 %v468
        %v593 = vunpack.c.l.s8.bf16 %v469
        %v594 = vunpack.c.h.s8.bf16 %v466
        %v595 = vunpack.c.h.s8.bf16 %v467
        %v596 = vunpack.c.h.s8.bf16 %v468
        %v597 = vunpack.c.h.s8.bf16 %v469
        %v598 = vunpack.c.l.s8.bf16 %v470
        %v599 = vunpack.c.l.s8.bf16 %v471
        %v600 = vunpack.c.l.s8.bf16 %v472
        %v601 = vunpack.c.l.s8.bf16 %v473
        %v602 = vunpack.c.h.s8.bf16 %v470
        %v603 = vunpack.c.h.s8.bf16 %v471
        %v604 = vunpack.c.h.s8.bf16 %v472
        %v605 = vunpack.c.h.s8.bf16 %v473
        %v606 = vunpack.c.l.s8.bf16 %v474
        %v607 = vunpack.c.l.s8.bf16 %v475
        %v608 = vunpack.c.l.s8.bf16 %v476
        %v609 = vunpack.c.l.s8.bf16 %v477
        %v610 = vunpack.c.h.s8.bf16 %v474
        %v611 = vunpack.c.h.s8.bf16 %v475
        %v612 = vunpack.c.h.s8.bf16 %v476
        %v613 = vunpack.c.h.s8.bf16 %v477
        %v614 = vunpack.c.l.s8.bf16 %v478
        %v615 = vunpack.c.l.s8.bf16 %v479
        %v616 = vunpack.c.l.s8.bf16 %v480
        %v617 = vunpack.c.l.s8.bf16 %v481
        %v618 = vunpack.c.h.s8.bf16 %v478
        %v619 = vunpack.c.h.s8.bf16 %v479
        %v620 = vunpack.c.h.s8.bf16 %v480
        %v621 = vunpack.c.h.s8.bf16 %v481
        %v622 = vunpack.c.l.s8.bf16 %v482
        %v623 = vunpack.c.l.s8.bf16 %v483
        %v624 = vunpack.c.l.s8.bf16 %v484
        %v625 = vunpack.c.l.s8.bf16 %v485
        %v626 = vunpack.c.h.s8.bf16 %v482
        %v627 = vunpack.c.h.s8.bf16 %v483
        %v628 = vunpack.c.h.s8.bf16 %v484
        %v629 = vunpack.c.h.s8.bf16 %v485
        %v630 = vunpack.c.l.s8.bf16 %v486
        %v631 = vunpack.c.l.s8.bf16 %v487
        %v632 = vunpack.c.l.s8.bf16 %v488
        %v633 = vunpack.c.l.s8.bf16 %v489
        %v634 = vunpack.c.h.s8.bf16 %v486
        %v635 = vunpack.c.h.s8.bf16 %v487
        %v636 = vunpack.c.h.s8.bf16 %v488
        %v637 = vunpack.c.h.s8.bf16 %v489
        %v638 = vunpack.c.l.s8.bf16 %v490
        %v639 = vunpack.c.l.s8.bf16 %v491
        %v640 = vunpack.c.l.s8.bf16 %v492
        %v641 = vunpack.c.l.s8.bf16 %v493
        %v642 = vunpack.c.h.s8.bf16 %v490
        %v643 = vunpack.c.h.s8.bf16 %v491
        %v644 = vunpack.c.h.s8.bf16 %v492
        %v645 = vunpack.c.h.s8.bf16 %v493
        %v646 = vunpack.c.l.s8.bf16 %v494
        %v647 = vunpack.c.l.s8.bf16 %v495
        %v648 = vunpack.c.l.s8.bf16 %v496
        %v649 = vunpack.c.l.s8.bf16 %v497
        %v650 = vunpack.c.h.s8.bf16 %v494
        %v651 = vunpack.c.h.s8.bf16 %v495
        %v652 = vunpack.c.h.s8.bf16 %v496
        %v653 = vunpack.c.h.s8.bf16 %v497
        %v654 = vunpack.c.l.s8.bf16 %v498
        %v655 = vunpack.c.l.s8.bf16 %v499
        %v656 = vunpack.c.l.s8.bf16 %v500
        %v657 = vunpack.c.l.s8.bf16 %v501
        %v658 = vunpack.c.h.s8.bf16 %v498
        %v659 = vunpack.c.h.s8.bf16 %v499
        %v660 = vunpack.c.h.s8.bf16 %v500
        %v661 = vunpack.c.h.s8.bf16 %v501
        %v662 = vunpack.c.l.s8.bf16 %v502
        %v663 = vunpack.c.l.s8.bf16 %v503
        %v664 = vunpack.c.l.s8.bf16 %v504
        %v665 = vunpack.c.l.s8.bf16 %v505
        %v666 = vunpack.c.h.s8.bf16 %v502
        %v667 = vunpack.c.h.s8.bf16 %v503
        %v668 = vunpack.c.h.s8.bf16 %v504
        %v669 = vunpack.c.h.s8.bf16 %v505
        %v670 = vunpack.c.l.s8.bf16 %v506
        %v671 = vunpack.c.l.s8.bf16 %v507
        %v672 = vunpack.c.l.s8.bf16 %v508
        %v673 = vunpack.c.l.s8.bf16 %v509
        %v674 = vunpack.c.h.s8.bf16 %v506
        %v675 = vunpack.c.h.s8.bf16 %v507
        %v676 = vunpack.c.h.s8.bf16 %v508
        %v677 = vunpack.c.h.s8.bf16 %v509
        %v678 = vunpack.c.l.s8.bf16 %v510
        %v679 = vunpack.c.l.s8.bf16 %v511
        %v680 = vunpack.c.l.s8.bf16 %v512
        %v681 = vunpack.c.l.s8.bf16 %v513
        %v682 = vunpack.c.h.s8.bf16 %v510
        %v683 = vunpack.c.h.s8.bf16 %v511
        %v684 = vunpack.c.h.s8.bf16 %v512
        %v685 = vunpack.c.h.s8.bf16 %v513
        %v686 = vunpack.c.l.s8.bf16 %v514
        %v687 = vunpack.c.l.s8.bf16 %v515
        %v688 = vunpack.c.l.s8.bf16 %v516
        %v689 = vunpack.c.l.s8.bf16 %v517
        %v690 = vunpack.c.h.s8.bf16 %v514
        %v691 = vunpack.c.h.s8.bf16 %v515
        %v692 = vunpack.c.h.s8.bf16 %v516
        %v693 = vunpack.c.h.s8.bf16 %v517
        %v694 = vunpack.c.l.s8.bf16 %v518
        %v695 = vunpack.c.l.s8.bf16 %v519
        %v696 = vunpack.c.l.s8.bf16 %v520
        %v697 = vunpack.c.l.s8.bf16 %v521
        %v698 = vunpack.c.h.s8.bf16 %v518
        %v699 = vunpack.c.h.s8.bf16 %v519
        %v700 = vunpack.c.h.s8.bf16 %v520
        %v701 = vunpack.c.h.s8.bf16 %v521
        %v702 = vunpack.c.l.s8.bf16 %v522
        %v703 = vunpack.c.l.s8.bf16 %v523
        %v704 = vunpack.c.l.s8.bf16 %v524
        %v705 = vunpack.c.l.s8.bf16 %v525
        %v706 = vunpack.c.h.s8.bf16 %v522
        %v707 = vunpack.c.h.s8.bf16 %v523
        %v708 = vunpack.c.h.s8.bf16 %v524
        %v709 = vunpack.c.h.s8.bf16 %v525
        %v710 = vunpack.c.l.s8.bf16 %v526
        %v711 = vunpack.c.l.s8.bf16 %v527
        %v712 = vunpack.c.l.s8.bf16 %v528
        %v713 = vunpack.c.l.s8.bf16 %v529
        %v714 = vunpack.c.h.s8.bf16 %v526
        %v715 = vunpack.c.h.s8.bf16 %v527
        %v716 = vunpack.c.h.s8.bf16 %v528
        %v717 = vunpack.c.h.s8.bf16 %v529
        %v718 = vunpack.c.l.s8.bf16 %v530
        %v719 = vunpack.c.l.s8.bf16 %v531
        %v720 = vunpack.c.l.s8.bf16 %v532
        %v721 = vunpack.c.l.s8.bf16 %v533
        %v722 = vunpack.c.h.s8.bf16 %v530
        %v723 = vunpack.c.h.s8.bf16 %v531
        %v724 = vunpack.c.h.s8.bf16 %v532
        %v725 = vunpack.c.h.s8.bf16 %v533
        %v726 = vunpack.c.l.s8.bf16 %v534
        %v727 = vunpack.c.l.s8.bf16 %v535
        %v728 = vunpack.c.l.s8.bf16 %v536
        %v729 = vunpack.c.l.s8.bf16 %v537
        %v730 = vunpack.c.h.s8.bf16 %v534
        %v731 = vunpack.c.h.s8.bf16 %v535
        %v732 = vunpack.c.h.s8.bf16 %v536
        %v733 = vunpack.c.h.s8.bf16 %v537
        %v734 = vunpack.c.l.s8.bf16 %v538
        %v735 = vunpack.c.l.s8.bf16 %v539
        %v736 = vunpack.c.l.s8.bf16 %v540
        %v737 = vunpack.c.l.s8.bf16 %v541
        %v738 = vunpack.c.h.s8.bf16 %v538
        %v739 = vunpack.c.h.s8.bf16 %v539
        %v740 = vunpack.c.h.s8.bf16 %v540
        %v741 = vunpack.c.h.s8.bf16 %v541
        %v742 = vunpack.c.l.s8.bf16 %v542
        %v743 = vunpack.c.l.s8.bf16 %v543
        %v744 = vunpack.c.l.s8.bf16 %v544
        %v745 = vunpack.c.l.s8.bf16 %v545
        %v746 = vunpack.c.h.s8.bf16 %v542
        %v747 = vunpack.c.h.s8.bf16 %v543
        %v748 = vunpack.c.h.s8.bf16 %v544
        %v749 = vunpack.c.h.s8.bf16 %v545
        %v750 = vunpack.c.l.s8.bf16 %v546
        %v751 = vunpack.c.l.s8.bf16 %v547
        %v752 = vunpack.c.l.s8.bf16 %v548
        %v753 = vunpack.c.l.s8.bf16 %v549
        %v754 = vunpack.c.h.s8.bf16 %v546
        %v755 = vunpack.c.h.s8.bf16 %v547
        %v756 = vunpack.c.h.s8.bf16 %v548
        %v757 = vunpack.c.h.s8.bf16 %v549
        %v758 = vunpack.c.l.s8.bf16 %v550
        %v759 = vunpack.c.l.s8.bf16 %v551
        %v760 = vunpack.c.l.s8.bf16 %v552
        %v761 = vunpack.c.l.s8.bf16 %v553
        %v762 = vunpack.c.h.s8.bf16 %v550
        %v763 = vunpack.c.h.s8.bf16 %v551
        %v764 = vunpack.c.h.s8.bf16 %v552
        %v765 = vunpack.c.h.s8.bf16 %v553
        %v766 = vunpack.c.l.s8.bf16 %v554
        %v767 = vunpack.c.l.s8.bf16 %v555
        %v768 = vunpack.c.l.s8.bf16 %v556
        %v769 = vunpack.c.l.s8.bf16 %v557
        %v770 = vunpack.c.h.s8.bf16 %v554
        %v771 = vunpack.c.h.s8.bf16 %v555
        %v772 = vunpack.c.h.s8.bf16 %v556
        %v773 = vunpack.c.h.s8.bf16 %v557
        %v774 = vunpack.c.l.s8.bf16 %v558
        %v775 = vunpack.c.l.s8.bf16 %v559
        %v776 = vunpack.c.l.s8.bf16 %v560
        %v777 = vunpack.c.l.s8.bf16 %v561
        %v778 = vunpack.c.h.s8.bf16 %v558
        %v779 = vunpack.c.h.s8.bf16 %v559
        %v780 = vunpack.c.h.s8.bf16 %v560
        %v781 = vunpack.c.h.s8.bf16 %v561
        %v782 = vunpack.c.l.s8.bf16 %v562
        %v783 = vunpack.c.l.s8.bf16 %v563
        %v784 = vunpack.c.l.s8.bf16 %v564
        %v785 = vunpack.c.l.s8.bf16 %v565
        %v786 = vunpack.c.h.s8.bf16 %v562
        %v787 = vunpack.c.h.s8.bf16 %v563
        %v788 = vunpack.c.h.s8.bf16 %v564
        %v789 = vunpack.c.h.s8.bf16 %v565
        %v790 = vld [vmem:[#allocation2] sm:$0xff]
        %v791 = vld [vmem:[#allocation2 + $0x8] sm:$0xff]
        %v792 = vld [vmem:[#allocation2 + $0x10] sm:$0xff]
        %v793 = vld [vmem:[#allocation2 + $0x18] sm:$0xf]
        %v794 = vld [vmem:[#allocation2 + $0x1c] sm:$0xff]
        %v795 = vld [vmem:[#allocation2 + $0x24] sm:$0xff]
        %v796 = vld [vmem:[#allocation2 + $0x2c] sm:$0xff]
        %v797 = vld [vmem:[#allocation2 + $0x34] sm:$0xf]
        %v798 = vld [vmem:[#allocation2 + $0x38] sm:$0xff]
        %v799 = vld [vmem:[#allocation2 + $0x40] sm:$0xff]
        %v800 = vld [vmem:[#allocation2 + $0x48] sm:$0xff]
        %v801 = vld [vmem:[#allocation2 + $0x50] sm:$0xf]
        %v802 = vld [vmem:[#allocation2 + $0x54] sm:$0xff]
        %v803 = vld [vmem:[#allocation2 + $0x5c] sm:$0xff]
        %v804 = vld [vmem:[#allocation2 + $0x64] sm:$0xff]
        %v805 = vld [vmem:[#allocation2 + $0x6c] sm:$0xf]
        %v806 = vld [vmem:[#allocation2 + $0x70] sm:$0xff]
        %v807 = vld [vmem:[#allocation2 + $0x78] sm:$0xff]
        %v808 = vld [vmem:[#allocation2 + $0x80] sm:$0xff]
        %v809 = vld [vmem:[#allocation2 + $0x88] sm:$0xf]
        %v810 = vld [vmem:[#allocation2 + $0x8c] sm:$0xff]
        %v811 = vld [vmem:[#allocation2 + $0x94] sm:$0xff]
        %v812 = vld [vmem:[#allocation2 + $0x9c] sm:$0xff]
        %v813 = vld [vmem:[#allocation2 + $0xa4] sm:$0xf]
        %v814 = vld [vmem:[#allocation2 + $0xa8] sm:$0xff]
        %v815 = vld [vmem:[#allocation2 + $0xb0] sm:$0xff]
        %v816 = vld [vmem:[#allocation2 + $0xb8] sm:$0xff]
        %v817 = vld [vmem:[#allocation2 + $0xc0] sm:$0xf]
        %v818 = vld [vmem:[#allocation2 + $0xc4] sm:$0xff]
        %v819 = vld [vmem:[#allocation2 + $0xcc] sm:$0xff]
        %v820 = vld [vmem:[#allocation2 + $0xd4] sm:$0xff]
        %v821 = vld [vmem:[#allocation2 + $0xdc] sm:$0xf]
        %v822 = vld [vmem:[#allocation2 + $0xe0] sm:$0xff]
        %v823 = vld [vmem:[#allocation2 + $0xe8] sm:$0xff]
        %v824 = vld [vmem:[#allocation2 + $0xf0] sm:$0xff]
        %v825 = vld [vmem:[#allocation2 + $0xf8] sm:$0xf]
        %v826 = vld [vmem:[#allocation2 + $0xfc] sm:$0xff]
        %v827 = vld [vmem:[#allocation2 + $0x104] sm:$0xff]
        %v828 = vld [vmem:[#allocation2 + $0x10c] sm:$0xff]
        %v829 = vld [vmem:[#allocation2 + $0x114] sm:$0xf]
        %v830 = vld [vmem:[#allocation2 + $0x118] sm:$0xff]
        %v831 = vld [vmem:[#allocation2 + $0x120] sm:$0xff]
        %v832 = vld [vmem:[#allocation2 + $0x128] sm:$0xff]
        %v833 = vld [vmem:[#allocation2 + $0x130] sm:$0xf]
        %v834 = vld [vmem:[#allocation2 + $0x134] sm:$0xff]
        %v835 = vld [vmem:[#allocation2 + $0x13c] sm:$0xff]
        %v836 = vld [vmem:[#allocation2 + $0x144] sm:$0xff]
        %v837 = vld [vmem:[#allocation2 + $0x14c] sm:$0xf]
        %v838 = vld [vmem:[#allocation2 + $0x150] sm:$0xff]
        %v839 = vld [vmem:[#allocation2 + $0x158] sm:$0xff]
        %v840 = vld [vmem:[#allocation2 + $0x160] sm:$0xff]
        %v841 = vld [vmem:[#allocation2 + $0x168] sm:$0xf]
        %v842 = vld [vmem:[#allocation2 + $0x16c] sm:$0xff]
        %v843 = vld [vmem:[#allocation2 + $0x174] sm:$0xff]
        %v844 = vld [vmem:[#allocation2 + $0x17c] sm:$0xff]
        %v845 = vld [vmem:[#allocation2 + $0x184] sm:$0xf]
        %v846 = vld [vmem:[#allocation2 + $0x188] sm:$0xff]
        %v847 = vld [vmem:[#allocation2 + $0x190] sm:$0xff]
        %v848 = vld [vmem:[#allocation2 + $0x198] sm:$0xff]
        %v849 = vld [vmem:[#allocation2 + $0x1a0] sm:$0xf]
        %v850 = vld [vmem:[#allocation2 + $0x1a4] sm:$0xff]
        %v851 = vld [vmem:[#allocation2 + $0x1ac] sm:$0xff]
        %v852 = vld [vmem:[#allocation2 + $0x1b4] sm:$0xff]
        %v853 = vld [vmem:[#allocation2 + $0x1bc] sm:$0xf]
        %v918 = vunpack.c.l.b16 %v790
        %v919 = vunpack.c.h.b16 %v790
        %v920 = vunpack.c.l.b16 %v791
        %v921 = vunpack.c.h.b16 %v791
        %v922 = vunpack.c.l.b16 %v792
        %v923 = vunpack.c.h.b16 %v792
        %v924 = vunpack.c.l.b16 %v793
        %v925 = vunpack.c.l.b16 %v794
        %v926 = vunpack.c.h.b16 %v794
        %v927 = vunpack.c.l.b16 %v795
        %v928 = vunpack.c.h.b16 %v795
        %v929 = vunpack.c.l.b16 %v796
        %v930 = vunpack.c.h.b16 %v796
        %v931 = vunpack.c.l.b16 %v797
        %v932 = vunpack.c.l.b16 %v798
        %v933 = vunpack.c.h.b16 %v798
        %v934 = vunpack.c.l.b16 %v799
        %v935 = vunpack.c.h.b16 %v799
        %v936 = vunpack.c.l.b16 %v800
        %v937 = vunpack.c.h.b16 %v800
        %v938 = vunpack.c.l.b16 %v801
        %v939 = vunpack.c.l.b16 %v802
        %v940 = vunpack.c.h.b16 %v802
        %v941 = vunpack.c.l.b16 %v803
        %v942 = vunpack.c.h.b16 %v803
        %v943 = vunpack.c.l.b16 %v804
        %v944 = vunpack.c.h.b16 %v804
        %v945 = vunpack.c.l.b16 %v805
        %v946 = vunpack.c.l.b16 %v806
        %v947 = vunpack.c.h.b16 %v806
        %v948 = vunpack.c.l.b16 %v807
        %v949 = vunpack.c.h.b16 %v807
        %v950 = vunpack.c.l.b16 %v808
        %v951 = vunpack.c.h.b16 %v808
        %v952 = vunpack.c.l.b16 %v809
        %v953 = vunpack.c.l.b16 %v810
        %v954 = vunpack.c.h.b16 %v810
        %v955 = vunpack.c.l.b16 %v811
        %v956 = vunpack.c.h.b16 %v811
        %v957 = vunpack.c.l.b16 %v812
        %v958 = vunpack.c.h.b16 %v812
        %v959 = vunpack.c.l.b16 %v813
        %v960 = vunpack.c.l.b16 %v814
        %v961 = vunpack.c.h.b16 %v814
        %v962 = vunpack.c.l.b16 %v815
        %v963 = vunpack.c.h.b16 %v815
        %v964 = vunpack.c.l.b16 %v816
        %v965 = vunpack.c.h.b16 %v816
        %v966 = vunpack.c.l.b16 %v817
        %v967 = vunpack.c.l.b16 %v818
        %v968 = vunpack.c.h.b16 %v818
        %v969 = vunpack.c.l.b16 %v819
        %v970 = vunpack.c.h.b16 %v819
        %v971 = vunpack.c.l.b16 %v820
        %v972 = vunpack.c.h.b16 %v820
        %v973 = vunpack.c.l.b16 %v821
        %v974 = vunpack.c.l.b16 %v822
        %v975 = vunpack.c.h.b16 %v822
        %v976 = vunpack.c.l.b16 %v823
        %v977 = vunpack.c.h.b16 %v823
        %v978 = vunpack.c.l.b16 %v824
        %v979 = vunpack.c.h.b16 %v824
        %v980 = vunpack.c.l.b16 %v825
        %v981 = vunpack.c.l.b16 %v826
        %v982 = vunpack.c.h.b16 %v826
        %v983 = vunpack.c.l.b16 %v827
        %v984 = vunpack.c.h.b16 %v827
        %v985 = vunpack.c.l.b16 %v828
        %v986 = vunpack.c.h.b16 %v828
        %v987 = vunpack.c.l.b16 %v829
        %v988 = vunpack.c.l.b16 %v830
        %v989 = vunpack.c.h.b16 %v830
        %v990 = vunpack.c.l.b16 %v831
        %v991 = vunpack.c.h.b16 %v831
        %v992 = vunpack.c.l.b16 %v832
        %v993 = vunpack.c.h.b16 %v832
        %v994 = vunpack.c.l.b16 %v833
        %v995 = vunpack.c.l.b16 %v834
        %v996 = vunpack.c.h.b16 %v834
        %v997 = vunpack.c.l.b16 %v835
        %v998 = vunpack.c.h.b16 %v835
        %v999 = vunpack.c.l.b16 %v836
        %v1000 = vunpack.c.h.b16 %v836
        %v1001 = vunpack.c.l.b16 %v837
        %v1002 = vunpack.c.l.b16 %v838
        %v1003 = vunpack.c.h.b16 %v838
        %v1004 = vunpack.c.l.b16 %v839
        %v1005 = vunpack.c.h.b16 %v839
        %v1006 = vunpack.c.l.b16 %v840
        %v1007 = vunpack.c.h.b16 %v840
        %v1008 = vunpack.c.l.b16 %v841
        %v1009 = vunpack.c.l.b16 %v842
        %v1010 = vunpack.c.h.b16 %v842
        %v1011 = vunpack.c.l.b16 %v843
        %v1012 = vunpack.c.h.b16 %v843
        %v1013 = vunpack.c.l.b16 %v844
        %v1014 = vunpack.c.h.b16 %v844
        %v1015 = vunpack.c.l.b16 %v845
        %v1016 = vunpack.c.l.b16 %v846
        %v1017 = vunpack.c.h.b16 %v846
        %v1018 = vunpack.c.l.b16 %v847
        %v1019 = vunpack.c.h.b16 %v847
        %v1020 = vunpack.c.l.b16 %v848
        %v1021 = vunpack.c.h.b16 %v848
        %v1022 = vunpack.c.l.b16 %v849
        %v1023 = vunpack.c.l.b16 %v850
        %v1024 = vunpack.c.h.b16 %v850
        %v1025 = vunpack.c.l.b16 %v851
        %v1026 = vunpack.c.h.b16 %v851
        %v1027 = vunpack.c.l.b16 %v852
        %v1028 = vunpack.c.h.b16 %v852
        %v1029 = vunpack.c.l.b16 %v853
        %v1030 = vpack.c.b16 %v925, %v918
        %v1031 = vpack.c.b16 %v926, %v919
        %v1032 = vpack.c.b16 %v927, %v920
        %v1033 = vpack.c.b16 %v928, %v921
        %v1034 = vpack.c.b16 %v929, %v922
        %v1035 = vpack.c.b16 %v930, %v923
        %v1036 = vpack.c.b16 %v931, %v924
        %v1037 = vpack.c.b16 %v939, %v932
        %v1038 = vpack.c.b16 %v940, %v933
        %v1039 = vpack.c.b16 %v941, %v934
        %v1040 = vpack.c.b16 %v942, %v935
        %v1041 = vpack.c.b16 %v943, %v936
        %v1042 = vpack.c.b16 %v944, %v937
        %v1043 = vpack.c.b16 %v945, %v938
        %v1044 = vpack.c.b16 %v953, %v946
        %v1045 = vpack.c.b16 %v954, %v947
        %v1046 = vpack.c.b16 %v955, %v948
        %v1047 = vpack.c.b16 %v956, %v949
        %v1048 = vpack.c.b16 %v957, %v950
        %v1049 = vpack.c.b16 %v958, %v951
        %v1050 = vpack.c.b16 %v959, %v952
        %v1051 = vpack.c.b16 %v967, %v960
        %v1052 = vpack.c.b16 %v968, %v961
        %v1053 = vpack.c.b16 %v969, %v962
        %v1054 = vpack.c.b16 %v970, %v963
        %v1055 = vpack.c.b16 %v971, %v964
        %v1056 = vpack.c.b16 %v972, %v965
        %v1057 = vpack.c.b16 %v973, %v966
        %v1058 = vpack.c.b16 %v981, %v974
        %v1059 = vpack.c.b16 %v982, %v975
        %v1060 = vpack.c.b16 %v983, %v976
        %v1061 = vpack.c.b16 %v984, %v977
        %v1062 = vpack.c.b16 %v985, %v978
        %v1063 = vpack.c.b16 %v986, %v979
        %v1064 = vpack.c.b16 %v987, %v980
        %v1065 = vpack.c.b16 %v995, %v988
        %v1066 = vpack.c.b16 %v996, %v989
        %v1067 = vpack.c.b16 %v997, %v990
        %v1068 = vpack.c.b16 %v998, %v991
        %v1069 = vpack.c.b16 %v999, %v992
        %v1070 = vpack.c.b16 %v1000, %v993
        %v1071 = vpack.c.b16 %v1001, %v994
        %v1072 = vpack.c.b16 %v1009, %v1002
        %v1073 = vpack.c.b16 %v1010, %v1003
        %v1074 = vpack.c.b16 %v1011, %v1004
        %v1075 = vpack.c.b16 %v1012, %v1005
        %v1076 = vpack.c.b16 %v1013, %v1006
        %v1077 = vpack.c.b16 %v1014, %v1007
        %v1078 = vpack.c.b16 %v1015, %v1008
        %v1079 = vpack.c.b16 %v1023, %v1016
        %v1080 = vpack.c.b16 %v1024, %v1017
        %v1081 = vpack.c.b16 %v1025, %v1018
        %v1082 = vpack.c.b16 %v1026, %v1019
        %v1083 = vpack.c.b16 %v1027, %v1020
        %v1084 = vpack.c.b16 %v1028, %v1021
        %v1085 = vpack.c.b16 %v1029, %v1022
        %1142 = vmatprep.subr.bf16.mxu0 %v567
        %1143 = vmatpush1.bf16.msra.mxu0 %v566
        %1144 = vmatprep.subr.bf16.mxu0 %v571
        %1145 = vmatpush1.bf16.msra.mxu0 %v570
        %1146 = vmatprep.subr.bf16.mxu0 %v575
        %1147 = vmatpush1.bf16.msra.mxu0 %v574
        %1148 = vmatprep.subr.bf16.mxu0 %v579
        %1149 = vmatpush1.bf16.msra.mxu0 %v578
        %1150 = vmatprep.subr.bf16.mxu0 %v583
        %1151 = vmatpush1.bf16.msra.mxu0 %v582
        %1152 = vmatprep.subr.bf16.mxu0 %v587
        %1153 = vmatpush1.bf16.msra.mxu0 %v586
        %1154 = vmatprep.subr.bf16.mxu0 %v591
        %1155 = vmatpush1.bf16.msra.mxu0 %v590
        %1156 = vmatprep.subr.bf16.mxu0 %v595
        %1157 = vmatpush1.bf16.msra.mxu0 %v594
        %1158 = vmatprep.subr.bf16.mxu0 %v599
        %1159 = vmatpush1.bf16.msra.mxu0 %v598
        %1160 = vmatprep.subr.bf16.mxu0 %v603
        %1161 = vmatpush1.bf16.msra.mxu0 %v602
        %1162 = vmatprep.subr.bf16.mxu0 %v607
        %1163 = vmatpush1.bf16.msra.mxu0 %v606
        %1164 = vmatprep.subr.bf16.mxu0 %v611
        %1165 = vmatpush1.bf16.msra.mxu0 %v610
        %1166 = vmatprep.subr.bf16.mxu0 %v615
        %1167 = vmatpush1.bf16.msra.mxu0 %v614
        %1168 = vmatprep.subr.bf16.mxu0 %v619
        %1169 = vmatpush1.bf16.msra.mxu0 %v618
        %1170 = vmatprep.subr.bf16.mxu0 %v623
        %1171 = vmatpush1.bf16.msra.mxu0 %v622
        %1172 = vmatprep.subr.bf16.mxu0 %v627
        %1173 = vmatpush1.bf16.msra.mxu0 %v626
        %1174 = vmatprep.mubr.bf16.mxu0 %v1031
        %1175 = vmatmul.mubr.bf16.gmra.mrb[0].mxu0 %v1030
        %v1176 = vpop.f32.mrb[0].mxu0
        %v1177 = vadd.f32 0.0, %v1176
        %v1178 = vpop.f32.mrb[0].mxu0
        %v1179 = vadd.f32 0.0, %v1178
        %v1180 = vpop.f32.mrb[0].mxu0
        %v1181 = vadd.f32 0.0, %v1180
        %v1182 = vpop.f32.mrb[0].mxu0
        %v1183 = vadd.f32 0.0, %v1182
        %1184 = vmatprep.mubr.bf16.mxu0 %v1038
        %1185 = vmatmul.mubr.bf16.gmra.mrb[0].mxu0 %v1037
        %v1186 = vpop.f32.mrb[0].mxu0
        %v1187 = vadd.f32 0.0, %v1186
        %v1188 = vpop.f32.mrb[0].mxu0
        %v1189 = vadd.f32 0.0, %v1188
        %v1190 = vpop.f32.mrb[0].mxu0
        %v1191 = vadd.f32 0.0, %v1190
        %v1192 = vpop.f32.mrb[0].mxu0
        %v1193 = vadd.f32 0.0, %v1192
        %1194 = vmatprep.mubr.bf16.mxu0 %v1045
        %1195 = vmatmul.mubr.bf16.gmra.mrb[0].mxu0 %v1044
        %v1196 = vpop.f32.mrb[0].mxu0
        %v1197 = vadd.f32 0.0, %v1196
        %v1198 = vpop.f32.mrb[0].mxu0
        %v1199 = vadd.f32 0.0, %v1198
        %v1200 = vpop.f32.mrb[0].mxu0
        %v1201 = vadd.f32 0.0, %v1200
        %v1202 = vpop.f32.mrb[0].mxu0
        %v1203 = vadd.f32 0.0, %v1202
        %1204 = vmatprep.mubr.bf16.mxu0 %v1052
        %1205 = vmatmul.mubr.bf16.gmra.mrb[0].mxu0 %v1051
        %v1206 = vpop.f32.mrb[0].mxu0
        %v1207 = vadd.f32 0.0, %v1206
        %v1208 = vpop.f32.mrb[0].mxu0
        %v1209 = vadd.f32 0.0, %v1208
        %v1210 = vpop.f32.mrb[0].mxu0
        %v1211 = vadd.f32 0.0, %v1210
        %v1212 = vpop.f32.mrb[0].mxu0
        %v1213 = vadd.f32 0.0, %v1212
        %1214 = vmatprep.mubr.bf16.mxu0 %v1059
        %1215 = vmatmul.mubr.bf16.gmra.mrb[0].mxu0 %v1058
        %v1216 = vpop.f32.mrb[0].mxu0
        %v1217 = vadd.f32 0.0, %v1216
        %v1218 = vpop.f32.mrb[0].mxu0
        %v1219 = vadd.f32 0.0, %v1218
        %v1220 = vpop.f32.mrb[0].mxu0
        %v1221 = vadd.f32 0.0, %v1220
        %v1222 = vpop.f32.mrb[0].mxu0
        %v1223 = vadd.f32 0.0, %v1222
        %1224 = vmatprep.mubr.bf16.mxu0 %v1066
        %1225 = vmatmul.mubr.bf16.gmra.mrb[0].mxu0 %v1065
        %v1226 = vpop.f32.mrb[0].mxu0
        %v1227 = vadd.f32 0.0, %v1226
        %v1228 = vpop.f32.mrb[0].mxu0
        %v1229 = vadd.f32 0.0, %v1228
        %v1230 = vpop.f32.mrb[0].mxu0
        %v1231 = vadd.f32 0.0, %v1230
        %v1232 = vpop.f32.mrb[0].mxu0
        %v1233 = vadd.f32 0.0, %v1232
        %1234 = vmatprep.mubr.bf16.mxu0 %v1073
        %1235 = vmatmul.mubr.bf16.gmra.mrb[0].mxu0 %v1072
        %v1236 = vpop.f32.mrb[0].mxu0
        %v1237 = vadd.f32 0.0, %v1236
        %v1238 = vpop.f32.mrb[0].mxu0
        %v1239 = vadd.f32 0.0, %v1238
        %v1240 = vpop.f32.mrb[0].mxu0
        %v1241 = vadd.f32 0.0, %v1240
        %v1242 = vpop.f32.mrb[0].mxu0
        %v1243 = vadd.f32 0.0, %v1242
        %1244 = vmatprep.mubr.bf16.mxu0 %v1080
        %1245 = vmatmul.mubr.bf16.gmra.mrb[0].mxu0 %v1079
        %v1246 = vpop.f32.mrb[0].mxu0
        %v1247 = vadd.f32 0.0, %v1246
        %v1248 = vpop.f32.mrb[0].mxu0
        %v1249 = vadd.f32 0.0, %v1248
        %v1250 = vpop.f32.mrb[0].mxu0
        %v1251 = vadd.f32 0.0, %v1250
        %v1252 = vpop.f32.mrb[0].mxu0
        %v1253 = vadd.f32 0.0, %v1252
        %1254 = vdwg.mxu0
        %1255 = vmatprep.subr.bf16.mxu0 %v631
        %1256 = vmatpush1.bf16.msra.mxu0 %v630
        %1257 = vmatprep.subr.bf16.mxu0 %v635
        %1258 = vmatpush1.bf16.msra.mxu0 %v634
        %1259 = vmatprep.subr.bf16.mxu0 %v639
        %1260 = vmatpush1.bf16.msra.mxu0 %v638
        %1261 = vmatprep.subr.bf16.mxu0 %v643
        %1262 = vmatpush1.bf16.msra.mxu0 %v642
        %1263 = vmatprep.subr.bf16.mxu0 %v647
        %1264 = vmatpush1.bf16.msra.mxu0 %v646
        %1265 = vmatprep.subr.bf16.mxu0 %v651
        %1266 = vmatpush1.bf16.msra.mxu0 %v650
        %1267 = vmatprep.subr.bf16.mxu0 %v655
        %1268 = vmatpush1.bf16.msra.mxu0 %v654
        %1269 = vmatprep.subr.bf16.mxu0 %v659
        %1270 = vmatpush1.bf16.msra.mxu0 %v658
        %1271 = vmatprep.subr.bf16.mxu0 %v663
        %1272 = vmatpush1.bf16.msra.mxu0 %v662
        %1273 = vmatprep.subr.bf16.mxu0 %v667
        %1274 = vmatpush1.bf16.msra.mxu0 %v666
        %1275 = vmatprep.subr.bf16.mxu0 %v671
        %1276 = vmatpush1.bf16.msra.mxu0 %v670
        %1277 = vmatprep.subr.bf16.mxu0 %v675
        %1278 = vmatpush1.bf16.msra.mxu0 %v674
        %1279 = vmatprep.subr.bf16.mxu0 %v679
        %1280 = vmatpush1.bf16.msra.mxu0 %v678
        %1281 = vmatprep.subr.bf16.mxu0 %v683
        %1282 = vmatpush1.bf16.msra.mxu0 %v682
        %1283 = vmatprep.subr.bf16.mxu0 %v687
        %1284 = vmatpush1.bf16.msra.mxu0 %v686
        %1285 = vmatprep.subr.bf16.mxu0 %v691
        %1286 = vmatpush1.bf16.msra.mxu0 %v690
        %1287 = vmatprep.mubr.bf16.mxu0 %v1033
        %1288 = vmatmul.mubr.bf16.gmra.mrb[0].mxu0 %v1032
        %v1289 = vpop.f32.mrb[0].mxu0
        %v1290 = vadd.f32 %v1177, %v1289
        %v1291 = vpop.f32.mrb[0].mxu0
        %v1292 = vadd.f32 %v1179, %v1291
        %v1293 = vpop.f32.mrb[0].mxu0
        %v1294 = vadd.f32 %v1181, %v1293
        %v1295 = vpop.f32.mrb[0].mxu0
        %v1296 = vadd.f32 %v1183, %v1295
        %1297 = vmatprep.mubr.bf16.mxu0 %v1040
        %1298 = vmatmul.mubr.bf16.gmra.mrb[0].mxu0 %v1039
        %v1299 = vpop.f32.mrb[0].mxu0
        %v1300 = vadd.f32 %v1187, %v1299
        %v1301 = vpop.f32.mrb[0].mxu0
        %v1302 = vadd.f32 %v1189, %v1301
        %v1303 = vpop.f32.mrb[0].mxu0
        %v1304 = vadd.f32 %v1191, %v1303
        %v1305 = vpop.f32.mrb[0].mxu0
        %v1306 = vadd.f32 %v1193, %v1305
        %1307 = vmatprep.mubr.bf16.mxu0 %v1047
        %1308 = vmatmul.mubr.bf16.gmra.mrb[0].mxu0 %v1046
        %v1309 = vpop.f32.mrb[0].mxu0
        %v1310 = vadd.f32 %v1197, %v1309
        %v1311 = vpop.f32.mrb[0].mxu0
        %v1312 = vadd.f32 %v1199, %v1311
        %v1313 = vpop.f32.mrb[0].mxu0
        %v1314 = vadd.f32 %v1201, %v1313
        %v1315 = vpop.f32.mrb[0].mxu0
        %v1316 = vadd.f32 %v1203, %v1315
        %1317 = vmatprep.mubr.bf16.mxu0 %v1054
        %1318 = vmatmul.mubr.bf16.gmra.mrb[0].mxu0 %v1053
        %v1319 = vpop.f32.mrb[0].mxu0
        %v1320 = vadd.f32 %v1207, %v1319
        %v1321 = vpop.f32.mrb[0].mxu0
        %v1322 = vadd.f32 %v1209, %v1321
        %v1323 = vpop.f32.mrb[0].mxu0
        %v1324 = vadd.f32 %v1211, %v1323
        %v1325 = vpop.f32.mrb[0].mxu0
        %v1326 = vadd.f32 %v1213, %v1325
        %1327 = vmatprep.mubr.bf16.mxu0 %v1061
        %1328 = vmatmul.mubr.bf16.gmra.mrb[0].mxu0 %v1060
        %v1329 = vpop.f32.mrb[0].mxu0
        %v1330 = vadd.f32 %v1217, %v1329
        %v1331 = vpop.f32.mrb[0].mxu0
        %v1332 = vadd.f32 %v1219, %v1331
        %v1333 = vpop.f32.mrb[0].mxu0
        %v1334 = vadd.f32 %v1221, %v1333
        %v1335 = vpop.f32.mrb[0].mxu0
        %v1336 = vadd.f32 %v1223, %v1335
        %1337 = vmatprep.mubr.bf16.mxu0 %v1068
        %1338 = vmatmul.mubr.bf16.gmra.mrb[0].mxu0 %v1067
        %v1339 = vpop.f32.mrb[0].mxu0
        %v1340 = vadd.f32 %v1227, %v1339
        %v1341 = vpop.f32.mrb[0].mxu0
        %v1342 = vadd.f32 %v1229, %v1341
        %v1343 = vpop.f32.mrb[0].mxu0
        %v1344 = vadd.f32 %v1231, %v1343
        %v1345 = vpop.f32.mrb[0].mxu0
        %v1346 = vadd.f32 %v1233, %v1345
        %1347 = vmatprep.mubr.bf16.mxu0 %v1075
        %1348 = vmatmul.mubr.bf16.gmra.mrb[0].mxu0 %v1074
        %v1349 = vpop.f32.mrb[0].mxu0
        %v1350 = vadd.f32 %v1237, %v1349
        %v1351 = vpop.f32.mrb[0].mxu0
        %v1352 = vadd.f32 %v1239, %v1351
        %v1353 = vpop.f32.mrb[0].mxu0
        %v1354 = vadd.f32 %v1241, %v1353
        %v1355 = vpop.f32.mrb[0].mxu0
        %v1356 = vadd.f32 %v1243, %v1355
        %1357 = vmatprep.mubr.bf16.mxu0 %v1082
        %1358 = vmatmul.mubr.bf16.gmra.mrb[0].mxu0 %v1081
        %v1359 = vpop.f32.mrb[0].mxu0
        %v1360 = vadd.f32 %v1247, %v1359
        %v1361 = vpop.f32.mrb[0].mxu0
        %v1362 = vadd.f32 %v1249, %v1361
        %v1363 = vpop.f32.mrb[0].mxu0
        %v1364 = vadd.f32 %v1251, %v1363
        %v1365 = vpop.f32.mrb[0].mxu0
        %v1366 = vadd.f32 %v1253, %v1365
        %1367 = vdwg.mxu0
        %1368 = vmatprep.subr.bf16.mxu0 %v695
        %1369 = vmatpush1.bf16.msra.mxu0 %v694
        %1370 = vmatprep.subr.bf16.mxu0 %v699
        %1371 = vmatpush1.bf16.msra.mxu0 %v698
        %1372 = vmatprep.subr.bf16.mxu0 %v703
        %1373 = vmatpush1.bf16.msra.mxu0 %v702
        %1374 = vmatprep.subr.bf16.mxu0 %v707
        %1375 = vmatpush1.bf16.msra.mxu0 %v706
        %1376 = vmatprep.subr.bf16.mxu0 %v711
        %1377 = vmatpush1.bf16.msra.mxu0 %v710
        %1378 = vmatprep.subr.bf16.mxu0 %v715
        %1379 = vmatpush1.bf16.msra.mxu0 %v714
        %1380 = vmatprep.subr.bf16.mxu0 %v719
        %1381 = vmatpush1.bf16.msra.mxu0 %v718
        %1382 = vmatprep.subr.bf16.mxu0 %v723
        %1383 = vmatpush1.bf16.msra.mxu0 %v722
        %1384 = vmatprep.subr.bf16.mxu0 %v727
        %1385 = vmatpush1.bf16.msra.mxu0 %v726
        %1386 = vmatprep.subr.bf16.mxu0 %v731
        %1387 = vmatpush1.bf16.msra.mxu0 %v730
        %1388 = vmatprep.subr.bf16.mxu0 %v735
        %1389 = vmatpush1.bf16.msra.mxu0 %v734
        %1390 = vmatprep.subr.bf16.mxu0 %v739
        %1391 = vmatpush1.bf16.msra.mxu0 %v738
        %1392 = vmatprep.subr.bf16.mxu0 %v743
        %1393 = vmatpush1.bf16.msra.mxu0 %v742
        %1394 = vmatprep.subr.bf16.mxu0 %v747
        %1395 = vmatpush1.bf16.msra.mxu0 %v746
        %1396 = vmatprep.subr.bf16.mxu0 %v751
        %1397 = vmatpush1.bf16.msra.mxu0 %v750
        %1398 = vmatprep.subr.bf16.mxu0 %v755
        %1399 = vmatpush1.bf16.msra.mxu0 %v754
        %1400 = vmatprep.mubr.bf16.mxu0 %v1035
        %1401 = vmatmul.mubr.bf16.gmra.mrb[0].mxu0 %v1034
        %v1402 = vpop.f32.mrb[0].mxu0
        %v1403 = vadd.f32 %v1290, %v1402
        %v1404 = vpop.f32.mrb[0].mxu0
        %v1405 = vadd.f32 %v1292, %v1404
        %v1406 = vpop.f32.mrb[0].mxu0
        %v1407 = vadd.f32 %v1294, %v1406
        %v1408 = vpop.f32.mrb[0].mxu0
        %v1409 = vadd.f32 %v1296, %v1408
        %1410 = vmatprep.mubr.bf16.mxu0 %v1042
        %1411 = vmatmul.mubr.bf16.gmra.mrb[0].mxu0 %v1041
        %v1412 = vpop.f32.mrb[0].mxu0
        %v1413 = vadd.f32 %v1300, %v1412
        %v1414 = vpop.f32.mrb[0].mxu0
        %v1415 = vadd.f32 %v1302, %v1414
        %v1416 = vpop.f32.mrb[0].mxu0
        %v1417 = vadd.f32 %v1304, %v1416
        %v1418 = vpop.f32.mrb[0].mxu0
        %v1419 = vadd.f32 %v1306, %v1418
        %1420 = vmatprep.mubr.bf16.mxu0 %v1049
        %1421 = vmatmul.mubr.bf16.gmra.mrb[0].mxu0 %v1048
        %v1422 = vpop.f32.mrb[0].mxu0
        %v1423 = vadd.f32 %v1310, %v1422
        %v1424 = vpop.f32.mrb[0].mxu0
        %v1425 = vadd.f32 %v1312, %v1424
        %v1426 = vpop.f32.mrb[0].mxu0
        %v1427 = vadd.f32 %v1314, %v1426
        %v1428 = vpop.f32.mrb[0].mxu0
        %v1429 = vadd.f32 %v1316, %v1428
        %1430 = vmatprep.mubr.bf16.mxu0 %v1056
        %1431 = vmatmul.mubr.bf16.gmra.mrb[0].mxu0 %v1055
        %v1432 = vpop.f32.mrb[0].mxu0
        %v1433 = vadd.f32 %v1320, %v1432
        %v1434 = vpop.f32.mrb[0].mxu0
        %v1435 = vadd.f32 %v1322, %v1434
        %v1436 = vpop.f32.mrb[0].mxu0
        %v1437 = vadd.f32 %v1324, %v1436
        %v1438 = vpop.f32.mrb[0].mxu0
        %v1439 = vadd.f32 %v1326, %v1438
        %1440 = vmatprep.mubr.bf16.mxu0 %v1063
        %1441 = vmatmul.mubr.bf16.gmra.mrb[0].mxu0 %v1062
        %v1442 = vpop.f32.mrb[0].mxu0
        %v1443 = vadd.f32 %v1330, %v1442
        %v1444 = vpop.f32.mrb[0].mxu0
        %v1445 = vadd.f32 %v1332, %v1444
        %v1446 = vpop.f32.mrb[0].mxu0
        %v1447 = vadd.f32 %v1334, %v1446
        %v1448 = vpop.f32.mrb[0].mxu0
        %v1449 = vadd.f32 %v1336, %v1448
        %1450 = vmatprep.mubr.bf16.mxu0 %v1070
        %1451 = vmatmul.mubr.bf16.gmra.mrb[0].mxu0 %v1069
        %v1452 = vpop.f32.mrb[0].mxu0
        %v1453 = vadd.f32 %v1340, %v1452
        %v1454 = vpop.f32.mrb[0].mxu0
        %v1455 = vadd.f32 %v1342, %v1454
        %v1456 = vpop.f32.mrb[0].mxu0
        %v1457 = vadd.f32 %v1344, %v1456
        %v1458 = vpop.f32.mrb[0].mxu0
        %v1459 = vadd.f32 %v1346, %v1458
        %1460 = vmatprep.mubr.bf16.mxu0 %v1077
        %1461 = vmatmul.mubr.bf16.gmra.mrb[0].mxu0 %v1076
        %v1462 = vpop.f32.mrb[0].mxu0
        %v1463 = vadd.f32 %v1350, %v1462
        %v1464 = vpop.f32.mrb[0].mxu0
        %v1465 = vadd.f32 %v1352, %v1464
        %v1466 = vpop.f32.mrb[0].mxu0
        %v1467 = vadd.f32 %v1354, %v1466
        %v1468 = vpop.f32.mrb[0].mxu0
        %v1469 = vadd.f32 %v1356, %v1468
        %1470 = vmatprep.mubr.bf16.mxu0 %v1084
        %1471 = vmatmul.mubr.bf16.gmra.mrb[0].mxu0 %v1083
        %v1472 = vpop.f32.mrb[0].mxu0
        %v1473 = vadd.f32 %v1360, %v1472
        %v1474 = vpop.f32.mrb[0].mxu0
        %v1475 = vadd.f32 %v1362, %v1474
        %v1476 = vpop.f32.mrb[0].mxu0
        %v1477 = vadd.f32 %v1364, %v1476
        %v1478 = vpop.f32.mrb[0].mxu0
        %v1479 = vadd.f32 %v1366, %v1478
        %1480 = vdwg.mxu0
        %1481 = vmatprep.subr.bf16.mxu0 %v759
        %1482 = vmatpush1.bf16.msra.mxu0 %v758
        %1483 = vmatprep.subr.bf16.mxu0 %v763
        %1484 = vmatpush1.bf16.msra.mxu0 %v762
        %1485 = vmatprep.subr.bf16.mxu0 %v767
        %1486 = vmatpush1.bf16.msra.mxu0 %v766
        %1487 = vmatprep.subr.bf16.mxu0 %v771
        %1488 = vmatpush1.bf16.msra.mxu0 %v770
        %1489 = vmatprep.subr.bf16.mxu0 %v775
        %1490 = vmatpush1.bf16.msra.mxu0 %v774
        %1491 = vmatprep.subr.bf16.mxu0 %v779
        %1492 = vmatpush1.bf16.msra.mxu0 %v778
        %1493 = vmatprep.subr.bf16.mxu0 %v783
        %1494 = vmatpush1.bf16.msra.mxu0 %v782
        %1495 = vmatprep.subr.bf16.mxu0 %v787
        %1496 = vmatpush1.bf16.msra.mxu0 %v786
        %1497 = vmatprep.subr.bf16.mxu0 0
        %1498 = vmatpush1.bf16.msra.mxu0 0
        %1499 = vmatprep.subr.bf16.mxu0 0
        %1500 = vmatpush1.bf16.msra.mxu0 0
        %1501 = vmatprep.subr.bf16.mxu0 0
        %1502 = vmatpush1.bf16.msra.mxu0 0
        %1503 = vmatprep.subr.bf16.mxu0 0
        %1504 = vmatpush1.bf16.msra.mxu0 0
        %1505 = vmatprep.subr.bf16.mxu0 0
        %1506 = vmatpush1.bf16.msra.mxu0 0
        %1507 = vmatprep.subr.bf16.mxu0 0
        %1508 = vmatpush1.bf16.msra.mxu0 0
        %1509 = vmatprep.subr.bf16.mxu0 0
        %1510 = vmatpush1.bf16.msra.mxu0 0
        %1511 = vmatprep.subr.bf16.mxu0 0
        %1512 = vmatpush1.bf16.msra.mxu0 0
        %1513 = vmatprep.mubr.bf16.mxu0 0
        %1514 = vmatmul.mubr.bf16.gmra.mrb[0].mxu0 %v1036
        %v1515 = vpop.f32.mrb[0].mxu0
        %v1516 = vadd.f32 %v1403, %v1515
        %v1517 = vpop.f32.mrb[0].mxu0
        %v1518 = vadd.f32 %v1405, %v1517
        %v1519 = vpop.f32.mrb[0].mxu0
        %v1520 = vadd.f32 %v1407, %v1519
        %v1521 = vpop.f32.mrb[0].mxu0
        %v1522 = vadd.f32 %v1409, %v1521
        %1523 = vmatprep.mubr.bf16.mxu0 0
        %1524 = vmatmul.mubr.bf16.gmra.mrb[0].mxu0 %v1043
        %v1525 = vpop.f32.mrb[0].mxu0
        %v1526 = vadd.f32 %v1413, %v1525
        %v1527 = vpop.f32.mrb[0].mxu0
        %v1528 = vadd.f32 %v1415, %v1527
        %v1529 = vpop.f32.mrb[0].mxu0
        %v1530 = vadd.f32 %v1417, %v1529
        %v1531 = vpop.f32.mrb[0].mxu0
        %v1532 = vadd.f32 %v1419, %v1531
        %1533 = vmatprep.mubr.bf16.mxu0 0
        %1534 = vmatmul.mubr.bf16.gmra.mrb[0].mxu0 %v1050
        %v1535 = vpop.f32.mrb[0].mxu0
        %v1536 = vadd.f32 %v1423, %v1535
        %v1537 = vpop.f32.mrb[0].mxu0
        %v1538 = vadd.f32 %v1425, %v1537
        %v1539 = vpop.f32.mrb[0].mxu0
        %v1540 = vadd.f32 %v1427, %v1539
        %v1541 = vpop.f32.mrb[0].mxu0
        %v1542 = vadd.f32 %v1429, %v1541
        %1543 = vmatprep.mubr.bf16.mxu0 0
        %1544 = vmatmul.mubr.bf16.gmra.mrb[0].mxu0 %v1057
        %v1545 = vpop.f32.mrb[0].mxu0
        %v1546 = vadd.f32 %v1433, %v1545
        %v1547 = vpop.f32.mrb[0].mxu0
        %v1548 = vadd.f32 %v1435, %v1547
        %v1549 = vpop.f32.mrb[0].mxu0
        %v1550 = vadd.f32 %v1437, %v1549
        %v1551 = vpop.f32.mrb[0].mxu0
        %v1552 = vadd.f32 %v1439, %v1551
        %1553 = vmatprep.mubr.bf16.mxu0 0
        %1554 = vmatmul.mubr.bf16.gmra.mrb[0].mxu0 %v1064
        %v1555 = vpop.f32.mrb[0].mxu0
        %v1556 = vadd.f32 %v1443, %v1555
        %v1557 = vpop.f32.mrb[0].mxu0
        %v1558 = vadd.f32 %v1445, %v1557
        %v1559 = vpop.f32.mrb[0].mxu0
        %v1560 = vadd.f32 %v1447, %v1559
        %v1561 = vpop.f32.mrb[0].mxu0
        %v1562 = vadd.f32 %v1449, %v1561
        %1563 = vmatprep.mubr.bf16.mxu0 0
        %1564 = vmatmul.mubr.bf16.gmra.mrb[0].mxu0 %v1071
        %v1565 = vpop.f32.mrb[0].mxu0
        %v1566 = vadd.f32 %v1453, %v1565
        %v1567 = vpop.f32.mrb[0].mxu0
        %v1568 = vadd.f32 %v1455, %v1567
        %v1569 = vpop.f32.mrb[0].mxu0
        %v1570 = vadd.f32 %v1457, %v1569
        %v1571 = vpop.f32.mrb[0].mxu0
        %v1572 = vadd.f32 %v1459, %v1571
        %1573 = vmatprep.mubr.bf16.mxu0 0
        %1574 = vmatmul.mubr.bf16.gmra.mrb[0].mxu0 %v1078
        %v1575 = vpop.f32.mrb[0].mxu0
        %v1576 = vadd.f32 %v1463, %v1575
        %v1577 = vpop.f32.mrb[0].mxu0
        %v1578 = vadd.f32 %v1465, %v1577
        %v1579 = vpop.f32.mrb[0].mxu0
        %v1580 = vadd.f32 %v1467, %v1579
        %v1581 = vpop.f32.mrb[0].mxu0
        %v1582 = vadd.f32 %v1469, %v1581
        %1583 = vmatprep.mubr.bf16.mxu0 0
        %1584 = vmatmul.mubr.bf16.gmra.mrb[0].mxu0 %v1085
        %v1585 = vpop.f32.mrb[0].mxu0
        %v1586 = vadd.f32 %v1473, %v1585
        %v1587 = vpop.f32.mrb[0].mxu0
        %v1588 = vadd.f32 %v1475, %v1587
        %v1589 = vpop.f32.mrb[0].mxu0
        %v1590 = vadd.f32 %v1477, %v1589
        %v1591 = vpop.f32.mrb[0].mxu0
        %v1592 = vadd.f32 %v1479, %v1591
        %1593 = vdwg.mxu0
        %1594 = vmatprep.subr.bf16.mxu0 %v569
        %1595 = vmatpush1.bf16.msra.mxu0 %v568
        %1596 = vmatprep.subr.bf16.mxu0 %v573
        %1597 = vmatpush1.bf16.msra.mxu0 %v572
        %1598 = vmatprep.subr.bf16.mxu0 %v577
        %1599 = vmatpush1.bf16.msra.mxu0 %v576
        %1600 = vmatprep.subr.bf16.mxu0 %v581
        %1601 = vmatpush1.bf16.msra.mxu0 %v580
        %1602 = vmatprep.subr.bf16.mxu0 %v585
        %1603 = vmatpush1.bf16.msra.mxu0 %v584
        %1604 = vmatprep.subr.bf16.mxu0 %v589
        %1605 = vmatpush1.bf16.msra.mxu0 %v588
        %1606 = vmatprep.subr.bf16.mxu0 %v593
        %1607 = vmatpush1.bf16.msra.mxu0 %v592
        %1608 = vmatprep.subr.bf16.mxu0 %v597
        %1609 = vmatpush1.bf16.msra.mxu0 %v596
        %1610 = vmatprep.subr.bf16.mxu0 %v601
        %1611 = vmatpush1.bf16.msra.mxu0 %v600
        %1612 = vmatprep.subr.bf16.mxu0 %v605
        %1613 = vmatpush1.bf16.msra.mxu0 %v604
        %1614 = vmatprep.subr.bf16.mxu0 %v609
        %1615 = vmatpush1.bf16.msra.mxu0 %v608
        %1616 = vmatprep.subr.bf16.mxu0 %v613
        %1617 = vmatpush1.bf16.msra.mxu0 %v612
        %1618 = vmatprep.subr.bf16.mxu0 %v617
        %1619 = vmatpush1.bf16.msra.mxu0 %v616
        %1620 = vmatprep.subr.bf16.mxu0 %v621
        %1621 = vmatpush1.bf16.msra.mxu0 %v620
        %1622 = vmatprep.subr.bf16.mxu0 %v625
        %1623 = vmatpush1.bf16.msra.mxu0 %v624
        %1624 = vmatprep.subr.bf16.mxu0 %v629
        %1625 = vmatpush1.bf16.msra.mxu0 %v628
        %1626 = vmatprep.mubr.bf16.mxu0 %v1031
        %1627 = vmatmul.mubr.bf16.gmra.mrb[0].mxu0 %v1030
        %v1628 = vpop.f32.mrb[0].mxu0
        %v1629 = vadd.f32 0.0, %v1628
        %v1630 = vpop.f32.mrb[0].mxu0
        %v1631 = vadd.f32 0.0, %v1630
        %v1632 = vpop.f32.mrb[0].mxu0
        %v1633 = vadd.f32 0.0, %v1632
        %v1634 = vpop.f32.mrb[0].mxu0
        %v1635 = vadd.f32 0.0, %v1634
        %1636 = vmatprep.mubr.bf16.mxu0 %v1038
        %1637 = vmatmul.mubr.bf16.gmra.mrb[0].mxu0 %v1037
        %v1638 = vpop.f32.mrb[0].mxu0
        %v1639 = vadd.f32 0.0, %v1638
        %v1640 = vpop.f32.mrb[0].mxu0
        %v1641 = vadd.f32 0.0, %v1640
        %v1642 = vpop.f32.mrb[0].mxu0
        %v1643 = vadd.f32 0.0, %v1642
        %v1644 = vpop.f32.mrb[0].mxu0
        %v1645 = vadd.f32 0.0, %v1644
        %1646 = vmatprep.mubr.bf16.mxu0 %v1045
        %1647 = vmatmul.mubr.bf16.gmra.mrb[0].mxu0 %v1044
        %v1648 = vpop.f32.mrb[0].mxu0
        %v1649 = vadd.f32 0.0, %v1648
        %v1650 = vpop.f32.mrb[0].mxu0
        %v1651 = vadd.f32 0.0, %v1650
        %v1652 = vpop.f32.mrb[0].mxu0
        %v1653 = vadd.f32 0.0, %v1652
        %v1654 = vpop.f32.mrb[0].mxu0
        %v1655 = vadd.f32 0.0, %v1654
        %1656 = vmatprep.mubr.bf16.mxu0 %v1052
        %1657 = vmatmul.mubr.bf16.gmra.mrb[0].mxu0 %v1051
        %v1658 = vpop.f32.mrb[0].mxu0
        %v1659 = vadd.f32 0.0, %v1658
        %v1660 = vpop.f32.mrb[0].mxu0
        %v1661 = vadd.f32 0.0, %v1660
        %v1662 = vpop.f32.mrb[0].mxu0
        %v1663 = vadd.f32 0.0, %v1662
        %v1664 = vpop.f32.mrb[0].mxu0
        %v1665 = vadd.f32 0.0, %v1664
        %1666 = vmatprep.mubr.bf16.mxu0 %v1059
        %1667 = vmatmul.mubr.bf16.gmra.mrb[0].mxu0 %v1058
        %v1668 = vpop.f32.mrb[0].mxu0
        %v1669 = vadd.f32 0.0, %v1668
        %v1670 = vpop.f32.mrb[0].mxu0
        %v1671 = vadd.f32 0.0, %v1670
        %v1672 = vpop.f32.mrb[0].mxu0
        %v1673 = vadd.f32 0.0, %v1672
        %v1674 = vpop.f32.mrb[0].mxu0
        %v1675 = vadd.f32 0.0, %v1674
        %1676 = vmatprep.mubr.bf16.mxu0 %v1066
        %1677 = vmatmul.mubr.bf16.gmra.mrb[0].mxu0 %v1065
        %v1678 = vpop.f32.mrb[0].mxu0
        %v1679 = vadd.f32 0.0, %v1678
        %v1680 = vpop.f32.mrb[0].mxu0
        %v1681 = vadd.f32 0.0, %v1680
        %v1682 = vpop.f32.mrb[0].mxu0
        %v1683 = vadd.f32 0.0, %v1682
        %v1684 = vpop.f32.mrb[0].mxu0
        %v1685 = vadd.f32 0.0, %v1684
        %1686 = vmatprep.mubr.bf16.mxu0 %v1073
        %1687 = vmatmul.mubr.bf16.gmra.mrb[0].mxu0 %v1072
        %v1688 = vpop.f32.mrb[0].mxu0
        %v1689 = vadd.f32 0.0, %v1688
        %v1690 = vpop.f32.mrb[0].mxu0
        %v1691 = vadd.f32 0.0, %v1690
        %v1692 = vpop.f32.mrb[0].mxu0
        %v1693 = vadd.f32 0.0, %v1692
        %v1694 = vpop.f32.mrb[0].mxu0
        %v1695 = vadd.f32 0.0, %v1694
        %1696 = vmatprep.mubr.bf16.mxu0 %v1080
        %1697 = vmatmul.mubr.bf16.gmra.mrb[0].mxu0 %v1079
        %v1698 = vpop.f32.mrb[0].mxu0
        %v1699 = vadd.f32 0.0, %v1698
        %v1700 = vpop.f32.mrb[0].mxu0
        %v1701 = vadd.f32 0.0, %v1700
        %v1702 = vpop.f32.mrb[0].mxu0
        %v1703 = vadd.f32 0.0, %v1702
        %v1704 = vpop.f32.mrb[0].mxu0
        %v1705 = vadd.f32 0.0, %v1704
        %1706 = vdwg.mxu0
        %1707 = vmatprep.subr.bf16.mxu0 %v633
        %1708 = vmatpush1.bf16.msra.mxu0 %v632
        %1709 = vmatprep.subr.bf16.mxu0 %v637
        %1710 = vmatpush1.bf16.msra.mxu0 %v636
        %1711 = vmatprep.subr.bf16.mxu0 %v641
        %1712 = vmatpush1.bf16.msra.mxu0 %v640
        %1713 = vmatprep.subr.bf16.mxu0 %v645
        %1714 = vmatpush1.bf16.msra.mxu0 %v644
        %1715 = vmatprep.subr.bf16.mxu0 %v649
        %1716 = vmatpush1.bf16.msra.mxu0 %v648
        %1717 = vmatprep.subr.bf16.mxu0 %v653
        %1718 = vmatpush1.bf16.msra.mxu0 %v652
        %1719 = vmatprep.subr.bf16.mxu0 %v657
        %1720 = vmatpush1.bf16.msra.mxu0 %v656
        %1721 = vmatprep.subr.bf16.mxu0 %v661
        %1722 = vmatpush1.bf16.msra.mxu0 %v660
        %1723 = vmatprep.subr.bf16.mxu0 %v665
        %1724 = vmatpush1.bf16.msra.mxu0 %v664
        %1725 = vmatprep.subr.bf16.mxu0 %v669
        %1726 = vmatpush1.bf16.msra.mxu0 %v668
        %1727 = vmatprep.subr.bf16.mxu0 %v673
        %1728 = vmatpush1.bf16.msra.mxu0 %v672
        %1729 = vmatprep.subr.bf16.mxu0 %v677
        %1730 = vmatpush1.bf16.msra.mxu0 %v676
        %1731 = vmatprep.subr.bf16.mxu0 %v681
        %1732 = vmatpush1.bf16.msra.mxu0 %v680
        %1733 = vmatprep.subr.bf16.mxu0 %v685
        %1734 = vmatpush1.bf16.msra.mxu0 %v684
        %1735 = vmatprep.subr.bf16.mxu0 %v689
        %1736 = vmatpush1.bf16.msra.mxu0 %v688
        %1737 = vmatprep.subr.bf16.mxu0 %v693
        %1738 = vmatpush1.bf16.msra.mxu0 %v692
        %1739 = vmatprep.mubr.bf16.mxu0 %v1033
        %1740 = vmatmul.mubr.bf16.gmra.mrb[0].mxu0 %v1032
        %v1741 = vpop.f32.mrb[0].mxu0
        %v1742 = vadd.f32 %v1629, %v1741
        %v1743 = vpop.f32.mrb[0].mxu0
        %v1744 = vadd.f32 %v1631, %v1743
        %v1745 = vpop.f32.mrb[0].mxu0
        %v1746 = vadd.f32 %v1633, %v1745
        %v1747 = vpop.f32.mrb[0].mxu0
        %v1748 = vadd.f32 %v1635, %v1747
        %1749 = vmatprep.mubr.bf16.mxu0 %v1040
        %1750 = vmatmul.mubr.bf16.gmra.mrb[0].mxu0 %v1039
        %v1751 = vpop.f32.mrb[0].mxu0
        %v1752 = vadd.f32 %v1639, %v1751
        %v1753 = vpop.f32.mrb[0].mxu0
        %v1754 = vadd.f32 %v1641, %v1753
        %v1755 = vpop.f32.mrb[0].mxu0
        %v1756 = vadd.f32 %v1643, %v1755
        %v1757 = vpop.f32.mrb[0].mxu0
        %v1758 = vadd.f32 %v1645, %v1757
        %1759 = vmatprep.mubr.bf16.mxu0 %v1047
        %1760 = vmatmul.mubr.bf16.gmra.mrb[0].mxu0 %v1046
        %v1761 = vpop.f32.mrb[0].mxu0
        %v1762 = vadd.f32 %v1649, %v1761
        %v1763 = vpop.f32.mrb[0].mxu0
        %v1764 = vadd.f32 %v1651, %v1763
        %v1765 = vpop.f32.mrb[0].mxu0
        %v1766 = vadd.f32 %v1653, %v1765
        %v1767 = vpop.f32.mrb[0].mxu0
        %v1768 = vadd.f32 %v1655, %v1767
        %1769 = vmatprep.mubr.bf16.mxu0 %v1054
        %1770 = vmatmul.mubr.bf16.gmra.mrb[0].mxu0 %v1053
        %v1771 = vpop.f32.mrb[0].mxu0
        %v1772 = vadd.f32 %v1659, %v1771
        %v1773 = vpop.f32.mrb[0].mxu0
        %v1774 = vadd.f32 %v1661, %v1773
        %v1775 = vpop.f32.mrb[0].mxu0
        %v1776 = vadd.f32 %v1663, %v1775
        %v1777 = vpop.f32.mrb[0].mxu0
        %v1778 = vadd.f32 %v1665, %v1777
        %1779 = vmatprep.mubr.bf16.mxu0 %v1061
        %1780 = vmatmul.mubr.bf16.gmra.mrb[0].mxu0 %v1060
        %v1781 = vpop.f32.mrb[0].mxu0
        %v1782 = vadd.f32 %v1669, %v1781
        %v1783 = vpop.f32.mrb[0].mxu0
        %v1784 = vadd.f32 %v1671, %v1783
        %v1785 = vpop.f32.mrb[0].mxu0
        %v1786 = vadd.f32 %v1673, %v1785
        %v1787 = vpop.f32.mrb[0].mxu0
        %v1788 = vadd.f32 %v1675, %v1787
        %1789 = vmatprep.mubr.bf16.mxu0 %v1068
        %1790 = vmatmul.mubr.bf16.gmra.mrb[0].mxu0 %v1067
        %v1791 = vpop.f32.mrb[0].mxu0
        %v1792 = vadd.f32 %v1679, %v1791
        %v1793 = vpop.f32.mrb[0].mxu0
        %v1794 = vadd.f32 %v1681, %v1793
        %v1795 = vpop.f32.mrb[0].mxu0
        %v1796 = vadd.f32 %v1683, %v1795
        %v1797 = vpop.f32.mrb[0].mxu0
        %v1798 = vadd.f32 %v1685, %v1797
        %1799 = vmatprep.mubr.bf16.mxu0 %v1075
        %1800 = vmatmul.mubr.bf16.gmra.mrb[0].mxu0 %v1074
        %v1801 = vpop.f32.mrb[0].mxu0
        %v1802 = vadd.f32 %v1689, %v1801
        %v1803 = vpop.f32.mrb[0].mxu0
        %v1804 = vadd.f32 %v1691, %v1803
        %v1805 = vpop.f32.mrb[0].mxu0
        %v1806 = vadd.f32 %v1693, %v1805
        %v1807 = vpop.f32.mrb[0].mxu0
        %v1808 = vadd.f32 %v1695, %v1807
        %1809 = vmatprep.mubr.bf16.mxu0 %v1082
        %1810 = vmatmul.mubr.bf16.gmra.mrb[0].mxu0 %v1081
        %v1811 = vpop.f32.mrb[0].mxu0
        %v1812 = vadd.f32 %v1699, %v1811
        %v1813 = vpop.f32.mrb[0].mxu0
        %v1814 = vadd.f32 %v1701, %v1813
        %v1815 = vpop.f32.mrb[0].mxu0
        %v1816 = vadd.f32 %v1703, %v1815
        %v1817 = vpop.f32.mrb[0].mxu0
        %v1818 = vadd.f32 %v1705, %v1817
        %1819 = vdwg.mxu0
        %1820 = vmatprep.subr.bf16.mxu0 %v697
        %1821 = vmatpush1.bf16.msra.mxu0 %v696
        %1822 = vmatprep.subr.bf16.mxu0 %v701
        %1823 = vmatpush1.bf16.msra.mxu0 %v700
        %1824 = vmatprep.subr.bf16.mxu0 %v705
        %1825 = vmatpush1.bf16.msra.mxu0 %v704
        %1826 = vmatprep.subr.bf16.mxu0 %v709
        %1827 = vmatpush1.bf16.msra.mxu0 %v708
        %1828 = vmatprep.subr.bf16.mxu0 %v713
        %1829 = vmatpush1.bf16.msra.mxu0 %v712
        %1830 = vmatprep.subr.bf16.mxu0 %v717
        %1831 = vmatpush1.bf16.msra.mxu0 %v716
        %1832 = vmatprep.subr.bf16.mxu0 %v721
        %1833 = vmatpush1.bf16.msra.mxu0 %v720
        %1834 = vmatprep.subr.bf16.mxu0 %v725
        %1835 = vmatpush1.bf16.msra.mxu0 %v724
        %1836 = vmatprep.subr.bf16.mxu0 %v729
        %1837 = vmatpush1.bf16.msra.mxu0 %v728
        %1838 = vmatprep.subr.bf16.mxu0 %v733
        %1839 = vmatpush1.bf16.msra.mxu0 %v732
        %1840 = vmatprep.subr.bf16.mxu0 %v737
        %1841 = vmatpush1.bf16.msra.mxu0 %v736
        %1842 = vmatprep.subr.bf16.mxu0 %v741
        %1843 = vmatpush1.bf16.msra.mxu0 %v740
        %1844 = vmatprep.subr.bf16.mxu0 %v745
        %1845 = vmatpush1.bf16.msra.mxu0 %v744
        %1846 = vmatprep.subr.bf16.mxu0 %v749
        %1847 = vmatpush1.bf16.msra.mxu0 %v748
        %1848 = vmatprep.subr.bf16.mxu0 %v753
        %1849 = vmatpush1.bf16.msra.mxu0 %v752
        %1850 = vmatprep.subr.bf16.mxu0 %v757
        %1851 = vmatpush1.bf16.msra.mxu0 %v756
        %1852 = vmatprep.mubr.bf16.mxu0 %v1035
        %1853 = vmatmul.mubr.bf16.gmra.mrb[0].mxu0 %v1034
        %v1854 = vpop.f32.mrb[0].mxu0
        %v1855 = vadd.f32 %v1742, %v1854
        %v1856 = vpop.f32.mrb[0].mxu0
        %v1857 = vadd.f32 %v1744, %v1856
        %v1858 = vpop.f32.mrb[0].mxu0
        %v1859 = vadd.f32 %v1746, %v1858
        %v1860 = vpop.f32.mrb[0].mxu0
        %v1861 = vadd.f32 %v1748, %v1860
        %1862 = vmatprep.mubr.bf16.mxu0 %v1042
        %1863 = vmatmul.mubr.bf16.gmra.mrb[0].mxu0 %v1041
        %v1864 = vpop.f32.mrb[0].mxu0
        %v1865 = vadd.f32 %v1752, %v1864
        %v1866 = vpop.f32.mrb[0].mxu0
        %v1867 = vadd.f32 %v1754, %v1866
        %v1868 = vpop.f32.mrb[0].mxu0
        %v1869 = vadd.f32 %v1756, %v1868
        %v1870 = vpop.f32.mrb[0].mxu0
        %v1871 = vadd.f32 %v1758, %v1870
        %1872 = vmatprep.mubr.bf16.mxu0 %v1049
        %1873 = vmatmul.mubr.bf16.gmra.mrb[0].mxu0 %v1048
        %v1874 = vpop.f32.mrb[0].mxu0
        %v1875 = vadd.f32 %v1762, %v1874
        %v1876 = vpop.f32.mrb[0].mxu0
        %v1877 = vadd.f32 %v1764, %v1876
        %v1878 = vpop.f32.mrb[0].mxu0
        %v1879 = vadd.f32 %v1766, %v1878
        %v1880 = vpop.f32.mrb[0].mxu0
        %v1881 = vadd.f32 %v1768, %v1880
        %1882 = vmatprep.mubr.bf16.mxu0 %v1056
        %1883 = vmatmul.mubr.bf16.gmra.mrb[0].mxu0 %v1055
        %v1884 = vpop.f32.mrb[0].mxu0
        %v1885 = vadd.f32 %v1772, %v1884
        %v1886 = vpop.f32.mrb[0].mxu0
        %v1887 = vadd.f32 %v1774, %v1886
        %v1888 = vpop.f32.mrb[0].mxu0
        %v1889 = vadd.f32 %v1776, %v1888
        %v1890 = vpop.f32.mrb[0].mxu0
        %v1891 = vadd.f32 %v1778, %v1890
        %1892 = vmatprep.mubr.bf16.mxu0 %v1063
        %1893 = vmatmul.mubr.bf16.gmra.mrb[0].mxu0 %v1062
        %v1894 = vpop.f32.mrb[0].mxu0
        %v1895 = vadd.f32 %v1782, %v1894
        %v1896 = vpop.f32.mrb[0].mxu0
        %v1897 = vadd.f32 %v1784, %v1896
        %v1898 = vpop.f32.mrb[0].mxu0
        %v1899 = vadd.f32 %v1786, %v1898
        %v1900 = vpop.f32.mrb[0].mxu0
        %v1901 = vadd.f32 %v1788, %v1900
        %1902 = vmatprep.mubr.bf16.mxu0 %v1070
        %1903 = vmatmul.mubr.bf16.gmra.mrb[0].mxu0 %v1069
        %v1904 = vpop.f32.mrb[0].mxu0
        %v1905 = vadd.f32 %v1792, %v1904
        %v1906 = vpop.f32.mrb[0].mxu0
        %v1907 = vadd.f32 %v1794, %v1906
        %v1908 = vpop.f32.mrb[0].mxu0
        %v1909 = vadd.f32 %v1796, %v1908
        %v1910 = vpop.f32.mrb[0].mxu0
        %v1911 = vadd.f32 %v1798, %v1910
        %1912 = vmatprep.mubr.bf16.mxu0 %v1077
        %1913 = vmatmul.mubr.bf16.gmra.mrb[0].mxu0 %v1076
        %v1914 = vpop.f32.mrb[0].mxu0
        %v1915 = vadd.f32 %v1802, %v1914
        %v1916 = vpop.f32.mrb[0].mxu0
        %v1917 = vadd.f32 %v1804, %v1916
        %v1918 = vpop.f32.mrb[0].mxu0
        %v1919 = vadd.f32 %v1806, %v1918
        %v1920 = vpop.f32.mrb[0].mxu0
        %v1921 = vadd.f32 %v1808, %v1920
        %1922 = vmatprep.mubr.bf16.mxu0 %v1084
        %1923 = vmatmul.mubr.bf16.gmra.mrb[0].mxu0 %v1083
        %v1924 = vpop.f32.mrb[0].mxu0
        %v1925 = vadd.f32 %v1812, %v1924
        %v1926 = vpop.f32.mrb[0].mxu0
        %v1927 = vadd.f32 %v1814, %v1926
        %v1928 = vpop.f32.mrb[0].mxu0
        %v1929 = vadd.f32 %v1816, %v1928
        %v1930 = vpop.f32.mrb[0].mxu0
        %v1931 = vadd.f32 %v1818, %v1930
        %1932 = vdwg.mxu0
        %1933 = vmatprep.subr.bf16.mxu0 %v761
        %1934 = vmatpush1.bf16.msra.mxu0 %v760
        %1935 = vmatprep.subr.bf16.mxu0 %v765
        %1936 = vmatpush1.bf16.msra.mxu0 %v764
        %1937 = vmatprep.subr.bf16.mxu0 %v769
        %1938 = vmatpush1.bf16.msra.mxu0 %v768
        %1939 = vmatprep.subr.bf16.mxu0 %v773
        %1940 = vmatpush1.bf16.msra.mxu0 %v772
        %1941 = vmatprep.subr.bf16.mxu0 %v777
        %1942 = vmatpush1.bf16.msra.mxu0 %v776
        %1943 = vmatprep.subr.bf16.mxu0 %v781
        %1944 = vmatpush1.bf16.msra.mxu0 %v780
        %1945 = vmatprep.subr.bf16.mxu0 %v785
        %1946 = vmatpush1.bf16.msra.mxu0 %v784
        %1947 = vmatprep.subr.bf16.mxu0 %v789
        %1948 = vmatpush1.bf16.msra.mxu0 %v788
        %1949 = vmatprep.subr.bf16.mxu0 0
        %1950 = vmatpush1.bf16.msra.mxu0 0
        %1951 = vmatprep.subr.bf16.mxu0 0
        %1952 = vmatpush1.bf16.msra.mxu0 0
        %1953 = vmatprep.subr.bf16.mxu0 0
        %1954 = vmatpush1.bf16.msra.mxu0 0
        %1955 = vmatprep.subr.bf16.mxu0 0
        %1956 = vmatpush1.bf16.msra.mxu0 0
        %1957 = vmatprep.subr.bf16.mxu0 0
        %1958 = vmatpush1.bf16.msra.mxu0 0
        %1959 = vmatprep.subr.bf16.mxu0 0
        %1960 = vmatpush1.bf16.msra.mxu0 0
        %1961 = vmatprep.subr.bf16.mxu0 0
        %1962 = vmatpush1.bf16.msra.mxu0 0
        %1963 = vmatprep.subr.bf16.mxu0 0
        %1964 = vmatpush1.bf16.msra.mxu0 0
        %1965 = vmatprep.mubr.bf16.mxu0 0
        %1966 = vmatmul.mubr.bf16.gmra.mrb[0].mxu0 %v1036
        %v1967 = vpop.f32.mrb[0].mxu0
        %v1968 = vadd.f32 %v1855, %v1967
        %v1969 = vpop.f32.mrb[0].mxu0
        %v1970 = vadd.f32 %v1857, %v1969
        %v1971 = vpop.f32.mrb[0].mxu0
        %v1972 = vadd.f32 %v1859, %v1971
        %v1973 = vpop.f32.mrb[0].mxu0
        %v1974 = vadd.f32 %v1861, %v1973
        %1975 = vmatprep.mubr.bf16.mxu0 0
        %1976 = vmatmul.mubr.bf16.gmra.mrb[0].mxu0 %v1043
        %v1977 = vpop.f32.mrb[0].mxu0
        %v1978 = vadd.f32 %v1865, %v1977
        %v1979 = vpop.f32.mrb[0].mxu0
        %v1980 = vadd.f32 %v1867, %v1979
        %v1981 = vpop.f32.mrb[0].mxu0
        %v1982 = vadd.f32 %v1869, %v1981
        %v1983 = vpop.f32.mrb[0].mxu0
        %v1984 = vadd.f32 %v1871, %v1983
        %1985 = vmatprep.mubr.bf16.mxu0 0
        %1986 = vmatmul.mubr.bf16.gmra.mrb[0].mxu0 %v1050
        %v1987 = vpop.f32.mrb[0].mxu0
        %v1988 = vadd.f32 %v1875, %v1987
        %v1989 = vpop.f32.mrb[0].mxu0
        %v1990 = vadd.f32 %v1877, %v1989
        %v1991 = vpop.f32.mrb[0].mxu0
        %v1992 = vadd.f32 %v1879, %v1991
        %v1993 = vpop.f32.mrb[0].mxu0
        %v1994 = vadd.f32 %v1881, %v1993
        %1995 = vmatprep.mubr.bf16.mxu0 0
        %1996 = vmatmul.mubr.bf16.gmra.mrb[0].mxu0 %v1057
        %v1997 = vpop.f32.mrb[0].mxu0
        %v1998 = vadd.f32 %v1885, %v1997
        %v1999 = vpop.f32.mrb[0].mxu0
        %v2000 = vadd.f32 %v1887, %v1999
        %v2001 = vpop.f32.mrb[0].mxu0
        %v2002 = vadd.f32 %v1889, %v2001
        %v2003 = vpop.f32.mrb[0].mxu0
        %v2004 = vadd.f32 %v1891, %v2003
        %2005 = vmatprep.mubr.bf16.mxu0 0
        %2006 = vmatmul.mubr.bf16.gmra.mrb[0].mxu0 %v1064
        %v2007 = vpop.f32.mrb[0].mxu0
        %v2008 = vadd.f32 %v1895, %v2007
        %v2009 = vpop.f32.mrb[0].mxu0
        %v2010 = vadd.f32 %v1897, %v2009
        %v2011 = vpop.f32.mrb[0].mxu0
        %v2012 = vadd.f32 %v1899, %v2011
        %v2013 = vpop.f32.mrb[0].mxu0
        %v2014 = vadd.f32 %v1901, %v2013
        %2015 = vmatprep.mubr.bf16.mxu0 0
        %2016 = vmatmul.mubr.bf16.gmra.mrb[0].mxu0 %v1071
        %v2017 = vpop.f32.mrb[0].mxu0
        %v2018 = vadd.f32 %v1905, %v2017
        %v2019 = vpop.f32.mrb[0].mxu0
        %v2020 = vadd.f32 %v1907, %v2019
        %v2021 = vpop.f32.mrb[0].mxu0
        %v2022 = vadd.f32 %v1909, %v2021
        %v2023 = vpop.f32.mrb[0].mxu0
        %v2024 = vadd.f32 %v1911, %v2023
        %2025 = vmatprep.mubr.bf16.mxu0 0
        %2026 = vmatmul.mubr.bf16.gmra.mrb[0].mxu0 %v1078
        %v2027 = vpop.f32.mrb[0].mxu0
        %v2028 = vadd.f32 %v1915, %v2027
        %v2029 = vpop.f32.mrb[0].mxu0
        %v2030 = vadd.f32 %v1917, %v2029
        %v2031 = vpop.f32.mrb[0].mxu0
        %v2032 = vadd.f32 %v1919, %v2031
        %v2033 = vpop.f32.mrb[0].mxu0
        %v2034 = vadd.f32 %v1921, %v2033
        %2035 = vmatprep.mubr.bf16.mxu0 0
        %2036 = vmatmul.mubr.bf16.gmra.mrb[0].mxu0 %v1085
        %v2037 = vpop.f32.mrb[0].mxu0
        %v2038 = vadd.f32 %v1925, %v2037
        %v2039 = vpop.f32.mrb[0].mxu0
        %v2040 = vadd.f32 %v1927, %v2039
        %v2041 = vpop.f32.mrb[0].mxu0
        %v2042 = vadd.f32 %v1929, %v2041
        %v2043 = vpop.f32.mrb[0].mxu0
        %v2044 = vadd.f32 %v1931, %v2043
        %2045 = vdwg.mxu0
        %v2046 = vadd.f32 %v1516, %v1520
        %v2047 = vadd.f32 %v2046, %v1526
        %v2048 = vadd.f32 %v2047, %v1530
        %v2049 = vadd.f32 %v2048, %v1536
        %v2050 = vadd.f32 %v2049, %v1540
        %v2051 = vadd.f32 %v2050, %v1546
        %v2052 = vadd.f32 %v2051, %v1550
        %v2053 = vadd.f32 %v2052, %v1556
        %v2054 = vadd.f32 %v2053, %v1560
        %v2055 = vadd.f32 %v2054, %v1566
        %v2056 = vadd.f32 %v2055, %v1570
        %v2057 = vadd.f32 %v2056, %v1576
        %v2058 = vadd.f32 %v2057, %v1580
        %v2059 = vadd.f32 %v2058, %v1586
        %v2060 = vadd.f32 %v2059, %v1590
        %v2061 = vrot.slane %v2060, 4
        %v2062 = vadd.f32 %v2060, %v2061
        %v2063 = vrot.slane %v2062, 2
        %v2064 = vadd.f32 %v2062, %v2063
        %v2065 = vrot.slane %v2064, 1
        %v2066 = vadd.f32 %v2064, %v2065
        %v2067 = vadd.f32 %v1518, %v1522
        %v2068 = vadd.f32 %v2067, %v1528
        %v2069 = vadd.f32 %v2068, %v1532
        %v2070 = vadd.f32 %v2069, %v1538
        %v2071 = vadd.f32 %v2070, %v1542
        %v2072 = vadd.f32 %v2071, %v1548
        %v2073 = vadd.f32 %v2072, %v1552
        %v2074 = vadd.f32 %v2073, %v1558
        %v2075 = vadd.f32 %v2074, %v1562
        %v2076 = vadd.f32 %v2075, %v1568
        %v2077 = vadd.f32 %v2076, %v1572
        %v2078 = vadd.f32 %v2077, %v1578
        %v2079 = vadd.f32 %v2078, %v1582
        %v2080 = vadd.f32 %v2079, %v1588
        %v2081 = vadd.f32 %v2080, %v1592
        %v2082 = vrot.slane %v2081, 4
        %v2083 = vadd.f32 %v2081, %v2082
        %v2084 = vrot.slane %v2083, 2
        %v2085 = vadd.f32 %v2083, %v2084
        %v2086 = vrot.slane %v2085, 1
        %v2087 = vadd.f32 %v2085, %v2086
        %v2088 = vadd.f32 %v1968, %v1972
        %v2089 = vadd.f32 %v2088, %v1978
        %v2090 = vadd.f32 %v2089, %v1982
        %v2091 = vadd.f32 %v2090, %v1988
        %v2092 = vadd.f32 %v2091, %v1992
        %v2093 = vadd.f32 %v2092, %v1998
        %v2094 = vadd.f32 %v2093, %v2002
        %v2095 = vadd.f32 %v2094, %v2008
        %v2096 = vadd.f32 %v2095, %v2012
        %v2097 = vadd.f32 %v2096, %v2018
        %v2098 = vadd.f32 %v2097, %v2022
        %v2099 = vadd.f32 %v2098, %v2028
        %v2100 = vadd.f32 %v2099, %v2032
        %v2101 = vadd.f32 %v2100, %v2038
        %v2102 = vadd.f32 %v2101, %v2042
        %v2103 = vrot.slane %v2102, 4
        %v2104 = vadd.f32 %v2102, %v2103
        %v2105 = vrot.slane %v2104, 2
        %v2106 = vadd.f32 %v2104, %v2105
        %v2107 = vrot.slane %v2106, 1
        %v2108 = vadd.f32 %v2106, %v2107
        %v2109 = vadd.f32 %v1970, %v1974
        %v2110 = vadd.f32 %v2109, %v1980
        %v2111 = vadd.f32 %v2110, %v1984
        %v2112 = vadd.f32 %v2111, %v1990
        %v2113 = vadd.f32 %v2112, %v1994
        %v2114 = vadd.f32 %v2113, %v2000
        %v2115 = vadd.f32 %v2114, %v2004
        %v2116 = vadd.f32 %v2115, %v2010
        %v2117 = vadd.f32 %v2116, %v2014
        %v2118 = vadd.f32 %v2117, %v2020
        %v2119 = vadd.f32 %v2118, %v2024
        %v2120 = vadd.f32 %v2119, %v2030
        %v2121 = vadd.f32 %v2120, %v2034
        %v2122 = vadd.f32 %v2121, %v2040
        %v2123 = vadd.f32 %v2122, %v2044
        %v2124 = vrot.slane %v2123, 4
        %v2125 = vadd.f32 %v2123, %v2124
        %v2126 = vrot.slane %v2125, 2
        %v2127 = vadd.f32 %v2125, %v2126
        %v2128 = vrot.slane %v2127, 1
        %v2129 = vadd.f32 %v2127, %v2128
        %v2130 = vmul.f32 %v2066, 0.0078125
        %v2131 = vmul.f32 %v2087, 0.0078125
        %v2132 = vmul.f32 %v2108, 0.0078125
        %v2133 = vmul.f32 %v2129, 0.0078125
        %v2134 = vmul.f32 %v1516, %v1516
        %v2135 = vmul.f32 %v1518, %v1518
        %v2136 = vmul.f32 %v1968, %v1968
        %v2137 = vmul.f32 %v1970, %v1970
        %v2138 = vmul.f32 %v1520, %v1520
        %v2139 = vmul.f32 %v1522, %v1522
        %v2140 = vmul.f32 %v1972, %v1972
        %v2141 = vmul.f32 %v1974, %v1974
        %v2142 = vmul.f32 %v1526, %v1526
        %v2143 = vmul.f32 %v1528, %v1528
        %v2144 = vmul.f32 %v1978, %v1978
        %v2145 = vmul.f32 %v1980, %v1980
        %v2146 = vmul.f32 %v1530, %v1530
        %v2147 = vmul.f32 %v1532, %v1532
        %v2148 = vmul.f32 %v1982, %v1982
        %v2149 = vmul.f32 %v1984, %v1984
        %v2150 = vmul.f32 %v1536, %v1536
        %v2151 = vmul.f32 %v1538, %v1538
        %v2152 = vmul.f32 %v1988, %v1988
        %v2153 = vmul.f32 %v1990, %v1990
        %v2154 = vmul.f32 %v1540, %v1540
        %v2155 = vmul.f32 %v1542, %v1542
        %v2156 = vmul.f32 %v1992, %v1992
        %v2157 = vmul.f32 %v1994, %v1994
        %v2158 = vmul.f32 %v1546, %v1546
        %v2159 = vmul.f32 %v1548, %v1548
        %v2160 = vmul.f32 %v1998, %v1998
        %v2161 = vmul.f32 %v2000, %v2000
        %v2162 = vmul.f32 %v1550, %v1550
        %v2163 = vmul.f32 %v1552, %v1552
        %v2164 = vmul.f32 %v2002, %v2002
        %v2165 = vmul.f32 %v2004, %v2004
        %v2166 = vmul.f32 %v1556, %v1556
        %v2167 = vmul.f32 %v1558, %v1558
        %v2168 = vmul.f32 %v2008, %v2008
        %v2169 = vmul.f32 %v2010, %v2010
        %v2170 = vmul.f32 %v1560, %v1560
        %v2171 = vmul.f32 %v1562, %v1562
        %v2172 = vmul.f32 %v2012, %v2012
        %v2173 = vmul.f32 %v2014, %v2014
        %v2174 = vmul.f32 %v1566, %v1566
        %v2175 = vmul.f32 %v1568, %v1568
        %v2176 = vmul.f32 %v2018, %v2018
        %v2177 = vmul.f32 %v2020, %v2020
        %v2178 = vmul.f32 %v1570, %v1570
        %v2179 = vmul.f32 %v1572, %v1572
        %v2180 = vmul.f32 %v2022, %v2022
        %v2181 = vmul.f32 %v2024, %v2024
        %v2182 = vmul.f32 %v1576, %v1576
        %v2183 = vmul.f32 %v1578, %v1578
        %v2184 = vmul.f32 %v2028, %v2028
        %v2185 = vmul.f32 %v2030, %v2030
        %v2186 = vmul.f32 %v1580, %v1580
        %v2187 = vmul.f32 %v1582, %v1582
        %v2188 = vmul.f32 %v2032, %v2032
        %v2189 = vmul.f32 %v2034, %v2034
        %v2190 = vmul.f32 %v1586, %v1586
        %v2191 = vmul.f32 %v1588, %v1588
        %v2192 = vmul.f32 %v2038, %v2038
        %v2193 = vmul.f32 %v2040, %v2040
        %v2194 = vmul.f32 %v1590, %v1590
        %v2195 = vmul.f32 %v1592, %v1592
        %v2196 = vmul.f32 %v2042, %v2042
        %v2197 = vmul.f32 %v2044, %v2044
        %v2198 = vadd.f32 %v2134, %v2138
        %v2199 = vadd.f32 %v2198, %v2142
        %v2200 = vadd.f32 %v2199, %v2146
        %v2201 = vadd.f32 %v2200, %v2150
        %v2202 = vadd.f32 %v2201, %v2154
        %v2203 = vadd.f32 %v2202, %v2158
        %v2204 = vadd.f32 %v2203, %v2162
        %v2205 = vadd.f32 %v2204, %v2166
        %v2206 = vadd.f32 %v2205, %v2170
        %v2207 = vadd.f32 %v2206, %v2174
        %v2208 = vadd.f32 %v2207, %v2178
        %v2209 = vadd.f32 %v2208, %v2182
        %v2210 = vadd.f32 %v2209, %v2186
        %v2211 = vadd.f32 %v2210, %v2190
        %v2212 = vadd.f32 %v2211, %v2194
        %v2213 = vrot.slane %v2212, 4
        %v2214 = vadd.f32 %v2212, %v2213
        %v2215 = vrot.slane %v2214, 2
        %v2216 = vadd.f32 %v2214, %v2215
        %v2217 = vrot.slane %v2216, 1
        %v2218 = vadd.f32 %v2216, %v2217
        %v2219 = vadd.f32 %v2135, %v2139
        %v2220 = vadd.f32 %v2219, %v2143
        %v2221 = vadd.f32 %v2220, %v2147
        %v2222 = vadd.f32 %v2221, %v2151
        %v2223 = vadd.f32 %v2222, %v2155
        %v2224 = vadd.f32 %v2223, %v2159
        %v2225 = vadd.f32 %v2224, %v2163
        %v2226 = vadd.f32 %v2225, %v2167
        %v2227 = vadd.f32 %v2226, %v2171
        %v2228 = vadd.f32 %v2227, %v2175
        %v2229 = vadd.f32 %v2228, %v2179
        %v2230 = vadd.f32 %v2229, %v2183
        %v2231 = vadd.f32 %v2230, %v2187
        %v2232 = vadd.f32 %v2231, %v2191
        %v2233 = vadd.f32 %v2232, %v2195
        %v2234 = vrot.slane %v2233, 4
        %v2235 = vadd.f32 %v2233, %v2234
        %v2236 = vrot.slane %v2235, 2
        %v2237 = vadd.f32 %v2235, %v2236
        %v2238 = vrot.slane %v2237, 1
        %v2239 = vadd.f32 %v2237, %v2238
        %v2240 = vadd.f32 %v2136, %v2140
        %v2241 = vadd.f32 %v2240, %v2144
        %v2242 = vadd.f32 %v2241, %v2148
        %v2243 = vadd.f32 %v2242, %v2152
        %v2244 = vadd.f32 %v2243, %v2156
        %v2245 = vadd.f32 %v2244, %v2160
        %v2246 = vadd.f32 %v2245, %v2164
        %v2247 = vadd.f32 %v2246, %v2168
        %v2248 = vadd.f32 %v2247, %v2172
        %v2249 = vadd.f32 %v2248, %v2176
        %v2250 = vadd.f32 %v2249, %v2180
        %v2251 = vadd.f32 %v2250, %v2184
        %v2252 = vadd.f32 %v2251, %v2188
        %v2253 = vadd.f32 %v2252, %v2192
        %v2254 = vadd.f32 %v2253, %v2196
        %v2255 = vrot.slane %v2254, 4
        %v2256 = vadd.f32 %v2254, %v2255
        %v2257 = vrot.slane %v2256, 2
        %v2258 = vadd.f32 %v2256, %v2257
        %v2259 = vrot.slane %v2258, 1
        %v2260 = vadd.f32 %v2258, %v2259
        %v2261 = vadd.f32 %v2137, %v2141
        %v2262 = vadd.f32 %v2261, %v2145
        %v2263 = vadd.f32 %v2262, %v2149
        %v2264 = vadd.f32 %v2263, %v2153
        %v2265 = vadd.f32 %v2264, %v2157
        %v2266 = vadd.f32 %v2265, %v2161
        %v2267 = vadd.f32 %v2266, %v2165
        %v2268 = vadd.f32 %v2267, %v2169
        %v2269 = vadd.f32 %v2268, %v2173
        %v2270 = vadd.f32 %v2269, %v2177
        %v2271 = vadd.f32 %v2270, %v2181
        %v2272 = vadd.f32 %v2271, %v2185
        %v2273 = vadd.f32 %v2272, %v2189
        %v2274 = vadd.f32 %v2273, %v2193
        %v2275 = vadd.f32 %v2274, %v2197
        %v2276 = vrot.slane %v2275, 4
        %v2277 = vadd.f32 %v2275, %v2276
        %v2278 = vrot.slane %v2277, 2
        %v2279 = vadd.f32 %v2277, %v2278
        %v2280 = vrot.slane %v2279, 1
        %v2281 = vadd.f32 %v2279, %v2280
        %v2282 = vmul.f32 %v2218, 0.0078125
        %v2283 = vmul.f32 %v2239, 0.0078125
        %v2284 = vmul.f32 %v2260, 0.0078125
        %v2285 = vmul.f32 %v2281, 0.0078125
        %v2286 = vmul.f32 %v2130, %v2130
        %v2287 = vmul.f32 %v2131, %v2131
        %v2288 = vmul.f32 %v2132, %v2132
        %v2289 = vmul.f32 %v2133, %v2133
        %v2290 = vsub.f32 %v2282, %v2286
        %v2291 = vsub.f32 %v2283, %v2287
        %v2292 = vsub.f32 %v2284, %v2288
        %v2293 = vsub.f32 %v2285, %v2289
        %v2294 = vld [vmem:[%s371] sm:$0xf]
        %v2295 = vld [vmem:[%s446] sm:$0xf]
        %v2300 = vcombine.low %v2290, %v2291
        %v2301 = vcombine.low %v2292, %v2293
        %v2303 = vunpack.c.l.s4 1966171168
        %v2304 = vunpack.c.0.s8 %v2303
        %v2305 = vlaneseq
        %v2306 = vshrl.u32 %v2305, 7
        %v2307 = vsub.s32 %v2304, %v2306
        %v2308 = vrot.slane %v2300, %v2307
        %v2310 = vunpack.c.l.s4 1966171168
        %v2311 = vunpack.c.0.s8 %v2310
        %v2312 = vlaneseq
        %v2313 = vshrl.u32 %v2312, 7
        %v2314 = vsub.s32 %v2311, %v2313
        %v2315 = vrot.slane %v2301, %v2314
        %v2316 = vcombine.low %v2308, %v2315
        %v2318 = vunpack.c.l.s4 1966171168
        %v2319 = vunpack.c.0.s8 %v2318
        %v2320 = vlaneseq
        %v2321 = vshrl.u32 %v2320, 7
        %v2322 = vsub.s32 %v2319, %v2321
        %v2323 = vrot.slane %v2316, %v2322
        %v2325 = vmul.f32 %v2295, %v2323
        %v2326 = vadd.f32 %v2325, 1e-05
        %v2327 = vrsqrt.pop %v2326
        %v2328 = vmul.f32 %v2294, %v2327
        %v2329 = vld [vmem:[%s380] sm:$0xf]
        %v2331 = vlaneseq
        %v2332 = vshrl.u32 %v2331, 7
        %v2333 = vsub.s32 0, %v2332
        %v2334 = vrot.slane %v2328, %v2333
        %v2335 = vlaneseq
        %v2336 = vshrl.u32 %v2335, 7
        %v2337 = vsub.s32 1, %v2336
        %v2338 = vrot.slane %v2328, %v2337
        %v2339 = vlaneseq
        %v2340 = vshrl.u32 %v2339, 7
        %v2341 = vsub.s32 2, %v2340
        %v2342 = vrot.slane %v2328, %v2341
        %v2343 = vlaneseq
        %v2344 = vshrl.u32 %v2343, 7
        %v2345 = vsub.s32 3, %v2344
        %v2346 = vrot.slane %v2328, %v2345
        %v2351 = vmul.f32 %v2130, %v2334
        %v2352 = vmul.f32 %v2131, %v2338
        %v2353 = vmul.f32 %v2132, %v2342
        %v2354 = vmul.f32 %v2133, %v2346
        %v2359 = vcombine.low %v2351, %v2352
        %v2360 = vcombine.low %v2353, %v2354
        %v2362 = vunpack.c.l.s4 1966171168
        %v2363 = vunpack.c.0.s8 %v2362
        %v2364 = vlaneseq
        %v2365 = vshrl.u32 %v2364, 7
        %v2366 = vsub.s32 %v2363, %v2365
        %v2367 = vrot.slane %v2359, %v2366
        %v2369 = vunpack.c.l.s4 1966171168
        %v2370 = vunpack.c.0.s8 %v2369
        %v2371 = vlaneseq
        %v2372 = vshrl.u32 %v2371, 7
        %v2373 = vsub.s32 %v2370, %v2372
        %v2374 = vrot.slane %v2360, %v2373
        %v2375 = vcombine.low %v2367, %v2374
        %v2377 = vunpack.c.l.s4 1966171168
        %v2378 = vunpack.c.0.s8 %v2377
        %v2379 = vlaneseq
        %v2380 = vshrl.u32 %v2379, 7
        %v2381 = vsub.s32 %v2378, %v2380
        %v2382 = vrot.slane %v2375, %v2381
        %v2384 = vsub.f32 %v2329, %v2382
        %v2385 = vmul.f32 %v1516, %v2334
        %v2386 = vmul.f32 %v1518, %v2338
        %v2387 = vmul.f32 %v1968, %v2342
        %v2388 = vmul.f32 %v1970, %v2346
        %v2389 = vmul.f32 %v1520, %v2334
        %v2390 = vmul.f32 %v1522, %v2338
        %v2391 = vmul.f32 %v1972, %v2342
        %v2392 = vmul.f32 %v1974, %v2346
        %v2393 = vmul.f32 %v1526, %v2334
        %v2394 = vmul.f32 %v1528, %v2338
        %v2395 = vmul.f32 %v1978, %v2342
        %v2396 = vmul.f32 %v1980, %v2346
        %v2397 = vmul.f32 %v1530, %v2334
        %v2398 = vmul.f32 %v1532, %v2338
        %v2399 = vmul.f32 %v1982, %v2342
        %v2400 = vmul.f32 %v1984, %v2346
        %v2401 = vmul.f32 %v1536, %v2334
        %v2402 = vmul.f32 %v1538, %v2338
        %v2403 = vmul.f32 %v1988, %v2342
        %v2404 = vmul.f32 %v1990, %v2346
        %v2405 = vmul.f32 %v1540, %v2334
        %v2406 = vmul.f32 %v1542, %v2338
        %v2407 = vmul.f32 %v1992, %v2342
        %v2408 = vmul.f32 %v1994, %v2346
        %v2409 = vmul.f32 %v1546, %v2334
        %v2410 = vmul.f32 %v1548, %v2338
        %v2411 = vmul.f32 %v1998, %v2342
        %v2412 = vmul.f32 %v2000, %v2346
        %v2413 = vmul.f32 %v1550, %v2334
        %v2414 = vmul.f32 %v1552, %v2338
        %v2415 = vmul.f32 %v2002, %v2342
        %v2416 = vmul.f32 %v2004, %v2346
        %v2417 = vmul.f32 %v1556, %v2334
        %v2418 = vmul.f32 %v1558, %v2338
        %v2419 = vmul.f32 %v2008, %v2342
        %v2420 = vmul.f32 %v2010, %v2346
        %v2421 = vmul.f32 %v1560, %v2334
        %v2422 = vmul.f32 %v1562, %v2338
        %v2423 = vmul.f32 %v2012, %v2342
        %v2424 = vmul.f32 %v2014, %v2346
        %v2425 = vmul.f32 %v1566, %v2334
        %v2426 = vmul.f32 %v1568, %v2338
        %v2427 = vmul.f32 %v2018, %v2342
        %v2428 = vmul.f32 %v2020, %v2346
        %v2429 = vmul.f32 %v1570, %v2334
        %v2430 = vmul.f32 %v1572, %v2338
        %v2431 = vmul.f32 %v2022, %v2342
        %v2432 = vmul.f32 %v2024, %v2346
        %v2433 = vmul.f32 %v1576, %v2334
        %v2434 = vmul.f32 %v1578, %v2338
        %v2435 = vmul.f32 %v2028, %v2342
        %v2436 = vmul.f32 %v2030, %v2346
        %v2437 = vmul.f32 %v1580, %v2334
        %v2438 = vmul.f32 %v1582, %v2338
        %v2439 = vmul.f32 %v2032, %v2342
        %v2440 = vmul.f32 %v2034, %v2346
        %v2441 = vmul.f32 %v1586, %v2334
        %v2442 = vmul.f32 %v1588, %v2338
        %v2443 = vmul.f32 %v2038, %v2342
        %v2444 = vmul.f32 %v2040, %v2346
        %v2445 = vmul.f32 %v1590, %v2334
        %v2446 = vmul.f32 %v1592, %v2338
        %v2447 = vmul.f32 %v2042, %v2342
        %v2448 = vmul.f32 %v2044, %v2346
        %v2450 = vlaneseq
        %v2451 = vshrl.u32 %v2450, 7
        %v2452 = vsub.s32 0, %v2451
        %v2453 = vrot.slane %v2384, %v2452
        %v2454 = vlaneseq
        %v2455 = vshrl.u32 %v2454, 7
        %v2456 = vsub.s32 1, %v2455
        %v2457 = vrot.slane %v2384, %v2456
        %v2458 = vlaneseq
        %v2459 = vshrl.u32 %v2458, 7
        %v2460 = vsub.s32 2, %v2459
        %v2461 = vrot.slane %v2384, %v2460
        %v2462 = vlaneseq
        %v2463 = vshrl.u32 %v2462, 7
        %v2464 = vsub.s32 3, %v2463
        %v2465 = vrot.slane %v2384, %v2464
        %v2470 = vadd.f32 %v2385, %v2453
        %v2471 = vadd.f32 %v2386, %v2457
        %v2472 = vadd.f32 %v2387, %v2461
        %v2473 = vadd.f32 %v2388, %v2465
        %v2474 = vadd.f32 %v2389, %v2453
        %v2475 = vadd.f32 %v2390, %v2457
        %v2476 = vadd.f32 %v2391, %v2461
        %v2477 = vadd.f32 %v2392, %v2465
        %v2478 = vadd.f32 %v2393, %v2453
        %v2479 = vadd.f32 %v2394, %v2457
        %v2480 = vadd.f32 %v2395, %v2461
        %v2481 = vadd.f32 %v2396, %v2465
        %v2482 = vadd.f32 %v2397, %v2453
        %v2483 = vadd.f32 %v2398, %v2457
        %v2484 = vadd.f32 %v2399, %v2461
        %v2485 = vadd.f32 %v2400, %v2465
        %v2486 = vadd.f32 %v2401, %v2453
        %v2487 = vadd.f32 %v2402, %v2457
        %v2488 = vadd.f32 %v2403, %v2461
        %v2489 = vadd.f32 %v2404, %v2465
        %v2490 = vadd.f32 %v2405, %v2453
        %v2491 = vadd.f32 %v2406, %v2457
        %v2492 = vadd.f32 %v2407, %v2461
        %v2493 = vadd.f32 %v2408, %v2465
        %v2494 = vadd.f32 %v2409, %v2453
        %v2495 = vadd.f32 %v2410, %v2457
        %v2496 = vadd.f32 %v2411, %v2461
        %v2497 = vadd.f32 %v2412, %v2465
        %v2498 = vadd.f32 %v2413, %v2453
        %v2499 = vadd.f32 %v2414, %v2457
        %v2500 = vadd.f32 %v2415, %v2461
        %v2501 = vadd.f32 %v2416, %v2465
        %v2502 = vadd.f32 %v2417, %v2453
        %v2503 = vadd.f32 %v2418, %v2457
        %v2504 = vadd.f32 %v2419, %v2461
        %v2505 = vadd.f32 %v2420, %v2465
        %v2506 = vadd.f32 %v2421, %v2453
        %v2507 = vadd.f32 %v2422, %v2457
        %v2508 = vadd.f32 %v2423, %v2461
        %v2509 = vadd.f32 %v2424, %v2465
        %v2510 = vadd.f32 %v2425, %v2453
        %v2511 = vadd.f32 %v2426, %v2457
        %v2512 = vadd.f32 %v2427, %v2461
        %v2513 = vadd.f32 %v2428, %v2465
        %v2514 = vadd.f32 %v2429, %v2453
        %v2515 = vadd.f32 %v2430, %v2457
        %v2516 = vadd.f32 %v2431, %v2461
        %v2517 = vadd.f32 %v2432, %v2465
        %v2518 = vadd.f32 %v2433, %v2453
        %v2519 = vadd.f32 %v2434, %v2457
        %v2520 = vadd.f32 %v2435, %v2461
        %v2521 = vadd.f32 %v2436, %v2465
        %v2522 = vadd.f32 %v2437, %v2453
        %v2523 = vadd.f32 %v2438, %v2457
        %v2524 = vadd.f32 %v2439, %v2461
        %v2525 = vadd.f32 %v2440, %v2465
        %v2526 = vadd.f32 %v2441, %v2453
        %v2527 = vadd.f32 %v2442, %v2457
        %v2528 = vadd.f32 %v2443, %v2461
        %v2529 = vadd.f32 %v2444, %v2465
        %v2530 = vadd.f32 %v2445, %v2453
        %v2531 = vadd.f32 %v2446, %v2457
        %v2532 = vadd.f32 %v2447, %v2461
        %v2533 = vadd.f32 %v2448, %v2465
        %v2534 = vmax.f32 %v2470, 0.0
        %v2535 = vmax.f32 %v2471, 0.0
        %v2536 = vmax.f32 %v2472, 0.0
        %v2537 = vmax.f32 %v2473, 0.0
        %v2538 = vmax.f32 %v2474, 0.0
        %v2539 = vmax.f32 %v2475, 0.0
        %v2540 = vmax.f32 %v2476, 0.0
        %v2541 = vmax.f32 %v2477, 0.0
        %v2542 = vmax.f32 %v2478, 0.0
        %v2543 = vmax.f32 %v2479, 0.0
        %v2544 = vmax.f32 %v2480, 0.0
        %v2545 = vmax.f32 %v2481, 0.0
        %v2546 = vmax.f32 %v2482, 0.0
        %v2547 = vmax.f32 %v2483, 0.0
        %v2548 = vmax.f32 %v2484, 0.0
        %v2549 = vmax.f32 %v2485, 0.0
        %v2550 = vmax.f32 %v2486, 0.0
        %v2551 = vmax.f32 %v2487, 0.0
        %v2552 = vmax.f32 %v2488, 0.0
        %v2553 = vmax.f32 %v2489, 0.0
        %v2554 = vmax.f32 %v2490, 0.0
        %v2555 = vmax.f32 %v2491, 0.0
        %v2556 = vmax.f32 %v2492, 0.0
        %v2557 = vmax.f32 %v2493, 0.0
        %v2558 = vmax.f32 %v2494, 0.0
        %v2559 = vmax.f32 %v2495, 0.0
        %v2560 = vmax.f32 %v2496, 0.0
        %v2561 = vmax.f32 %v2497, 0.0
        %v2562 = vmax.f32 %v2498, 0.0
        %v2563 = vmax.f32 %v2499, 0.0
        %v2564 = vmax.f32 %v2500, 0.0
        %v2565 = vmax.f32 %v2501, 0.0
        %v2566 = vmax.f32 %v2502, 0.0
        %v2567 = vmax.f32 %v2503, 0.0
        %v2568 = vmax.f32 %v2504, 0.0
        %v2569 = vmax.f32 %v2505, 0.0
        %v2570 = vmax.f32 %v2506, 0.0
        %v2571 = vmax.f32 %v2507, 0.0
        %v2572 = vmax.f32 %v2508, 0.0
        %v2573 = vmax.f32 %v2509, 0.0
        %v2574 = vmax.f32 %v2510, 0.0
        %v2575 = vmax.f32 %v2511, 0.0
        %v2576 = vmax.f32 %v2512, 0.0
        %v2577 = vmax.f32 %v2513, 0.0
        %v2578 = vmax.f32 %v2514, 0.0
        %v2579 = vmax.f32 %v2515, 0.0
        %v2580 = vmax.f32 %v2516, 0.0
        %v2581 = vmax.f32 %v2517, 0.0
        %v2582 = vmax.f32 %v2518, 0.0
        %v2583 = vmax.f32 %v2519, 0.0
        %v2584 = vmax.f32 %v2520, 0.0
        %v2585 = vmax.f32 %v2521, 0.0
        %v2586 = vmax.f32 %v2522, 0.0
        %v2587 = vmax.f32 %v2523, 0.0
        %v2588 = vmax.f32 %v2524, 0.0
        %v2589 = vmax.f32 %v2525, 0.0
        %v2590 = vmax.f32 %v2526, 0.0
        %v2591 = vmax.f32 %v2527, 0.0
        %v2592 = vmax.f32 %v2528, 0.0
        %v2593 = vmax.f32 %v2529, 0.0
        %v2594 = vmax.f32 %v2530, 0.0
        %v2595 = vmax.f32 %v2531, 0.0
        %v2596 = vmax.f32 %v2532, 0.0
        %v2597 = vmax.f32 %v2533, 0.0
        %v2598 = vpack.c.bf16 %v2538, %v2534
        %v2599 = vpack.c.bf16 %v2539, %v2535
        %v2600 = vpack.c.bf16 %v2540, %v2536
        %v2601 = vpack.c.bf16 %v2541, %v2537
        %v2602 = vpack.c.bf16 %v2546, %v2542
        %v2603 = vpack.c.bf16 %v2547, %v2543
        %v2604 = vpack.c.bf16 %v2548, %v2544
        %v2605 = vpack.c.bf16 %v2549, %v2545
        %v2606 = vpack.c.bf16 %v2554, %v2550
        %v2607 = vpack.c.bf16 %v2555, %v2551
        %v2608 = vpack.c.bf16 %v2556, %v2552
        %v2609 = vpack.c.bf16 %v2557, %v2553
        %v2610 = vpack.c.bf16 %v2562, %v2558
        %v2611 = vpack.c.bf16 %v2563, %v2559
        %v2612 = vpack.c.bf16 %v2564, %v2560
        %v2613 = vpack.c.bf16 %v2565, %v2561
        %v2614 = vpack.c.bf16 %v2570, %v2566
        %v2615 = vpack.c.bf16 %v2571, %v2567
        %v2616 = vpack.c.bf16 %v2572, %v2568
        %v2617 = vpack.c.bf16 %v2573, %v2569
        %v2618 = vpack.c.bf16 %v2578, %v2574
        %v2619 = vpack.c.bf16 %v2579, %v2575
        %v2620 = vpack.c.bf16 %v2580, %v2576
        %v2621 = vpack.c.bf16 %v2581, %v2577
        %v2622 = vpack.c.bf16 %v2586, %v2582
        %v2623 = vpack.c.bf16 %v2587, %v2583
        %v2624 = vpack.c.bf16 %v2588, %v2584
        %v2625 = vpack.c.bf16 %v2589, %v2585
        %v2626 = vpack.c.bf16 %v2594, %v2590
        %v2627 = vpack.c.bf16 %v2595, %v2591
        %v2628 = vpack.c.bf16 %v2596, %v2592
        %v2629 = vpack.c.bf16 %v2597, %v2593
        %v2630 = vld [vmem:[%s389] sm:$0xf]
        %v2631 = vld [vmem:[%s389 + $0x4] sm:$0xf]
        %v2632 = vld [vmem:[%s389 + $0x8] sm:$0xf]
        %v2633 = vld [vmem:[%s389 + $0xc] sm:$0xf]
        %v2634 = vld [vmem:[%s389 + $0x10] sm:$0xf]
        %v2635 = vld [vmem:[%s389 + $0x14] sm:$0xf]
        %v2636 = vld [vmem:[%s389 + $0x18] sm:$0xf]
        %v2637 = vld [vmem:[%s389 + $0x1c] sm:$0xf]
        %v2638 = vld [vmem:[%s389 + $0x20] sm:$0xf]
        %v2639 = vld [vmem:[%s389 + $0x24] sm:$0xf]
        %v2640 = vld [vmem:[%s389 + $0x28] sm:$0xf]
        %v2641 = vld [vmem:[%s389 + $0x2c] sm:$0xf]
        %v2642 = vld [vmem:[%s389 + $0x30] sm:$0xf]
        %v2643 = vld [vmem:[%s389 + $0x34] sm:$0xf]
        %v2644 = vld [vmem:[%s389 + $0x38] sm:$0xf]
        %v2645 = vld [vmem:[%s389 + $0x3c] sm:$0xf]
        %v2646 = vld [vmem:[%s389 + $0x40] sm:$0xf]
        %v2647 = vld [vmem:[%s389 + $0x44] sm:$0xf]
        %v2648 = vld [vmem:[%s389 + $0x48] sm:$0xf]
        %v2649 = vld [vmem:[%s389 + $0x4c] sm:$0xf]
        %v2650 = vld [vmem:[%s389 + $0x50] sm:$0xf]
        %v2651 = vld [vmem:[%s389 + $0x54] sm:$0xf]
        %v2652 = vld [vmem:[%s389 + $0x58] sm:$0xf]
        %v2653 = vld [vmem:[%s389 + $0x5c] sm:$0xf]
        %v2654 = vld [vmem:[%s389 + $0x60] sm:$0xf]
        %v2655 = vld [vmem:[%s389 + $0x64] sm:$0xf]
        %v2656 = vld [vmem:[%s389 + $0x68] sm:$0xf]
        %v2657 = vld [vmem:[%s389 + $0x6c] sm:$0xf]
        %v2658 = vld [vmem:[%s389 + $0x70] sm:$0xf]
        %v2659 = vld [vmem:[%s389 + $0x74] sm:$0xf]
        %v2660 = vld [vmem:[%s389 + $0x78] sm:$0xf]
        %v2661 = vld [vmem:[%s389 + $0x7c] sm:$0xf]
        %v2662 = vld [vmem:[%s389 + $0x80] sm:$0xf]
        %v2663 = vld [vmem:[%s389 + $0x84] sm:$0xf]
        %v2664 = vld [vmem:[%s389 + $0x88] sm:$0xf]
        %v2665 = vld [vmem:[%s389 + $0x8c] sm:$0xf]
        %v2666 = vld [vmem:[%s389 + $0x90] sm:$0xf]
        %v2667 = vld [vmem:[%s389 + $0x94] sm:$0xf]
        %v2668 = vld [vmem:[%s389 + $0x98] sm:$0xf]
        %v2669 = vld [vmem:[%s389 + $0x9c] sm:$0xf]
        %v2670 = vld [vmem:[%s389 + $0xa0] sm:$0xf]
        %v2671 = vld [vmem:[%s389 + $0xa4] sm:$0xf]
        %v2672 = vld [vmem:[%s389 + $0xa8] sm:$0xf]
        %v2673 = vld [vmem:[%s389 + $0xac] sm:$0xf]
        %v2674 = vld [vmem:[%s389 + $0xb0] sm:$0xf]
        %v2675 = vld [vmem:[%s389 + $0xb4] sm:$0xf]
        %v2676 = vld [vmem:[%s389 + $0xb8] sm:$0xf]
        %v2677 = vld [vmem:[%s389 + $0xbc] sm:$0xf]
        %v2678 = vld [vmem:[%s389 + $0xc0] sm:$0xf]
        %v2679 = vld [vmem:[%s389 + $0xc4] sm:$0xf]
        %v2680 = vld [vmem:[%s389 + $0xc8] sm:$0xf]
        %v2681 = vld [vmem:[%s389 + $0xcc] sm:$0xf]
        %v2682 = vld [vmem:[%s389 + $0xd0] sm:$0xf]
        %v2683 = vld [vmem:[%s389 + $0xd4] sm:$0xf]
        %v2684 = vld [vmem:[%s389 + $0xd8] sm:$0xf]
        %v2685 = vld [vmem:[%s389 + $0xdc] sm:$0xf]
        %v2686 = vld [vmem:[%s389 + $0xe0] sm:$0xf]
        %v2687 = vld [vmem:[%s389 + $0xe4] sm:$0xf]
        %v2688 = vld [vmem:[%s389 + $0xe8] sm:$0xf]
        %v2689 = vld [vmem:[%s389 + $0xec] sm:$0xf]
        %v2690 = vld [vmem:[%s389 + $0xf0] sm:$0xf]
        %v2691 = vld [vmem:[%s389 + $0xf4] sm:$0xf]
        %v2692 = vld [vmem:[%s389 + $0xf8] sm:$0xf]
        %v2693 = vld [vmem:[%s389 + $0xfc] sm:$0xf]
        %v2758 = vunpack.c.l.b16 %v2630
        %v2759 = vunpack.c.l.b16 %v2631
        %v2760 = vunpack.c.l.b16 %v2632
        %v2761 = vunpack.c.l.b16 %v2633
        %v2762 = vunpack.c.l.b16 %v2634
        %v2763 = vunpack.c.l.b16 %v2635
        %v2764 = vunpack.c.l.b16 %v2636
        %v2765 = vunpack.c.l.b16 %v2637
        %v2766 = vunpack.c.l.b16 %v2638
        %v2767 = vunpack.c.l.b16 %v2639
        %v2768 = vunpack.c.l.b16 %v2640
        %v2769 = vunpack.c.l.b16 %v2641
        %v2770 = vunpack.c.l.b16 %v2642
        %v2771 = vunpack.c.l.b16 %v2643
        %v2772 = vunpack.c.l.b16 %v2644
        %v2773 = vunpack.c.l.b16 %v2645
        %v2774 = vunpack.c.l.b16 %v2646
        %v2775 = vunpack.c.l.b16 %v2647
        %v2776 = vunpack.c.l.b16 %v2648
        %v2777 = vunpack.c.l.b16 %v2649
        %v2778 = vunpack.c.l.b16 %v2650
        %v2779 = vunpack.c.l.b16 %v2651
        %v2780 = vunpack.c.l.b16 %v2652
        %v2781 = vunpack.c.l.b16 %v2653
        %v2782 = vunpack.c.l.b16 %v2654
        %v2783 = vunpack.c.l.b16 %v2655
        %v2784 = vunpack.c.l.b16 %v2656
        %v2785 = vunpack.c.l.b16 %v2657
        %v2786 = vunpack.c.l.b16 %v2658
        %v2787 = vunpack.c.l.b16 %v2659
        %v2788 = vunpack.c.l.b16 %v2660
        %v2789 = vunpack.c.l.b16 %v2661
        %v2790 = vunpack.c.l.b16 %v2662
        %v2791 = vunpack.c.l.b16 %v2663
        %v2792 = vunpack.c.l.b16 %v2664
        %v2793 = vunpack.c.l.b16 %v2665
        %v2794 = vunpack.c.l.b16 %v2666
        %v2795 = vunpack.c.l.b16 %v2667
        %v2796 = vunpack.c.l.b16 %v2668
        %v2797 = vunpack.c.l.b16 %v2669
        %v2798 = vunpack.c.l.b16 %v2670
        %v2799 = vunpack.c.l.b16 %v2671
        %v2800 = vunpack.c.l.b16 %v2672
        %v2801 = vunpack.c.l.b16 %v2673
        %v2802 = vunpack.c.l.b16 %v2674
        %v2803 = vunpack.c.l.b16 %v2675
        %v2804 = vunpack.c.l.b16 %v2676
        %v2805 = vunpack.c.l.b16 %v2677
        %v2806 = vunpack.c.l.b16 %v2678
        %v2807 = vunpack.c.l.b16 %v2679
        %v2808 = vunpack.c.l.b16 %v2680
        %v2809 = vunpack.c.l.b16 %v2681
        %v2810 = vunpack.c.l.b16 %v2682
        %v2811 = vunpack.c.l.b16 %v2683
        %v2812 = vunpack.c.l.b16 %v2684
        %v2813 = vunpack.c.l.b16 %v2685
        %v2814 = vunpack.c.l.b16 %v2686
        %v2815 = vunpack.c.l.b16 %v2687
        %v2816 = vunpack.c.l.b16 %v2688
        %v2817 = vunpack.c.l.b16 %v2689
        %v2818 = vunpack.c.l.b16 %v2690
        %v2819 = vunpack.c.l.b16 %v2691
        %v2820 = vunpack.c.l.b16 %v2692
        %v2821 = vunpack.c.l.b16 %v2693
        %v2822 = vpack.c.b16 %v2759, %v2758
        %v2823 = vpack.c.b16 %v2761, %v2760
        %v2824 = vpack.c.b16 %v2763, %v2762
        %v2825 = vpack.c.b16 %v2765, %v2764
        %v2826 = vpack.c.b16 %v2767, %v2766
        %v2827 = vpack.c.b16 %v2769, %v2768
        %v2828 = vpack.c.b16 %v2771, %v2770
        %v2829 = vpack.c.b16 %v2773, %v2772
        %v2830 = vpack.c.b16 %v2775, %v2774
        %v2831 = vpack.c.b16 %v2777, %v2776
        %v2832 = vpack.c.b16 %v2779, %v2778
        %v2833 = vpack.c.b16 %v2781, %v2780
        %v2834 = vpack.c.b16 %v2783, %v2782
        %v2835 = vpack.c.b16 %v2785, %v2784
        %v2836 = vpack.c.b16 %v2787, %v2786
        %v2837 = vpack.c.b16 %v2789, %v2788
        %v2838 = vpack.c.b16 %v2791, %v2790
        %v2839 = vpack.c.b16 %v2793, %v2792
        %v2840 = vpack.c.b16 %v2795, %v2794
        %v2841 = vpack.c.b16 %v2797, %v2796
        %v2842 = vpack.c.b16 %v2799, %v2798
        %v2843 = vpack.c.b16 %v2801, %v2800
        %v2844 = vpack.c.b16 %v2803, %v2802
        %v2845 = vpack.c.b16 %v2805, %v2804
        %v2846 = vpack.c.b16 %v2807, %v2806
        %v2847 = vpack.c.b16 %v2809, %v2808
        %v2848 = vpack.c.b16 %v2811, %v2810
        %v2849 = vpack.c.b16 %v2813, %v2812
        %v2850 = vpack.c.b16 %v2815, %v2814
        %v2851 = vpack.c.b16 %v2817, %v2816
        %v2852 = vpack.c.b16 %v2819, %v2818
        %v2853 = vpack.c.b16 %v2821, %v2820
        %2886 = vmatprep.subr.bf16.mxu0 0
        %2887 = vmatpush1.bf16.msra.mxu0 %v2822
        %2888 = vmatprep.subr.bf16.mxu0 0
        %2889 = vmatpush1.bf16.msra.mxu0 %v2823
        %2890 = vmatprep.subr.bf16.mxu0 0
        %2891 = vmatpush1.bf16.msra.mxu0 %v2824
        %2892 = vmatprep.subr.bf16.mxu0 0
        %2893 = vmatpush1.bf16.msra.mxu0 %v2825
        %2894 = vmatprep.subr.bf16.mxu0 0
        %2895 = vmatpush1.bf16.msra.mxu0 %v2826
        %2896 = vmatprep.subr.bf16.mxu0 0
        %2897 = vmatpush1.bf16.msra.mxu0 %v2827
        %2898 = vmatprep.subr.bf16.mxu0 0
        %2899 = vmatpush1.bf16.msra.mxu0 %v2828
        %2900 = vmatprep.subr.bf16.mxu0 0
        %2901 = vmatpush1.bf16.msra.mxu0 %v2829
        %2902 = vmatprep.subr.bf16.mxu0 0
        %2903 = vmatpush1.bf16.msra.mxu0 %v2830
        %2904 = vmatprep.subr.bf16.mxu0 0
        %2905 = vmatpush1.bf16.msra.mxu0 %v2831
        %2906 = vmatprep.subr.bf16.mxu0 0
        %2907 = vmatpush1.bf16.msra.mxu0 %v2832
        %2908 = vmatprep.subr.bf16.mxu0 0
        %2909 = vmatpush1.bf16.msra.mxu0 %v2833
        %2910 = vmatprep.subr.bf16.mxu0 0
        %2911 = vmatpush1.bf16.msra.mxu0 %v2834
        %2912 = vmatprep.subr.bf16.mxu0 0
        %2913 = vmatpush1.bf16.msra.mxu0 %v2835
        %2914 = vmatprep.subr.bf16.mxu0 0
        %2915 = vmatpush1.bf16.msra.mxu0 %v2836
        %2916 = vmatprep.subr.bf16.mxu0 0
        %2917 = vmatpush1.bf16.msra.mxu0 %v2837
        %2918 = vmatprep.mubr.bf16.mxu0 %v2599
        %2919 = vmatmul.mubr.bf16.gmra.mrb[0].mxu0 %v2598
        %v2920 = vpop.f32.mrb[0].mxu0
        %v2921 = vadd.f32 0.0, %v2920
        %v2922 = vpop.f32.mrb[0].mxu0
        %v2923 = vpop.f32.mrb[0].mxu0
        %v2924 = vadd.f32 0.0, %v2923
        %v2925 = vpop.f32.mrb[0].mxu0
        %2926 = vmatprep.mubr.bf16.mxu0 %v2603
        %2927 = vmatmul.mubr.bf16.gmra.mrb[0].mxu0 %v2602
        %v2928 = vpop.f32.mrb[0].mxu0
        %v2929 = vadd.f32 0.0, %v2928
        %v2930 = vpop.f32.mrb[0].mxu0
        %v2931 = vpop.f32.mrb[0].mxu0
        %v2932 = vadd.f32 0.0, %v2931
        %v2933 = vpop.f32.mrb[0].mxu0
        %2934 = vmatprep.mubr.bf16.mxu0 %v2607
        %2935 = vmatmul.mubr.bf16.gmra.mrb[0].mxu0 %v2606
        %v2936 = vpop.f32.mrb[0].mxu0
        %v2937 = vadd.f32 0.0, %v2936
        %v2938 = vpop.f32.mrb[0].mxu0
        %v2939 = vpop.f32.mrb[0].mxu0
        %v2940 = vadd.f32 0.0, %v2939
        %v2941 = vpop.f32.mrb[0].mxu0
        %2942 = vmatprep.mubr.bf16.mxu0 %v2611
        %2943 = vmatmul.mubr.bf16.gmra.mrb[0].mxu0 %v2610
        %v2944 = vpop.f32.mrb[0].mxu0
        %v2945 = vadd.f32 0.0, %v2944
        %v2946 = vpop.f32.mrb[0].mxu0
        %v2947 = vpop.f32.mrb[0].mxu0
        %v2948 = vadd.f32 0.0, %v2947
        %v2949 = vpop.f32.mrb[0].mxu0
        %2950 = vmatprep.mubr.bf16.mxu0 %v2615
        %2951 = vmatmul.mubr.bf16.gmra.mrb[0].mxu0 %v2614
        %v2952 = vpop.f32.mrb[0].mxu0
        %v2953 = vadd.f32 0.0, %v2952
        %v2954 = vpop.f32.mrb[0].mxu0
        %v2955 = vpop.f32.mrb[0].mxu0
        %v2956 = vadd.f32 0.0, %v2955
        %v2957 = vpop.f32.mrb[0].mxu0
        %2958 = vmatprep.mubr.bf16.mxu0 %v2619
        %2959 = vmatmul.mubr.bf16.gmra.mrb[0].mxu0 %v2618
        %v2960 = vpop.f32.mrb[0].mxu0
        %v2961 = vadd.f32 0.0, %v2960
        %v2962 = vpop.f32.mrb[0].mxu0
        %v2963 = vpop.f32.mrb[0].mxu0
        %v2964 = vadd.f32 0.0, %v2963
        %v2965 = vpop.f32.mrb[0].mxu0
        %2966 = vmatprep.mubr.bf16.mxu0 %v2623
        %2967 = vmatmul.mubr.bf16.gmra.mrb[0].mxu0 %v2622
        %v2968 = vpop.f32.mrb[0].mxu0
        %v2969 = vadd.f32 0.0, %v2968
        %v2970 = vpop.f32.mrb[0].mxu0
        %v2971 = vpop.f32.mrb[0].mxu0
        %v2972 = vadd.f32 0.0, %v2971
        %v2973 = vpop.f32.mrb[0].mxu0
        %2974 = vmatprep.mubr.bf16.mxu0 %v2627
        %2975 = vmatmul.mubr.bf16.gmra.mrb[0].mxu0 %v2626
        %v2976 = vpop.f32.mrb[0].mxu0
        %v2977 = vadd.f32 0.0, %v2976
        %v2978 = vpop.f32.mrb[0].mxu0
        %v2979 = vpop.f32.mrb[0].mxu0
        %v2980 = vadd.f32 0.0, %v2979
        %v2981 = vpop.f32.mrb[0].mxu0
        %2982 = vdwg.mxu0
        %2983 = vmatprep.subr.bf16.mxu0 0
        %2984 = vmatpush1.bf16.msra.mxu0 %v2838
        %2985 = vmatprep.subr.bf16.mxu0 0
        %2986 = vmatpush1.bf16.msra.mxu0 %v2839
        %2987 = vmatprep.subr.bf16.mxu0 0
        %2988 = vmatpush1.bf16.msra.mxu0 %v2840
        %2989 = vmatprep.subr.bf16.mxu0 0
        %2990 = vmatpush1.bf16.msra.mxu0 %v2841
        %2991 = vmatprep.subr.bf16.mxu0 0
        %2992 = vmatpush1.bf16.msra.mxu0 %v2842
        %2993 = vmatprep.subr.bf16.mxu0 0
        %2994 = vmatpush1.bf16.msra.mxu0 %v2843
        %2995 = vmatprep.subr.bf16.mxu0 0
        %2996 = vmatpush1.bf16.msra.mxu0 %v2844
        %2997 = vmatprep.subr.bf16.mxu0 0
        %2998 = vmatpush1.bf16.msra.mxu0 %v2845
        %2999 = vmatprep.subr.bf16.mxu0 0
        %3000 = vmatpush1.bf16.msra.mxu0 %v2846
        %3001 = vmatprep.subr.bf16.mxu0 0
        %3002 = vmatpush1.bf16.msra.mxu0 %v2847
        %3003 = vmatprep.subr.bf16.mxu0 0
        %3004 = vmatpush1.bf16.msra.mxu0 %v2848
        %3005 = vmatprep.subr.bf16.mxu0 0
        %3006 = vmatpush1.bf16.msra.mxu0 %v2849
        %3007 = vmatprep.subr.bf16.mxu0 0
        %3008 = vmatpush1.bf16.msra.mxu0 %v2850
        %3009 = vmatprep.subr.bf16.mxu0 0
        %3010 = vmatpush1.bf16.msra.mxu0 %v2851
        %3011 = vmatprep.subr.bf16.mxu0 0
        %3012 = vmatpush1.bf16.msra.mxu0 %v2852
        %3013 = vmatprep.subr.bf16.mxu0 0
        %3014 = vmatpush1.bf16.msra.mxu0 %v2853
        %3015 = vmatprep.mubr.bf16.mxu0 %v2601
        %3016 = vmatmul.mubr.bf16.gmra.mrb[0].mxu0 %v2600
        %v3017 = vpop.f32.mrb[0].mxu0
        %v3018 = vadd.f32 %v2921, %v3017
        %v3019 = vpop.f32.mrb[0].mxu0
        %v3020 = vpop.f32.mrb[0].mxu0
        %v3021 = vadd.f32 %v2924, %v3020
        %v3022 = vpop.f32.mrb[0].mxu0
        %3023 = vmatprep.mubr.bf16.mxu0 %v2605
        %3024 = vmatmul.mubr.bf16.gmra.mrb[0].mxu0 %v2604
        %v3025 = vpop.f32.mrb[0].mxu0
        %v3026 = vadd.f32 %v2929, %v3025
        %v3027 = vpop.f32.mrb[0].mxu0
        %v3028 = vpop.f32.mrb[0].mxu0
        %v3029 = vadd.f32 %v2932, %v3028
        %v3030 = vpop.f32.mrb[0].mxu0
        %3031 = vmatprep.mubr.bf16.mxu0 %v2609
        %3032 = vmatmul.mubr.bf16.gmra.mrb[0].mxu0 %v2608
        %v3033 = vpop.f32.mrb[0].mxu0
        %v3034 = vadd.f32 %v2937, %v3033
        %v3035 = vpop.f32.mrb[0].mxu0
        %v3036 = vpop.f32.mrb[0].mxu0
        %v3037 = vadd.f32 %v2940, %v3036
        %v3038 = vpop.f32.mrb[0].mxu0
        %3039 = vmatprep.mubr.bf16.mxu0 %v2613
        %3040 = vmatmul.mubr.bf16.gmra.mrb[0].mxu0 %v2612
        %v3041 = vpop.f32.mrb[0].mxu0
        %v3042 = vadd.f32 %v2945, %v3041
        %v3043 = vpop.f32.mrb[0].mxu0
        %v3044 = vpop.f32.mrb[0].mxu0
        %v3045 = vadd.f32 %v2948, %v3044
        %v3046 = vpop.f32.mrb[0].mxu0
        %3047 = vmatprep.mubr.bf16.mxu0 %v2617
        %3048 = vmatmul.mubr.bf16.gmra.mrb[0].mxu0 %v2616
        %v3049 = vpop.f32.mrb[0].mxu0
        %v3050 = vadd.f32 %v2953, %v3049
        %v3051 = vpop.f32.mrb[0].mxu0
        %v3052 = vpop.f32.mrb[0].mxu0
        %v3053 = vadd.f32 %v2956, %v3052
        %v3054 = vpop.f32.mrb[0].mxu0
        %3055 = vmatprep.mubr.bf16.mxu0 %v2621
        %3056 = vmatmul.mubr.bf16.gmra.mrb[0].mxu0 %v2620
        %v3057 = vpop.f32.mrb[0].mxu0
        %v3058 = vadd.f32 %v2961, %v3057
        %v3059 = vpop.f32.mrb[0].mxu0
        %v3060 = vpop.f32.mrb[0].mxu0
        %v3061 = vadd.f32 %v2964, %v3060
        %v3062 = vpop.f32.mrb[0].mxu0
        %3063 = vmatprep.mubr.bf16.mxu0 %v2625
        %3064 = vmatmul.mubr.bf16.gmra.mrb[0].mxu0 %v2624
        %v3065 = vpop.f32.mrb[0].mxu0
        %v3066 = vadd.f32 %v2969, %v3065
        %v3067 = vpop.f32.mrb[0].mxu0
        %v3068 = vpop.f32.mrb[0].mxu0
        %v3069 = vadd.f32 %v2972, %v3068
        %v3070 = vpop.f32.mrb[0].mxu0
        %3071 = vmatprep.mubr.bf16.mxu0 %v2629
        %3072 = vmatmul.mubr.bf16.gmra.mrb[0].mxu0 %v2628
        %v3073 = vpop.f32.mrb[0].mxu0
        %v3074 = vadd.f32 %v2977, %v3073
        %v3075 = vpop.f32.mrb[0].mxu0
        %v3076 = vpop.f32.mrb[0].mxu0
        %v3077 = vadd.f32 %v2980, %v3076
        %v3078 = vpop.f32.mrb[0].mxu0
        %3079 = vdwg.mxu0
        %p3080 = scmp.eq.s32.totalorder %s32, 0
        // Predicated region
        $region65: #{tpu_custom_call.1} parent=43 // pred_check
          %p3081 = pneg %p3080
        $region66: #{tpu_custom_call.1} parent=43 // pred_check_branch
          %3083 = sbr.rel (%p3081) target = $region68
        $region67: #{tpu_custom_call.1} parent=43 // pred_region
          %3084 = vst [vmem:[%s437] sm:$0xff] %v3018
          %3085 = vst [vmem:[%s437 + $0x8] sm:$0xff] %v3021
          %3086 = vst [vmem:[%s437 + $0x10] sm:$0xff] %v3026
          %3087 = vst [vmem:[%s437 + $0x18] sm:$0xff] %v3029
          %3088 = vst [vmem:[%s437 + $0x20] sm:$0xff] %v3034
          %3089 = vst [vmem:[%s437 + $0x28] sm:$0xff] %v3037
          %3090 = vst [vmem:[%s437 + $0x30] sm:$0xff] %v3042
          %3091 = vst [vmem:[%s437 + $0x38] sm:$0xff] %v3045
          %3092 = vst [vmem:[%s437 + $0x40] sm:$0xff] %v3050
          %3093 = vst [vmem:[%s437 + $0x48] sm:$0xff] %v3053
          %3094 = vst [vmem:[%s437 + $0x50] sm:$0xff] %v3058
          %3095 = vst [vmem:[%s437 + $0x58] sm:$0xff] %v3061
          %3096 = vst [vmem:[%s437 + $0x60] sm:$0xff] %v3066
          %3097 = vst [vmem:[%s437 + $0x68] sm:$0xff] %v3069
          %3098 = vst [vmem:[%s437 + $0x70] sm:$0xff] %v3074
          %3099 = vst [vmem:[%s437 + $0x78] sm:$0xff] %v3077
        $region68: #{tpu_custom_call.1} parent=43 // pred_fallthru
          _
        %p3100 = scmp.gt.s32.totalorder %s32, 0
        // Predicated region
        $region69: #{tpu_custom_call.1} parent=43 // pred_check
          %p3101 = pneg %p3100
        $region70: #{tpu_custom_call.1} parent=43 // pred_check_branch
          %3103 = sbr.rel (%p3101) target = $region72
        $region71: #{tpu_custom_call.1} parent=43 // pred_region
          %v3104 = vld [vmem:[%s437] sm:$0xff]
          %v3105 = vld [vmem:[%s437 + $0x8] sm:$0xff]
          %v3106 = vld [vmem:[%s437 + $0x10] sm:$0xff]
          %v3107 = vld [vmem:[%s437 + $0x18] sm:$0xff]
          %v3108 = vld [vmem:[%s437 + $0x20] sm:$0xff]
          %v3109 = vld [vmem:[%s437 + $0x28] sm:$0xff]
          %v3110 = vld [vmem:[%s437 + $0x30] sm:$0xff]
          %v3111 = vld [vmem:[%s437 + $0x38] sm:$0xff]
          %v3112 = vld [vmem:[%s437 + $0x40] sm:$0xff]
          %v3113 = vld [vmem:[%s437 + $0x48] sm:$0xff]
          %v3114 = vld [vmem:[%s437 + $0x50] sm:$0xff]
          %v3115 = vld [vmem:[%s437 + $0x58] sm:$0xff]
          %v3116 = vld [vmem:[%s437 + $0x60] sm:$0xff]
          %v3117 = vld [vmem:[%s437 + $0x68] sm:$0xff]
          %v3118 = vld [vmem:[%s437 + $0x70] sm:$0xff]
          %v3119 = vld [vmem:[%s437 + $0x78] sm:$0xff]
          %v3120 = vadd.f32 %v3104, %v3018
          %v3121 = vadd.f32 %v3105, %v3021
          %v3122 = vadd.f32 %v3106, %v3026
          %v3123 = vadd.f32 %v3107, %v3029
          %v3124 = vadd.f32 %v3108, %v3034
          %v3125 = vadd.f32 %v3109, %v3037
          %v3126 = vadd.f32 %v3110, %v3042
          %v3127 = vadd.f32 %v3111, %v3045
          %v3128 = vadd.f32 %v3112, %v3050
          %v3129 = vadd.f32 %v3113, %v3053
          %v3130 = vadd.f32 %v3114, %v3058
          %v3131 = vadd.f32 %v3115, %v3061
          %v3132 = vadd.f32 %v3116, %v3066
          %v3133 = vadd.f32 %v3117, %v3069
          %v3134 = vadd.f32 %v3118, %v3074
          %v3135 = vadd.f32 %v3119, %v3077
          %3136 = vst [vmem:[%s437] sm:$0xff] %v3120
          %3137 = vst [vmem:[%s437 + $0x8] sm:$0xff] %v3121
          %3138 = vst [vmem:[%s437 + $0x10] sm:$0xff] %v3122
          %3139 = vst [vmem:[%s437 + $0x18] sm:$0xff] %v3123
          %3140 = vst [vmem:[%s437 + $0x20] sm:$0xff] %v3124
          %3141 = vst [vmem:[%s437 + $0x28] sm:$0xff] %v3125
          %3142 = vst [vmem:[%s437 + $0x30] sm:$0xff] %v3126
          %3143 = vst [vmem:[%s437 + $0x38] sm:$0xff] %v3127
          %3144 = vst [vmem:[%s437 + $0x40] sm:$0xff] %v3128
          %3145 = vst [vmem:[%s437 + $0x48] sm:$0xff] %v3129
          %3146 = vst [vmem:[%s437 + $0x50] sm:$0xff] %v3130
          %3147 = vst [vmem:[%s437 + $0x58] sm:$0xff] %v3131
          %3148 = vst [vmem:[%s437 + $0x60] sm:$0xff] %v3132
          %3149 = vst [vmem:[%s437 + $0x68] sm:$0xff] %v3133
          %3150 = vst [vmem:[%s437 + $0x70] sm:$0xff] %v3134
          %3151 = vst [vmem:[%s437 + $0x78] sm:$0xff] %v3135
        $region72: #{tpu_custom_call.1} parent=43 // pred_fallthru
          _
        %s3152 = sand.u32 %s208, 1
        %s3153 = scalar_lea.sflag [#allocation4], %s3152
        %s3154 = sand.u32 %s208, 1
        %s3155 = smul.addr %s3154, 128
        %s3156 = scalar_lea.vmem [#allocation11], %s3155
        // Predicated region
        $region73: #{tpu_custom_call.1} parent=43 // pred_check
          %p3157 = pneg %p218
        $region74: #{tpu_custom_call.1} parent=43 // pred_check_branch
          %3159 = sbr.rel (%p3157) target = $region76
        $region75: #{tpu_custom_call.1} parent=43 // pred_region
          %s3161 = ssub.s32 2048, 2048
          %3162 = vsyncadd %s3153, %s3161
          %s3163 = smul.addr %s31, 16
          %s3164 = smul.addr %s3163, 128
          %s3165 = scalar_lea.hbm %s6, %s3164
          %s3166 = sshll.u32 %s3156, 4
          %s3167 = int_to_ptr.vmem [resolvable:$true] %s3166
          %3172 = dma.vmem_to_hbm [thread:$0]  %s3167, 2048, %s3165, %s3153, 128, 128, 8
        $region76: #{tpu_custom_call.1} parent=43 // pred_fallthru
          _
      $region44: #{tpu_custom_call.1} parent=5 // pred_fallthru
        _
      %p3173 = scmp.le.s32.totalorder 2, %s22
      // Predicated region
      $region77: #{tpu_custom_call.1} parent=5 // pred_check
        %p3174 = pneg %p3173
      $region78: #{tpu_custom_call.1} parent=5 // pred_check_branch
        %3176 = sbr.rel (%p3174) target = $region80
      $region79: #{tpu_custom_call.1} parent=5 // pred_region
        %s3177 = ssub.s32 %s22, 2
        // Predicated region
        $region81: #{tpu_custom_call.1} parent=79 // pred_check
          %p3178 = pneg %p224
        $region82: #{tpu_custom_call.1} parent=79 // pred_check_branch
          %3180 = sbr.rel (%p3178) target = $region84
        $region83: #{tpu_custom_call.1} parent=79 // pred_region
          %s3181 = sand.u32 %s209, 1
          %s3182 = scalar_lea.sflag [#allocation4], %s3181
          %s3183 = sand.u32 %s209, 1
          %s3184 = smul.addr %s3183, 128
          %s3185 = scalar_lea.vmem [#allocation11], %s3184
          %3186 = dma.done %s3182, 2048
        $region84: #{tpu_custom_call.1} parent=79 // pred_fallthru
          _
      $region80: #{tpu_custom_call.1} parent=5 // pred_fallthru
        _
    $region6: #{tpu_custom_call.1} parent=1 // loop_footer
      %s26 = sadd.s32 1, %s22
    $region7: #{tpu_custom_call.1} parent=1 // loop_footer_branch
      %21 = sbr.rel target = $region3
    $region8: #{tpu_custom_call.1} parent=1 // loop_exit
      _
    %3187 = vsyncpa [#allocation3], 1
    %s3188 = scalar_lea.sflag [#allocation3], 1
    %3189 = vsyncpa %s3188, 1
    %3190 = vsyncpa [#allocation6], 1
    %s3191 = scalar_lea.sflag [#allocation6], 1
    %3192 = vsyncpa %s3191, 1
    %3193 = vsyncpa [#allocation9], 1
    %s3194 = scalar_lea.sflag [#allocation9], 1
    %3195 = vsyncpa %s3194, 1
    %3196 = vsyncpa [#allocation4], 1
    %s3197 = scalar_lea.sflag [#allocation4], 1
    %3198 = vsyncpa %s3197, 1

</llo_original>
